<compile_context>
chip_gen: v7x
topology: tpu7x:2x2x1
jax: 0.10.0
libtpu: 0.0.40
codegen_flags: <defaults>
</compile_context>

<pallas_src>
import jax
import jax.numpy as jnp
from jax.experimental import pallas as pl
from jax.experimental.pallas import tpu as pltpu


def bilstm_tag_kernel(idx_ref, emb_ref,
                      wih_f_ref, whh_f_ref, b_f_ref,
                      wih_b_ref, whh_b_ref, b_b_ref,
                      wtag_ref, btag_ref,
                      h0_ref, c0_ref,
                      out_ref):
    """One batch tile of: embedding -> BiLSTM -> hidden2tag.

    Block shapes:
      idx   (TB, S) i32      emb   (Vp, E) bf16
      wih_* (E, 4H) bf16     whh_* (H, 4H) bf16     b_* (1, 4H) f32
      wtag  (2H, Tpad) bf16  btag  (1, Tpad) f32
      h0/c0 (2, TB, H) f32   out   (S, TB, Tpad) f32 (time-major, lane-dense)
    """
    TB, S = idx_ref.shape
    Vp, E = emb_ref.shape
    H = whh_f_ref.shape[0]

    idx = idx_ref[...]                                             # (TB, S) int32
    emb = emb_ref[...]                                             # (Vp, E) bf16
    vocab_iota = jax.lax.broadcasted_iota(jnp.int32, (TB, Vp), 1)  # (TB, Vp)

    # ---- embedding lookup: per-step 2D one-hot ridden on the MXU -----------
    # TODO(synk): for production vocab sizes keep the table in HBM (pl.ANY) and
    # DMA-gather rows with scalar-prefetched indices instead of one-hot matmuls.
    xs = []
    for t in range(S):                                  # S is small and static
        onehot = (idx[:, t:t + 1] == vocab_iota).astype(jnp.float32)
        xs.append(jnp.dot(onehot.astype(jnp.bfloat16), emb,
                          preferred_element_type=jnp.float32))     # (TB, E) f32

    wih_f, whh_f, b_f = wih_f_ref[...], whh_f_ref[...], b_f_ref[...]
    wih_b, whh_b, b_b = wih_b_ref[...], whh_b_ref[...], b_b_ref[...]
    wtag, btag = wtag_ref[...], btag_ref[...]

    def sigmoid(x):
        # exp on the EUP + approx reciprocal (EUP) -> stays off the VPU path.
        return pl.reciprocal(1.0 + jnp.exp(-x), approx=True)

    def lstm_step(x, h, c, wih, whh, bias):
        # gates laid out i|f|g|o (PyTorch order); 4H == 128 -> lane-dense matmul.
        gates = (jnp.dot(x.astype(jnp.bfloat16), wih,
                         preferred_element_type=jnp.float32)
                 + jnp.dot(h.astype(jnp.bfloat16), whh,
                           preferred_element_type=jnp.float32)
                 + bias)                                           # (TB, 4H) f32
        i = sigmoid(gates[:, 0 * H:1 * H])
        f = sigmoid(gates[:, 1 * H:2 * H])
        g = jnp.tanh(gates[:, 2 * H:3 * H])
        o = sigmoid(gates[:, 3 * H:4 * H])
        c_new = f * c + i * g
        h_new = o * jnp.tanh(c_new)
        return h_new, c_new

    # ---- forward direction --------------------------------------------------
    # TODO(synk): for long sequences switch the unrolled loops to lax.fori_loop
    # over a time-major VMEM scratch to bound code size / live ranges.
    h, c = h0_ref[0], c0_ref[0]                                    # (TB, H) f32
    h_fwd = []
    for t in range(S):
        h, c = lstm_step(xs[t], h, c, wih_f, whh_f, b_f)
        h_fwd.append(h)

    # ---- backward direction, fused with the hidden2tag projection -----------
    h, c = h0_ref[1], c0_ref[1]
    for j in range(S):
        t = S - 1 - j
        h, c = lstm_step(xs[t], h, c, wih_b, whh_b, b_b)
        hcat = jnp.concatenate([h_fwd[t], h], axis=-1)             # (TB, 2H) f32
        out_ref[t] = (jnp.dot(hcat.astype(jnp.bfloat16), wtag,
                              preferred_element_type=jnp.float32)
                      + btag)                                      # (TB, Tpad) f32


def bilstm_crf_features(sentence, h0, c0, emb, wih_f, whh_f, b_f,
                        wih_b, whh_b, b_b, wtag, btag, *,
                        tagset_size, block_b=8):
    B, S = sentence.shape
    assert B % block_b == 0, "batch must be a multiple of the batch tile"
    Vp, E = emb.shape
    H = whh_f.shape[0]
    G = 4 * H
    Tpad = wtag.shape[1]
    TB = block_b

    def resident(shape):
        return pl.BlockSpec(shape, lambda i, _n=len(shape): (0,) * _n)

    out = pl.pallas_call(
        bilstm_tag_kernel,
        out_shape=jax.ShapeDtypeStruct((S, B, Tpad), jnp.float32),
        grid=(B // TB,),
        in_specs=[
            pl.BlockSpec((TB, S), lambda i: (i, 0)),          # token ids (tiled)
            resident((Vp, E)),                                # embedding table
            resident((E, G)), resident((H, G)), resident((1, G)),   # fwd LSTM
            resident((E, G)), resident((H, G)), resident((1, G)),   # bwd LSTM
            resident((2 * H, Tpad)), resident((1, Tpad)),            # hidden2tag
            pl.BlockSpec((2, TB, H), lambda i: (0, i, 0)),    # h0
            pl.BlockSpec((2, TB, H), lambda i: (0, i, 0)),    # c0
        ],
        out_specs=pl.BlockSpec((S, TB, Tpad), lambda i: (0, i, 0)),
        compiler_params=pltpu.CompilerParams(
            dimension_semantics=("parallel",)),
    )(sentence, emb, wih_f, whh_f, b_f, wih_b, whh_b, b_b, wtag, btag, h0, c0)

    # (S, B, Tpad) -> (B, S, tagset): wrapper-side layout plumbing + un-pad.
    return out.transpose(1, 0, 2)[:, :, :tagset_size]


def make_params(key, vocab_size, emb_dim, hidden_dim, tagset_size, lane_pad=128):
    """Deterministic synthetic parameters mirroring BiLSTM_CRF.__init__ shapes."""
    assert hidden_dim % 2 == 0
    H = hidden_dim // 2
    G = 4 * H
    Tpad = ((tagset_size + lane_pad - 1) // lane_pad) * lane_pad
    keys = jax.random.split(key, 12)

    # nn.Embedding(vocab_size + 2, emb_dim); rows [2:] copied from w2v.
    w2v = jax.random.normal(keys[0], (vocab_size, emb_dim), jnp.float32)
    special = jax.random.normal(keys[1], (2, emb_dim), jnp.float32)
    emb = jnp.concatenate([special, w2v], axis=0).astype(jnp.bfloat16)   # (V+2, E)

    # nn.LSTM default init: U(-1/sqrt(H), 1/sqrt(H)); pre-transpose to (in, out),
    # fold b_ih + b_hh into one bias per direction.
    k = 1.0 / float(jnp.sqrt(jnp.float32(H)))

    def lstm_dir(kw1, kw2, kb1, kb2):
        w_ih = jax.random.uniform(kw1, (G, emb_dim), jnp.float32, -k, k)
        w_hh = jax.random.uniform(kw2, (G, H), jnp.float32, -k, k)
        b_ih = jax.random.uniform(kb1, (G,), jnp.float32, -k, k)
        b_hh = jax.random.uniform(kb2, (G,), jnp.float32, -k, k)
        return (w_ih.T.astype(jnp.bfloat16), w_hh.T.astype(jnp.bfloat16),
                (b_ih + b_hh).reshape(1, G))

    wih_f, whh_f, b_f = lstm_dir(keys[2], keys[3], keys[4], keys[5])
    wih_b, whh_b, b_b = lstm_dir(keys[6], keys[7], keys[8], keys[9])

    # hidden2tag: nn.Linear(hidden_dim, tagset_size); transposed + lane-padded.
    kt = 1.0 / float(jnp.sqrt(jnp.float32(hidden_dim)))
    w_tag = jax.random.uniform(keys[10], (tagset_size, hidden_dim), jnp.float32, -kt, kt)
    b_tag = jax.random.uniform(keys[11], (tagset_size,), jnp.float32, -kt, kt)
    wtag = jnp.zeros((hidden_dim, Tpad), jnp.float32).at[:, :tagset_size].set(w_tag.T)
    btag = jnp.zeros((1, Tpad), jnp.float32).at[0, :tagset_size].set(b_tag)

    return (emb, wih_f, whh_f, b_f, wih_b, whh_b, b_b,
            wtag.astype(jnp.bfloat16), btag)


if __name__ == "__main__":
    B, S = 16, 8             # batch, sequence length (batch tiled 8 rows / grid step)
    vocab_size = 30          # embedding table has vocab_size + 2 = 32 rows
    emb_dim = 32
    hidden_dim = 64          # per-direction H = 32 -> gate width 4H = 128 (lane-dense)
    tagset_size = 5
    block_b = 8

    key = jax.random.PRNGKey(0)
    k_params, k_idx, k_h, k_c = jax.random.split(key, 4)

    params = make_params(k_params, vocab_size, emb_dim, hidden_dim, tagset_size)
    sentence = jax.random.randint(k_idx, (B, S), 0, vocab_size + 2, jnp.int32)
    # forward() calls init_hidden(): fresh random (2, B, H) states per call.
    h0 = jax.random.normal(k_h, (2, B, hidden_dim // 2), jnp.float32)
    c0 = jax.random.normal(k_c, (2, B, hidden_dim // 2), jnp.float32)

    feats = bilstm_crf_features(sentence, h0, c0, *params,
                                tagset_size=tagset_size, block_b=block_b)
    jax.block_until_ready(feats)
    assert feats.shape == (B, S, tagset_size)
    print("KERNEL_OK")
</pallas_src>

<mosaic_0001>
module attributes {stable_mosaic.version = 11 : i64} {
  func.func @bilstm_tag_kernel(%arg0: i32, %arg1: memref<8x8xi32, #tpu.memory_space<vmem>>, %arg2: memref<32x32xbf16, #tpu.memory_space<vmem>>, %arg3: memref<32x128xbf16, #tpu.memory_space<vmem>>, %arg4: memref<32x128xbf16, #tpu.memory_space<vmem>>, %arg5: memref<1x128xf32, #tpu.memory_space<vmem>>, %arg6: memref<32x128xbf16, #tpu.memory_space<vmem>>, %arg7: memref<32x128xbf16, #tpu.memory_space<vmem>>, %arg8: memref<1x128xf32, #tpu.memory_space<vmem>>, %arg9: memref<64x128xbf16, #tpu.memory_space<vmem>>, %arg10: memref<1x128xf32, #tpu.memory_space<vmem>>, %arg11: memref<2x8x32xf32, #tpu.memory_space<vmem>>, %arg12: memref<2x8x32xf32, #tpu.memory_space<vmem>>, %arg13: memref<8x8x128xf32, #tpu.memory_space<vmem>>) attributes {dimension_semantics = [#tpu.dimension_semantics<parallel>], iteration_bounds = array<i64: 2>, scalar_prefetch = 0 : i64, scratch_operands = 0 : i64, tpu.core_type = #tpu.core_type<tc>, window_params = [{transform_indices = @transform_0, window_bounds = array<i64: 8, 8>}, {pipeline_mode = #tpu.pipeline_mode<synchronous>, transform_indices = @transform_1, window_bounds = array<i64: 32, 32>}, {pipeline_mode = #tpu.pipeline_mode<synchronous>, transform_indices = @transform_2, window_bounds = array<i64: 32, 128>}, {pipeline_mode = #tpu.pipeline_mode<synchronous>, transform_indices = @transform_3, window_bounds = array<i64: 32, 128>}, {pipeline_mode = #tpu.pipeline_mode<synchronous>, transform_indices = @transform_4, window_bounds = array<i64: 1, 128>}, {pipeline_mode = #tpu.pipeline_mode<synchronous>, transform_indices = @transform_5, window_bounds = array<i64: 32, 128>}, {pipeline_mode = #tpu.pipeline_mode<synchronous>, transform_indices = @transform_6, window_bounds = array<i64: 32, 128>}, {pipeline_mode = #tpu.pipeline_mode<synchronous>, transform_indices = @transform_7, window_bounds = array<i64: 1, 128>}, {pipeline_mode = #tpu.pipeline_mode<synchronous>, transform_indices = @transform_8, window_bounds = array<i64: 64, 128>}, {pipeline_mode = #tpu.pipeline_mode<synchronous>, transform_indices = @transform_9, window_bounds = array<i64: 1, 128>}, {transform_indices = @transform_10, window_bounds = array<i64: 2, 8, 32>}, {transform_indices = @transform_11, window_bounds = array<i64: 2, 8, 32>}, {transform_indices = @transform_12, window_bounds = array<i64: 8, 8, 128>}]} {
    %c0 = arith.constant 0 : index
    %c0_0 = arith.constant 0 : index
    %0 = vector.load %arg1[%c0, %c0_0] : memref<8x8xi32, #tpu.memory_space<vmem>>, vector<8x8xi32>
    %c0_1 = arith.constant 0 : index
    %c0_2 = arith.constant 0 : index
    %1 = vector.load %arg2[%c0_1, %c0_2] : memref<32x32xbf16, #tpu.memory_space<vmem>>, vector<32x32xbf16>
    %2 = tpu.iota {dimensions = array<i32: 1>} : vector<8x32xi32>
    %3 = vector.extract_strided_slice %0 {offsets = [0, 0], sizes = [8, 1], strides = [1, 1]} : vector<8x8xi32> to vector<8x1xi32>
    %4 = vector.broadcast %3 : vector<8x1xi32> to vector<8x32xi32>
    %5 = arith.cmpi eq, %4, %2 : vector<8x32xi32>
    %6 = arith.extui %5 : vector<8x32xi1> to vector<8x32xi32>
    %7 = arith.sitofp %6 : vector<8x32xi32> to vector<8x32xf32>
    %8 = arith.truncf %7 : vector<8x32xf32> to vector<8x32xbf16>
    %cst = arith.constant dense<0.000000e+00> : vector<8x32xf32>
    %9 = tpu.matmul %8, %1, %cst {dimension_numbers = #tpu.dot_dimension_numbers<[1], [0], [0], [1], [0, 0, 1, 1], [], []>} : vector<8x32xbf16>, vector<32x32xbf16>, vector<8x32xf32> -> vector<8x32xf32>
    %10 = vector.extract_strided_slice %0 {offsets = [0, 1], sizes = [8, 1], strides = [1, 1]} : vector<8x8xi32> to vector<8x1xi32>
    %11 = vector.broadcast %10 : vector<8x1xi32> to vector<8x32xi32>
    %12 = arith.cmpi eq, %11, %2 : vector<8x32xi32>
    %13 = arith.extui %12 : vector<8x32xi1> to vector<8x32xi32>
    %14 = arith.sitofp %13 : vector<8x32xi32> to vector<8x32xf32>
    %15 = arith.truncf %14 : vector<8x32xf32> to vector<8x32xbf16>
    %cst_3 = arith.constant dense<0.000000e+00> : vector<8x32xf32>
    %16 = tpu.matmul %15, %1, %cst_3 {dimension_numbers = #tpu.dot_dimension_numbers<[1], [0], [0], [1], [0, 0, 1, 1], [], []>} : vector<8x32xbf16>, vector<32x32xbf16>, vector<8x32xf32> -> vector<8x32xf32>
    %17 = vector.extract_strided_slice %0 {offsets = [0, 2], sizes = [8, 1], strides = [1, 1]} : vector<8x8xi32> to vector<8x1xi32>
    %18 = vector.broadcast %17 : vector<8x1xi32> to vector<8x32xi32>
    %19 = arith.cmpi eq, %18, %2 : vector<8x32xi32>
    %20 = arith.extui %19 : vector<8x32xi1> to vector<8x32xi32>
    %21 = arith.sitofp %20 : vector<8x32xi32> to vector<8x32xf32>
    %22 = arith.truncf %21 : vector<8x32xf32> to vector<8x32xbf16>
    %cst_4 = arith.constant dense<0.000000e+00> : vector<8x32xf32>
    %23 = tpu.matmul %22, %1, %cst_4 {dimension_numbers = #tpu.dot_dimension_numbers<[1], [0], [0], [1], [0, 0, 1, 1], [], []>} : vector<8x32xbf16>, vector<32x32xbf16>, vector<8x32xf32> -> vector<8x32xf32>
    %24 = vector.extract_strided_slice %0 {offsets = [0, 3], sizes = [8, 1], strides = [1, 1]} : vector<8x8xi32> to vector<8x1xi32>
    %25 = vector.broadcast %24 : vector<8x1xi32> to vector<8x32xi32>
    %26 = arith.cmpi eq, %25, %2 : vector<8x32xi32>
    %27 = arith.extui %26 : vector<8x32xi1> to vector<8x32xi32>
    %28 = arith.sitofp %27 : vector<8x32xi32> to vector<8x32xf32>
    %29 = arith.truncf %28 : vector<8x32xf32> to vector<8x32xbf16>
    %cst_5 = arith.constant dense<0.000000e+00> : vector<8x32xf32>
    %30 = tpu.matmul %29, %1, %cst_5 {dimension_numbers = #tpu.dot_dimension_numbers<[1], [0], [0], [1], [0, 0, 1, 1], [], []>} : vector<8x32xbf16>, vector<32x32xbf16>, vector<8x32xf32> -> vector<8x32xf32>
    %31 = vector.extract_strided_slice %0 {offsets = [0, 4], sizes = [8, 1], strides = [1, 1]} : vector<8x8xi32> to vector<8x1xi32>
    %32 = vector.broadcast %31 : vector<8x1xi32> to vector<8x32xi32>
    %33 = arith.cmpi eq, %32, %2 : vector<8x32xi32>
    %34 = arith.extui %33 : vector<8x32xi1> to vector<8x32xi32>
    %35 = arith.sitofp %34 : vector<8x32xi32> to vector<8x32xf32>
    %36 = arith.truncf %35 : vector<8x32xf32> to vector<8x32xbf16>
    %cst_6 = arith.constant dense<0.000000e+00> : vector<8x32xf32>
    %37 = tpu.matmul %36, %1, %cst_6 {dimension_numbers = #tpu.dot_dimension_numbers<[1], [0], [0], [1], [0, 0, 1, 1], [], []>} : vector<8x32xbf16>, vector<32x32xbf16>, vector<8x32xf32> -> vector<8x32xf32>
    %38 = vector.extract_strided_slice %0 {offsets = [0, 5], sizes = [8, 1], strides = [1, 1]} : vector<8x8xi32> to vector<8x1xi32>
    %39 = vector.broadcast %38 : vector<8x1xi32> to vector<8x32xi32>
    %40 = arith.cmpi eq, %39, %2 : vector<8x32xi32>
    %41 = arith.extui %40 : vector<8x32xi1> to vector<8x32xi32>
    %42 = arith.sitofp %41 : vector<8x32xi32> to vector<8x32xf32>
    %43 = arith.truncf %42 : vector<8x32xf32> to vector<8x32xbf16>
    %cst_7 = arith.constant dense<0.000000e+00> : vector<8x32xf32>
    %44 = tpu.matmul %43, %1, %cst_7 {dimension_numbers = #tpu.dot_dimension_numbers<[1], [0], [0], [1], [0, 0, 1, 1], [], []>} : vector<8x32xbf16>, vector<32x32xbf16>, vector<8x32xf32> -> vector<8x32xf32>
    %45 = vector.extract_strided_slice %0 {offsets = [0, 6], sizes = [8, 1], strides = [1, 1]} : vector<8x8xi32> to vector<8x1xi32>
    %46 = vector.broadcast %45 : vector<8x1xi32> to vector<8x32xi32>
    %47 = arith.cmpi eq, %46, %2 : vector<8x32xi32>
    %48 = arith.extui %47 : vector<8x32xi1> to vector<8x32xi32>
    %49 = arith.sitofp %48 : vector<8x32xi32> to vector<8x32xf32>
    %50 = arith.truncf %49 : vector<8x32xf32> to vector<8x32xbf16>
    %cst_8 = arith.constant dense<0.000000e+00> : vector<8x32xf32>
    %51 = tpu.matmul %50, %1, %cst_8 {dimension_numbers = #tpu.dot_dimension_numbers<[1], [0], [0], [1], [0, 0, 1, 1], [], []>} : vector<8x32xbf16>, vector<32x32xbf16>, vector<8x32xf32> -> vector<8x32xf32>
    %52 = vector.extract_strided_slice %0 {offsets = [0, 7], sizes = [8, 1], strides = [1, 1]} : vector<8x8xi32> to vector<8x1xi32>
    %53 = vector.broadcast %52 : vector<8x1xi32> to vector<8x32xi32>
    %54 = arith.cmpi eq, %53, %2 : vector<8x32xi32>
    %55 = arith.extui %54 : vector<8x32xi1> to vector<8x32xi32>
    %56 = arith.sitofp %55 : vector<8x32xi32> to vector<8x32xf32>
    %57 = arith.truncf %56 : vector<8x32xf32> to vector<8x32xbf16>
    %cst_9 = arith.constant dense<0.000000e+00> : vector<8x32xf32>
    %58 = tpu.matmul %57, %1, %cst_9 {dimension_numbers = #tpu.dot_dimension_numbers<[1], [0], [0], [1], [0, 0, 1, 1], [], []>} : vector<8x32xbf16>, vector<32x32xbf16>, vector<8x32xf32> -> vector<8x32xf32>
    %c0_10 = arith.constant 0 : index
    %c0_11 = arith.constant 0 : index
    %59 = vector.load %arg3[%c0_10, %c0_11] : memref<32x128xbf16, #tpu.memory_space<vmem>>, vector<32x128xbf16>
    %c0_12 = arith.constant 0 : index
    %c0_13 = arith.constant 0 : index
    %60 = vector.load %arg4[%c0_12, %c0_13] : memref<32x128xbf16, #tpu.memory_space<vmem>>, vector<32x128xbf16>
    %c0_14 = arith.constant 0 : index
    %c0_15 = arith.constant 0 : index
    %61 = vector.load %arg5[%c0_14, %c0_15] : memref<1x128xf32, #tpu.memory_space<vmem>>, vector<1x128xf32>
    %c0_16 = arith.constant 0 : index
    %c0_17 = arith.constant 0 : index
    %62 = vector.load %arg6[%c0_16, %c0_17] : memref<32x128xbf16, #tpu.memory_space<vmem>>, vector<32x128xbf16>
    %c0_18 = arith.constant 0 : index
    %c0_19 = arith.constant 0 : index
    %63 = vector.load %arg7[%c0_18, %c0_19] : memref<32x128xbf16, #tpu.memory_space<vmem>>, vector<32x128xbf16>
    %c0_20 = arith.constant 0 : index
    %c0_21 = arith.constant 0 : index
    %64 = vector.load %arg8[%c0_20, %c0_21] : memref<1x128xf32, #tpu.memory_space<vmem>>, vector<1x128xf32>
    %c0_22 = arith.constant 0 : index
    %c0_23 = arith.constant 0 : index
    %65 = vector.load %arg9[%c0_22, %c0_23] : memref<64x128xbf16, #tpu.memory_space<vmem>>, vector<64x128xbf16>
    %c0_24 = arith.constant 0 : index
    %c0_25 = arith.constant 0 : index
    %66 = vector.load %arg10[%c0_24, %c0_25] : memref<1x128xf32, #tpu.memory_space<vmem>>, vector<1x128xf32>
    %c0_26 = arith.constant 0 : index
    %c0_27 = arith.constant 0 : index
    %c0_28 = arith.constant 0 : index
    %67 = vector.load %arg11[%c0_26, %c0_27, %c0_28] : memref<2x8x32xf32, #tpu.memory_space<vmem>>, vector<1x8x32xf32>
    %68 = vector.shape_cast %67 : vector<1x8x32xf32> to vector<8x32xf32>
    %c0_29 = arith.constant 0 : index
    %c0_30 = arith.constant 0 : index
    %c0_31 = arith.constant 0 : index
    %69 = vector.load %arg12[%c0_29, %c0_30, %c0_31] : memref<2x8x32xf32, #tpu.memory_space<vmem>>, vector<1x8x32xf32>
    %70 = vector.shape_cast %69 : vector<1x8x32xf32> to vector<8x32xf32>
    %71 = arith.truncf %9 : vector<8x32xf32> to vector<8x32xbf16>
    %cst_32 = arith.constant dense<0.000000e+00> : vector<8x128xf32>
    %72 = tpu.matmul %71, %59, %cst_32 {dimension_numbers = #tpu.dot_dimension_numbers<[1], [0], [0], [1], [0, 0, 1, 1], [], []>} : vector<8x32xbf16>, vector<32x128xbf16>, vector<8x128xf32> -> vector<8x128xf32>
    %73 = arith.truncf %68 : vector<8x32xf32> to vector<8x32xbf16>
    %cst_33 = arith.constant dense<0.000000e+00> : vector<8x128xf32>
    %74 = tpu.matmul %73, %60, %cst_33 {dimension_numbers = #tpu.dot_dimension_numbers<[1], [0], [0], [1], [0, 0, 1, 1], [], []>} : vector<8x32xbf16>, vector<32x128xbf16>, vector<8x128xf32> -> vector<8x128xf32>
    %75 = arith.addf %72, %74 : vector<8x128xf32>
    %76 = vector.broadcast %61 : vector<1x128xf32> to vector<8x128xf32>
    %77 = arith.addf %75, %76 : vector<8x128xf32>
    %78 = vector.extract_strided_slice %77 {offsets = [0, 0], sizes = [8, 32], strides = [1, 1]} : vector<8x128xf32> to vector<8x32xf32>
    %cst_34 = arith.constant 0.000000e+00 : f32
    %79 = vector.broadcast %cst_34 : f32 to vector<8x32xf32>
    %80 = arith.subf %79, %78 : vector<8x32xf32>
    %81 = math.exp %80 : vector<8x32xf32>
    %cst_35 = arith.constant 1.000000e+00 : f32
    %82 = vector.broadcast %cst_35 : f32 to vector<8x32xf32>
    %83 = arith.addf %82, %81 : vector<8x32xf32>
    %84 = tpu.reciprocal %83 {approx = true} : vector<8x32xf32> -> vector<8x32xf32>
    %85 = vector.extract_strided_slice %77 {offsets = [0, 32], sizes = [8, 32], strides = [1, 1]} : vector<8x128xf32> to vector<8x32xf32>
    %cst_36 = arith.constant 0.000000e+00 : f32
    %86 = vector.broadcast %cst_36 : f32 to vector<8x32xf32>
    %87 = arith.subf %86, %85 : vector<8x32xf32>
    %88 = math.exp %87 : vector<8x32xf32>
    %cst_37 = arith.constant 1.000000e+00 : f32
    %89 = vector.broadcast %cst_37 : f32 to vector<8x32xf32>
    %90 = arith.addf %89, %88 : vector<8x32xf32>
    %91 = tpu.reciprocal %90 {approx = true} : vector<8x32xf32> -> vector<8x32xf32>
    %92 = vector.extract_strided_slice %77 {offsets = [0, 64], sizes = [8, 32], strides = [1, 1]} : vector<8x128xf32> to vector<8x32xf32>
    %93 = math.tanh %92 : vector<8x32xf32>
    %94 = vector.extract_strided_slice %77 {offsets = [0, 96], sizes = [8, 32], strides = [1, 1]} : vector<8x128xf32> to vector<8x32xf32>
    %cst_38 = arith.constant 0.000000e+00 : f32
    %95 = vector.broadcast %cst_38 : f32 to vector<8x32xf32>
    %96 = arith.subf %95, %94 : vector<8x32xf32>
    %97 = math.exp %96 : vector<8x32xf32>
    %cst_39 = arith.constant 1.000000e+00 : f32
    %98 = vector.broadcast %cst_39 : f32 to vector<8x32xf32>
    %99 = arith.addf %98, %97 : vector<8x32xf32>
    %100 = tpu.reciprocal %99 {approx = true} : vector<8x32xf32> -> vector<8x32xf32>
    %101 = arith.mulf %91, %70 : vector<8x32xf32>
    %102 = arith.mulf %84, %93 : vector<8x32xf32>
    %103 = arith.addf %101, %102 : vector<8x32xf32>
    %104 = math.tanh %103 : vector<8x32xf32>
    %105 = arith.mulf %100, %104 : vector<8x32xf32>
    %106 = arith.truncf %16 : vector<8x32xf32> to vector<8x32xbf16>
    %cst_40 = arith.constant dense<0.000000e+00> : vector<8x128xf32>
    %107 = tpu.matmul %106, %59, %cst_40 {dimension_numbers = #tpu.dot_dimension_numbers<[1], [0], [0], [1], [0, 0, 1, 1], [], []>} : vector<8x32xbf16>, vector<32x128xbf16>, vector<8x128xf32> -> vector<8x128xf32>
    %108 = arith.truncf %105 : vector<8x32xf32> to vector<8x32xbf16>
    %cst_41 = arith.constant dense<0.000000e+00> : vector<8x128xf32>
    %109 = tpu.matmul %108, %60, %cst_41 {dimension_numbers = #tpu.dot_dimension_numbers<[1], [0], [0], [1], [0, 0, 1, 1], [], []>} : vector<8x32xbf16>, vector<32x128xbf16>, vector<8x128xf32> -> vector<8x128xf32>
    %110 = arith.addf %107, %109 : vector<8x128xf32>
    %111 = vector.broadcast %61 : vector<1x128xf32> to vector<8x128xf32>
    %112 = arith.addf %110, %111 : vector<8x128xf32>
    %113 = vector.extract_strided_slice %112 {offsets = [0, 0], sizes = [8, 32], strides = [1, 1]} : vector<8x128xf32> to vector<8x32xf32>
    %cst_42 = arith.constant 0.000000e+00 : f32
    %114 = vector.broadcast %cst_42 : f32 to vector<8x32xf32>
    %115 = arith.subf %114, %113 : vector<8x32xf32>
    %116 = math.exp %115 : vector<8x32xf32>
    %cst_43 = arith.constant 1.000000e+00 : f32
    %117 = vector.broadcast %cst_43 : f32 to vector<8x32xf32>
    %118 = arith.addf %117, %116 : vector<8x32xf32>
    %119 = tpu.reciprocal %118 {approx = true} : vector<8x32xf32> -> vector<8x32xf32>
    %120 = vector.extract_strided_slice %112 {offsets = [0, 32], sizes = [8, 32], strides = [1, 1]} : vector<8x128xf32> to vector<8x32xf32>
    %cst_44 = arith.constant 0.000000e+00 : f32
    %121 = vector.broadcast %cst_44 : f32 to vector<8x32xf32>
    %122 = arith.subf %121, %120 : vector<8x32xf32>
    %123 = math.exp %122 : vector<8x32xf32>
    %cst_45 = arith.constant 1.000000e+00 : f32
    %124 = vector.broadcast %cst_45 : f32 to vector<8x32xf32>
    %125 = arith.addf %124, %123 : vector<8x32xf32>
    %126 = tpu.reciprocal %125 {approx = true} : vector<8x32xf32> -> vector<8x32xf32>
    %127 = vector.extract_strided_slice %112 {offsets = [0, 64], sizes = [8, 32], strides = [1, 1]} : vector<8x128xf32> to vector<8x32xf32>
    %128 = math.tanh %127 : vector<8x32xf32>
    %129 = vector.extract_strided_slice %112 {offsets = [0, 96], sizes = [8, 32], strides = [1, 1]} : vector<8x128xf32> to vector<8x32xf32>
    %cst_46 = arith.constant 0.000000e+00 : f32
    %130 = vector.broadcast %cst_46 : f32 to vector<8x32xf32>
    %131 = arith.subf %130, %129 : vector<8x32xf32>
    %132 = math.exp %131 : vector<8x32xf32>
    %cst_47 = arith.constant 1.000000e+00 : f32
    %133 = vector.broadcast %cst_47 : f32 to vector<8x32xf32>
    %134 = arith.addf %133, %132 : vector<8x32xf32>
    %135 = tpu.reciprocal %134 {approx = true} : vector<8x32xf32> -> vector<8x32xf32>
    %136 = arith.mulf %126, %103 : vector<8x32xf32>
    %137 = arith.mulf %119, %128 : vector<8x32xf32>
    %138 = arith.addf %136, %137 : vector<8x32xf32>
    %139 = math.tanh %138 : vector<8x32xf32>
    %140 = arith.mulf %135, %139 : vector<8x32xf32>
    %141 = arith.truncf %23 : vector<8x32xf32> to vector<8x32xbf16>
    %cst_48 = arith.constant dense<0.000000e+00> : vector<8x128xf32>
    %142 = tpu.matmul %141, %59, %cst_48 {dimension_numbers = #tpu.dot_dimension_numbers<[1], [0], [0], [1], [0, 0, 1, 1], [], []>} : vector<8x32xbf16>, vector<32x128xbf16>, vector<8x128xf32> -> vector<8x128xf32>
    %143 = arith.truncf %140 : vector<8x32xf32> to vector<8x32xbf16>
    %cst_49 = arith.constant dense<0.000000e+00> : vector<8x128xf32>
    %144 = tpu.matmul %143, %60, %cst_49 {dimension_numbers = #tpu.dot_dimension_numbers<[1], [0], [0], [1], [0, 0, 1, 1], [], []>} : vector<8x32xbf16>, vector<32x128xbf16>, vector<8x128xf32> -> vector<8x128xf32>
    %145 = arith.addf %142, %144 : vector<8x128xf32>
    %146 = vector.broadcast %61 : vector<1x128xf32> to vector<8x128xf32>
    %147 = arith.addf %145, %146 : vector<8x128xf32>
    %148 = vector.extract_strided_slice %147 {offsets = [0, 0], sizes = [8, 32], strides = [1, 1]} : vector<8x128xf32> to vector<8x32xf32>
    %cst_50 = arith.constant 0.000000e+00 : f32
    %149 = vector.broadcast %cst_50 : f32 to vector<8x32xf32>
    %150 = arith.subf %149, %148 : vector<8x32xf32>
    %151 = math.exp %150 : vector<8x32xf32>
    %cst_51 = arith.constant 1.000000e+00 : f32
    %152 = vector.broadcast %cst_51 : f32 to vector<8x32xf32>
    %153 = arith.addf %152, %151 : vector<8x32xf32>
    %154 = tpu.reciprocal %153 {approx = true} : vector<8x32xf32> -> vector<8x32xf32>
    %155 = vector.extract_strided_slice %147 {offsets = [0, 32], sizes = [8, 32], strides = [1, 1]} : vector<8x128xf32> to vector<8x32xf32>
    %cst_52 = arith.constant 0.000000e+00 : f32
    %156 = vector.broadcast %cst_52 : f32 to vector<8x32xf32>
    %157 = arith.subf %156, %155 : vector<8x32xf32>
    %158 = math.exp %157 : vector<8x32xf32>
    %cst_53 = arith.constant 1.000000e+00 : f32
    %159 = vector.broadcast %cst_53 : f32 to vector<8x32xf32>
    %160 = arith.addf %159, %158 : vector<8x32xf32>
    %161 = tpu.reciprocal %160 {approx = true} : vector<8x32xf32> -> vector<8x32xf32>
    %162 = vector.extract_strided_slice %147 {offsets = [0, 64], sizes = [8, 32], strides = [1, 1]} : vector<8x128xf32> to vector<8x32xf32>
    %163 = math.tanh %162 : vector<8x32xf32>
    %164 = vector.extract_strided_slice %147 {offsets = [0, 96], sizes = [8, 32], strides = [1, 1]} : vector<8x128xf32> to vector<8x32xf32>
    %cst_54 = arith.constant 0.000000e+00 : f32
    %165 = vector.broadcast %cst_54 : f32 to vector<8x32xf32>
    %166 = arith.subf %165, %164 : vector<8x32xf32>
    %167 = math.exp %166 : vector<8x32xf32>
    %cst_55 = arith.constant 1.000000e+00 : f32
    %168 = vector.broadcast %cst_55 : f32 to vector<8x32xf32>
    %169 = arith.addf %168, %167 : vector<8x32xf32>
    %170 = tpu.reciprocal %169 {approx = true} : vector<8x32xf32> -> vector<8x32xf32>
    %171 = arith.mulf %161, %138 : vector<8x32xf32>
    %172 = arith.mulf %154, %163 : vector<8x32xf32>
    %173 = arith.addf %171, %172 : vector<8x32xf32>
    %174 = math.tanh %173 : vector<8x32xf32>
    %175 = arith.mulf %170, %174 : vector<8x32xf32>
    %176 = arith.truncf %30 : vector<8x32xf32> to vector<8x32xbf16>
    %cst_56 = arith.constant dense<0.000000e+00> : vector<8x128xf32>
    %177 = tpu.matmul %176, %59, %cst_56 {dimension_numbers = #tpu.dot_dimension_numbers<[1], [0], [0], [1], [0, 0, 1, 1], [], []>} : vector<8x32xbf16>, vector<32x128xbf16>, vector<8x128xf32> -> vector<8x128xf32>
    %178 = arith.truncf %175 : vector<8x32xf32> to vector<8x32xbf16>
    %cst_57 = arith.constant dense<0.000000e+00> : vector<8x128xf32>
    %179 = tpu.matmul %178, %60, %cst_57 {dimension_numbers = #tpu.dot_dimension_numbers<[1], [0], [0], [1], [0, 0, 1, 1], [], []>} : vector<8x32xbf16>, vector<32x128xbf16>, vector<8x128xf32> -> vector<8x128xf32>
    %180 = arith.addf %177, %179 : vector<8x128xf32>
    %181 = vector.broadcast %61 : vector<1x128xf32> to vector<8x128xf32>
    %182 = arith.addf %180, %181 : vector<8x128xf32>
    %183 = vector.extract_strided_slice %182 {offsets = [0, 0], sizes = [8, 32], strides = [1, 1]} : vector<8x128xf32> to vector<8x32xf32>
    %cst_58 = arith.constant 0.000000e+00 : f32
    %184 = vector.broadcast %cst_58 : f32 to vector<8x32xf32>
    %185 = arith.subf %184, %183 : vector<8x32xf32>
    %186 = math.exp %185 : vector<8x32xf32>
    %cst_59 = arith.constant 1.000000e+00 : f32
    %187 = vector.broadcast %cst_59 : f32 to vector<8x32xf32>
    %188 = arith.addf %187, %186 : vector<8x32xf32>
    %189 = tpu.reciprocal %188 {approx = true} : vector<8x32xf32> -> vector<8x32xf32>
    %190 = vector.extract_strided_slice %182 {offsets = [0, 32], sizes = [8, 32], strides = [1, 1]} : vector<8x128xf32> to vector<8x32xf32>
    %cst_60 = arith.constant 0.000000e+00 : f32
    %191 = vector.broadcast %cst_60 : f32 to vector<8x32xf32>
    %192 = arith.subf %191, %190 : vector<8x32xf32>
    %193 = math.exp %192 : vector<8x32xf32>
    %cst_61 = arith.constant 1.000000e+00 : f32
    %194 = vector.broadcast %cst_61 : f32 to vector<8x32xf32>
    %195 = arith.addf %194, %193 : vector<8x32xf32>
    %196 = tpu.reciprocal %195 {approx = true} : vector<8x32xf32> -> vector<8x32xf32>
    %197 = vector.extract_strided_slice %182 {offsets = [0, 64], sizes = [8, 32], strides = [1, 1]} : vector<8x128xf32> to vector<8x32xf32>
    %198 = math.tanh %197 : vector<8x32xf32>
    %199 = vector.extract_strided_slice %182 {offsets = [0, 96], sizes = [8, 32], strides = [1, 1]} : vector<8x128xf32> to vector<8x32xf32>
    %cst_62 = arith.constant 0.000000e+00 : f32
    %200 = vector.broadcast %cst_62 : f32 to vector<8x32xf32>
    %201 = arith.subf %200, %199 : vector<8x32xf32>
    %202 = math.exp %201 : vector<8x32xf32>
    %cst_63 = arith.constant 1.000000e+00 : f32
    %203 = vector.broadcast %cst_63 : f32 to vector<8x32xf32>
    %204 = arith.addf %203, %202 : vector<8x32xf32>
    %205 = tpu.reciprocal %204 {approx = true} : vector<8x32xf32> -> vector<8x32xf32>
    %206 = arith.mulf %196, %173 : vector<8x32xf32>
    %207 = arith.mulf %189, %198 : vector<8x32xf32>
    %208 = arith.addf %206, %207 : vector<8x32xf32>
    %209 = math.tanh %208 : vector<8x32xf32>
    %210 = arith.mulf %205, %209 : vector<8x32xf32>
    %211 = arith.truncf %37 : vector<8x32xf32> to vector<8x32xbf16>
    %cst_64 = arith.constant dense<0.000000e+00> : vector<8x128xf32>
    %212 = tpu.matmul %211, %59, %cst_64 {dimension_numbers = #tpu.dot_dimension_numbers<[1], [0], [0], [1], [0, 0, 1, 1], [], []>} : vector<8x32xbf16>, vector<32x128xbf16>, vector<8x128xf32> -> vector<8x128xf32>
    %213 = arith.truncf %210 : vector<8x32xf32> to vector<8x32xbf16>
    %cst_65 = arith.constant dense<0.000000e+00> : vector<8x128xf32>
    %214 = tpu.matmul %213, %60, %cst_65 {dimension_numbers = #tpu.dot_dimension_numbers<[1], [0], [0], [1], [0, 0, 1, 1], [], []>} : vector<8x32xbf16>, vector<32x128xbf16>, vector<8x128xf32> -> vector<8x128xf32>
    %215 = arith.addf %212, %214 : vector<8x128xf32>
    %216 = vector.broadcast %61 : vector<1x128xf32> to vector<8x128xf32>
    %217 = arith.addf %215, %216 : vector<8x128xf32>
    %218 = vector.extract_strided_slice %217 {offsets = [0, 0], sizes = [8, 32], strides = [1, 1]} : vector<8x128xf32> to vector<8x32xf32>
    %cst_66 = arith.constant 0.000000e+00 : f32
    %219 = vector.broadcast %cst_66 : f32 to vector<8x32xf32>
    %220 = arith.subf %219, %218 : vector<8x32xf32>
    %221 = math.exp %220 : vector<8x32xf32>
    %cst_67 = arith.constant 1.000000e+00 : f32
    %222 = vector.broadcast %cst_67 : f32 to vector<8x32xf32>
    %223 = arith.addf %222, %221 : vector<8x32xf32>
    %224 = tpu.reciprocal %223 {approx = true} : vector<8x32xf32> -> vector<8x32xf32>
    %225 = vector.extract_strided_slice %217 {offsets = [0, 32], sizes = [8, 32], strides = [1, 1]} : vector<8x128xf32> to vector<8x32xf32>
    %cst_68 = arith.constant 0.000000e+00 : f32
    %226 = vector.broadcast %cst_68 : f32 to vector<8x32xf32>
    %227 = arith.subf %226, %225 : vector<8x32xf32>
    %228 = math.exp %227 : vector<8x32xf32>
    %cst_69 = arith.constant 1.000000e+00 : f32
    %229 = vector.broadcast %cst_69 : f32 to vector<8x32xf32>
    %230 = arith.addf %229, %228 : vector<8x32xf32>
    %231 = tpu.reciprocal %230 {approx = true} : vector<8x32xf32> -> vector<8x32xf32>
    %232 = vector.extract_strided_slice %217 {offsets = [0, 64], sizes = [8, 32], strides = [1, 1]} : vector<8x128xf32> to vector<8x32xf32>
    %233 = math.tanh %232 : vector<8x32xf32>
    %234 = vector.extract_strided_slice %217 {offsets = [0, 96], sizes = [8, 32], strides = [1, 1]} : vector<8x128xf32> to vector<8x32xf32>
    %cst_70 = arith.constant 0.000000e+00 : f32
    %235 = vector.broadcast %cst_70 : f32 to vector<8x32xf32>
    %236 = arith.subf %235, %234 : vector<8x32xf32>
    %237 = math.exp %236 : vector<8x32xf32>
    %cst_71 = arith.constant 1.000000e+00 : f32
    %238 = vector.broadcast %cst_71 : f32 to vector<8x32xf32>
    %239 = arith.addf %238, %237 : vector<8x32xf32>
    %240 = tpu.reciprocal %239 {approx = true} : vector<8x32xf32> -> vector<8x32xf32>
    %241 = arith.mulf %231, %208 : vector<8x32xf32>
    %242 = arith.mulf %224, %233 : vector<8x32xf32>
    %243 = arith.addf %241, %242 : vector<8x32xf32>
    %244 = math.tanh %243 : vector<8x32xf32>
    %245 = arith.mulf %240, %244 : vector<8x32xf32>
    %246 = arith.truncf %44 : vector<8x32xf32> to vector<8x32xbf16>
    %cst_72 = arith.constant dense<0.000000e+00> : vector<8x128xf32>
    %247 = tpu.matmul %246, %59, %cst_72 {dimension_numbers = #tpu.dot_dimension_numbers<[1], [0], [0], [1], [0, 0, 1, 1], [], []>} : vector<8x32xbf16>, vector<32x128xbf16>, vector<8x128xf32> -> vector<8x128xf32>
    %248 = arith.truncf %245 : vector<8x32xf32> to vector<8x32xbf16>
    %cst_73 = arith.constant dense<0.000000e+00> : vector<8x128xf32>
    %249 = tpu.matmul %248, %60, %cst_73 {dimension_numbers = #tpu.dot_dimension_numbers<[1], [0], [0], [1], [0, 0, 1, 1], [], []>} : vector<8x32xbf16>, vector<32x128xbf16>, vector<8x128xf32> -> vector<8x128xf32>
    %250 = arith.addf %247, %249 : vector<8x128xf32>
    %251 = vector.broadcast %61 : vector<1x128xf32> to vector<8x128xf32>
    %252 = arith.addf %250, %251 : vector<8x128xf32>
    %253 = vector.extract_strided_slice %252 {offsets = [0, 0], sizes = [8, 32], strides = [1, 1]} : vector<8x128xf32> to vector<8x32xf32>
    %cst_74 = arith.constant 0.000000e+00 : f32
    %254 = vector.broadcast %cst_74 : f32 to vector<8x32xf32>
    %255 = arith.subf %254, %253 : vector<8x32xf32>
    %256 = math.exp %255 : vector<8x32xf32>
    %cst_75 = arith.constant 1.000000e+00 : f32
    %257 = vector.broadcast %cst_75 : f32 to vector<8x32xf32>
    %258 = arith.addf %257, %256 : vector<8x32xf32>
    %259 = tpu.reciprocal %258 {approx = true} : vector<8x32xf32> -> vector<8x32xf32>
    %260 = vector.extract_strided_slice %252 {offsets = [0, 32], sizes = [8, 32], strides = [1, 1]} : vector<8x128xf32> to vector<8x32xf32>
    %cst_76 = arith.constant 0.000000e+00 : f32
    %261 = vector.broadcast %cst_76 : f32 to vector<8x32xf32>
    %262 = arith.subf %261, %260 : vector<8x32xf32>
    %263 = math.exp %262 : vector<8x32xf32>
    %cst_77 = arith.constant 1.000000e+00 : f32
    %264 = vector.broadcast %cst_77 : f32 to vector<8x32xf32>
    %265 = arith.addf %264, %263 : vector<8x32xf32>
    %266 = tpu.reciprocal %265 {approx = true} : vector<8x32xf32> -> vector<8x32xf32>
    %267 = vector.extract_strided_slice %252 {offsets = [0, 64], sizes = [8, 32], strides = [1, 1]} : vector<8x128xf32> to vector<8x32xf32>
    %268 = math.tanh %267 : vector<8x32xf32>
    %269 = vector.extract_strided_slice %252 {offsets = [0, 96], sizes = [8, 32], strides = [1, 1]} : vector<8x128xf32> to vector<8x32xf32>
    %cst_78 = arith.constant 0.000000e+00 : f32
    %270 = vector.broadcast %cst_78 : f32 to vector<8x32xf32>
    %271 = arith.subf %270, %269 : vector<8x32xf32>
    %272 = math.exp %271 : vector<8x32xf32>
    %cst_79 = arith.constant 1.000000e+00 : f32
    %273 = vector.broadcast %cst_79 : f32 to vector<8x32xf32>
    %274 = arith.addf %273, %272 : vector<8x32xf32>
    %275 = tpu.reciprocal %274 {approx = true} : vector<8x32xf32> -> vector<8x32xf32>
    %276 = arith.mulf %266, %243 : vector<8x32xf32>
    %277 = arith.mulf %259, %268 : vector<8x32xf32>
    %278 = arith.addf %276, %277 : vector<8x32xf32>
    %279 = math.tanh %278 : vector<8x32xf32>
    %280 = arith.mulf %275, %279 : vector<8x32xf32>
    %281 = arith.truncf %51 : vector<8x32xf32> to vector<8x32xbf16>
    %cst_80 = arith.constant dense<0.000000e+00> : vector<8x128xf32>
    %282 = tpu.matmul %281, %59, %cst_80 {dimension_numbers = #tpu.dot_dimension_numbers<[1], [0], [0], [1], [0, 0, 1, 1], [], []>} : vector<8x32xbf16>, vector<32x128xbf16>, vector<8x128xf32> -> vector<8x128xf32>
    %283 = arith.truncf %280 : vector<8x32xf32> to vector<8x32xbf16>
    %cst_81 = arith.constant dense<0.000000e+00> : vector<8x128xf32>
    %284 = tpu.matmul %283, %60, %cst_81 {dimension_numbers = #tpu.dot_dimension_numbers<[1], [0], [0], [1], [0, 0, 1, 1], [], []>} : vector<8x32xbf16>, vector<32x128xbf16>, vector<8x128xf32> -> vector<8x128xf32>
    %285 = arith.addf %282, %284 : vector<8x128xf32>
    %286 = vector.broadcast %61 : vector<1x128xf32> to vector<8x128xf32>
    %287 = arith.addf %285, %286 : vector<8x128xf32>
    %288 = vector.extract_strided_slice %287 {offsets = [0, 0], sizes = [8, 32], strides = [1, 1]} : vector<8x128xf32> to vector<8x32xf32>
    %cst_82 = arith.constant 0.000000e+00 : f32
    %289 = vector.broadcast %cst_82 : f32 to vector<8x32xf32>
    %290 = arith.subf %289, %288 : vector<8x32xf32>
    %291 = math.exp %290 : vector<8x32xf32>
    %cst_83 = arith.constant 1.000000e+00 : f32
    %292 = vector.broadcast %cst_83 : f32 to vector<8x32xf32>
    %293 = arith.addf %292, %291 : vector<8x32xf32>
    %294 = tpu.reciprocal %293 {approx = true} : vector<8x32xf32> -> vector<8x32xf32>
    %295 = vector.extract_strided_slice %287 {offsets = [0, 32], sizes = [8, 32], strides = [1, 1]} : vector<8x128xf32> to vector<8x32xf32>
    %cst_84 = arith.constant 0.000000e+00 : f32
    %296 = vector.broadcast %cst_84 : f32 to vector<8x32xf32>
    %297 = arith.subf %296, %295 : vector<8x32xf32>
    %298 = math.exp %297 : vector<8x32xf32>
    %cst_85 = arith.constant 1.000000e+00 : f32
    %299 = vector.broadcast %cst_85 : f32 to vector<8x32xf32>
    %300 = arith.addf %299, %298 : vector<8x32xf32>
    %301 = tpu.reciprocal %300 {approx = true} : vector<8x32xf32> -> vector<8x32xf32>
    %302 = vector.extract_strided_slice %287 {offsets = [0, 64], sizes = [8, 32], strides = [1, 1]} : vector<8x128xf32> to vector<8x32xf32>
    %303 = math.tanh %302 : vector<8x32xf32>
    %304 = vector.extract_strided_slice %287 {offsets = [0, 96], sizes = [8, 32], strides = [1, 1]} : vector<8x128xf32> to vector<8x32xf32>
    %cst_86 = arith.constant 0.000000e+00 : f32
    %305 = vector.broadcast %cst_86 : f32 to vector<8x32xf32>
    %306 = arith.subf %305, %304 : vector<8x32xf32>
    %307 = math.exp %306 : vector<8x32xf32>
    %cst_87 = arith.constant 1.000000e+00 : f32
    %308 = vector.broadcast %cst_87 : f32 to vector<8x32xf32>
    %309 = arith.addf %308, %307 : vector<8x32xf32>
    %310 = tpu.reciprocal %309 {approx = true} : vector<8x32xf32> -> vector<8x32xf32>
    %311 = arith.mulf %301, %278 : vector<8x32xf32>
    %312 = arith.mulf %294, %303 : vector<8x32xf32>
    %313 = arith.addf %311, %312 : vector<8x32xf32>
    %314 = math.tanh %313 : vector<8x32xf32>
    %315 = arith.mulf %310, %314 : vector<8x32xf32>
    %316 = arith.truncf %58 : vector<8x32xf32> to vector<8x32xbf16>
    %cst_88 = arith.constant dense<0.000000e+00> : vector<8x128xf32>
    %317 = tpu.matmul %316, %59, %cst_88 {dimension_numbers = #tpu.dot_dimension_numbers<[1], [0], [0], [1], [0, 0, 1, 1], [], []>} : vector<8x32xbf16>, vector<32x128xbf16>, vector<8x128xf32> -> vector<8x128xf32>
    %318 = arith.truncf %315 : vector<8x32xf32> to vector<8x32xbf16>
    %cst_89 = arith.constant dense<0.000000e+00> : vector<8x128xf32>
    %319 = tpu.matmul %318, %60, %cst_89 {dimension_numbers = #tpu.dot_dimension_numbers<[1], [0], [0], [1], [0, 0, 1, 1], [], []>} : vector<8x32xbf16>, vector<32x128xbf16>, vector<8x128xf32> -> vector<8x128xf32>
    %320 = arith.addf %317, %319 : vector<8x128xf32>
    %321 = vector.broadcast %61 : vector<1x128xf32> to vector<8x128xf32>
    %322 = arith.addf %320, %321 : vector<8x128xf32>
    %323 = vector.extract_strided_slice %322 {offsets = [0, 0], sizes = [8, 32], strides = [1, 1]} : vector<8x128xf32> to vector<8x32xf32>
    %cst_90 = arith.constant 0.000000e+00 : f32
    %324 = vector.broadcast %cst_90 : f32 to vector<8x32xf32>
    %325 = arith.subf %324, %323 : vector<8x32xf32>
    %326 = math.exp %325 : vector<8x32xf32>
    %cst_91 = arith.constant 1.000000e+00 : f32
    %327 = vector.broadcast %cst_91 : f32 to vector<8x32xf32>
    %328 = arith.addf %327, %326 : vector<8x32xf32>
    %329 = tpu.reciprocal %328 {approx = true} : vector<8x32xf32> -> vector<8x32xf32>
    %330 = vector.extract_strided_slice %322 {offsets = [0, 32], sizes = [8, 32], strides = [1, 1]} : vector<8x128xf32> to vector<8x32xf32>
    %cst_92 = arith.constant 0.000000e+00 : f32
    %331 = vector.broadcast %cst_92 : f32 to vector<8x32xf32>
    %332 = arith.subf %331, %330 : vector<8x32xf32>
    %333 = math.exp %332 : vector<8x32xf32>
    %cst_93 = arith.constant 1.000000e+00 : f32
    %334 = vector.broadcast %cst_93 : f32 to vector<8x32xf32>
    %335 = arith.addf %334, %333 : vector<8x32xf32>
    %336 = tpu.reciprocal %335 {approx = true} : vector<8x32xf32> -> vector<8x32xf32>
    %337 = vector.extract_strided_slice %322 {offsets = [0, 64], sizes = [8, 32], strides = [1, 1]} : vector<8x128xf32> to vector<8x32xf32>
    %338 = math.tanh %337 : vector<8x32xf32>
    %339 = vector.extract_strided_slice %322 {offsets = [0, 96], sizes = [8, 32], strides = [1, 1]} : vector<8x128xf32> to vector<8x32xf32>
    %cst_94 = arith.constant 0.000000e+00 : f32
    %340 = vector.broadcast %cst_94 : f32 to vector<8x32xf32>
    %341 = arith.subf %340, %339 : vector<8x32xf32>
    %342 = math.exp %341 : vector<8x32xf32>
    %cst_95 = arith.constant 1.000000e+00 : f32
    %343 = vector.broadcast %cst_95 : f32 to vector<8x32xf32>
    %344 = arith.addf %343, %342 : vector<8x32xf32>
    %345 = tpu.reciprocal %344 {approx = true} : vector<8x32xf32> -> vector<8x32xf32>
    %346 = arith.mulf %336, %313 : vector<8x32xf32>
    %347 = arith.mulf %329, %338 : vector<8x32xf32>
    %348 = arith.addf %346, %347 : vector<8x32xf32>
    %349 = math.tanh %348 : vector<8x32xf32>
    %350 = arith.mulf %345, %349 : vector<8x32xf32>
    %c1 = arith.constant 1 : index
    %c0_96 = arith.constant 0 : index
    %c0_97 = arith.constant 0 : index
    %351 = vector.load %arg11[%c1, %c0_96, %c0_97] : memref<2x8x32xf32, #tpu.memory_space<vmem>>, vector<1x8x32xf32>
    %352 = vector.shape_cast %351 : vector<1x8x32xf32> to vector<8x32xf32>
    %c1_98 = arith.constant 1 : index
    %c0_99 = arith.constant 0 : index
    %c0_100 = arith.constant 0 : index
    %353 = vector.load %arg12[%c1_98, %c0_99, %c0_100] : memref<2x8x32xf32, #tpu.memory_space<vmem>>, vector<1x8x32xf32>
    %354 = vector.shape_cast %353 : vector<1x8x32xf32> to vector<8x32xf32>
    %355 = arith.truncf %58 : vector<8x32xf32> to vector<8x32xbf16>
    %cst_101 = arith.constant dense<0.000000e+00> : vector<8x128xf32>
    %356 = tpu.matmul %355, %62, %cst_101 {dimension_numbers = #tpu.dot_dimension_numbers<[1], [0], [0], [1], [0, 0, 1, 1], [], []>} : vector<8x32xbf16>, vector<32x128xbf16>, vector<8x128xf32> -> vector<8x128xf32>
    %357 = arith.truncf %352 : vector<8x32xf32> to vector<8x32xbf16>
    %cst_102 = arith.constant dense<0.000000e+00> : vector<8x128xf32>
    %358 = tpu.matmul %357, %63, %cst_102 {dimension_numbers = #tpu.dot_dimension_numbers<[1], [0], [0], [1], [0, 0, 1, 1], [], []>} : vector<8x32xbf16>, vector<32x128xbf16>, vector<8x128xf32> -> vector<8x128xf32>
    %359 = arith.addf %356, %358 : vector<8x128xf32>
    %360 = vector.broadcast %64 : vector<1x128xf32> to vector<8x128xf32>
    %361 = arith.addf %359, %360 : vector<8x128xf32>
    %362 = vector.extract_strided_slice %361 {offsets = [0, 0], sizes = [8, 32], strides = [1, 1]} : vector<8x128xf32> to vector<8x32xf32>
    %cst_103 = arith.constant 0.000000e+00 : f32
    %363 = vector.broadcast %cst_103 : f32 to vector<8x32xf32>
    %364 = arith.subf %363, %362 : vector<8x32xf32>
    %365 = math.exp %364 : vector<8x32xf32>
    %cst_104 = arith.constant 1.000000e+00 : f32
    %366 = vector.broadcast %cst_104 : f32 to vector<8x32xf32>
    %367 = arith.addf %366, %365 : vector<8x32xf32>
    %368 = tpu.reciprocal %367 {approx = true} : vector<8x32xf32> -> vector<8x32xf32>
    %369 = vector.extract_strided_slice %361 {offsets = [0, 32], sizes = [8, 32], strides = [1, 1]} : vector<8x128xf32> to vector<8x32xf32>
    %cst_105 = arith.constant 0.000000e+00 : f32
    %370 = vector.broadcast %cst_105 : f32 to vector<8x32xf32>
    %371 = arith.subf %370, %369 : vector<8x32xf32>
    %372 = math.exp %371 : vector<8x32xf32>
    %cst_106 = arith.constant 1.000000e+00 : f32
    %373 = vector.broadcast %cst_106 : f32 to vector<8x32xf32>
    %374 = arith.addf %373, %372 : vector<8x32xf32>
    %375 = tpu.reciprocal %374 {approx = true} : vector<8x32xf32> -> vector<8x32xf32>
    %376 = vector.extract_strided_slice %361 {offsets = [0, 64], sizes = [8, 32], strides = [1, 1]} : vector<8x128xf32> to vector<8x32xf32>
    %377 = math.tanh %376 : vector<8x32xf32>
    %378 = vector.extract_strided_slice %361 {offsets = [0, 96], sizes = [8, 32], strides = [1, 1]} : vector<8x128xf32> to vector<8x32xf32>
    %cst_107 = arith.constant 0.000000e+00 : f32
    %379 = vector.broadcast %cst_107 : f32 to vector<8x32xf32>
    %380 = arith.subf %379, %378 : vector<8x32xf32>
    %381 = math.exp %380 : vector<8x32xf32>
    %cst_108 = arith.constant 1.000000e+00 : f32
    %382 = vector.broadcast %cst_108 : f32 to vector<8x32xf32>
    %383 = arith.addf %382, %381 : vector<8x32xf32>
    %384 = tpu.reciprocal %383 {approx = true} : vector<8x32xf32> -> vector<8x32xf32>
    %385 = arith.mulf %375, %354 : vector<8x32xf32>
    %386 = arith.mulf %368, %377 : vector<8x32xf32>
    %387 = arith.addf %385, %386 : vector<8x32xf32>
    %388 = math.tanh %387 : vector<8x32xf32>
    %389 = arith.mulf %384, %388 : vector<8x32xf32>
    %390 = tpu.concatenate %350, %389 in 1 : vector<8x32xf32>, vector<8x32xf32> -> vector<8x64xf32>
    %391 = arith.truncf %390 : vector<8x64xf32> to vector<8x64xbf16>
    %cst_109 = arith.constant dense<0.000000e+00> : vector<8x128xf32>
    %392 = tpu.matmul %391, %65, %cst_109 {dimension_numbers = #tpu.dot_dimension_numbers<[1], [0], [0], [1], [0, 0, 1, 1], [], []>} : vector<8x64xbf16>, vector<64x128xbf16>, vector<8x128xf32> -> vector<8x128xf32>
    %393 = vector.broadcast %66 : vector<1x128xf32> to vector<8x128xf32>
    %394 = arith.addf %392, %393 : vector<8x128xf32>
    %c7 = arith.constant 7 : index
    %c0_110 = arith.constant 0 : index
    %c0_111 = arith.constant 0 : index
    %395 = vector.load %arg13[%c7, %c0_110, %c0_111] : memref<8x8x128xf32, #tpu.memory_space<vmem>>, vector<1x8x128xf32>
    %396 = vector.shape_cast %395 : vector<1x8x128xf32> to vector<8x128xf32>
    %397 = vector.shape_cast %394 : vector<8x128xf32> to vector<1x8x128xf32>
    tpu.vector_store %arg13[%c7, %c0_110, %c0_111], %397 {strides = array<i32>} : memref<8x8x128xf32, #tpu.memory_space<vmem>>, vector<1x8x128xf32>,
    %398 = arith.truncf %51 : vector<8x32xf32> to vector<8x32xbf16>
    %cst_112 = arith.constant dense<0.000000e+00> : vector<8x128xf32>
    %399 = tpu.matmul %398, %62, %cst_112 {dimension_numbers = #tpu.dot_dimension_numbers<[1], [0], [0], [1], [0, 0, 1, 1], [], []>} : vector<8x32xbf16>, vector<32x128xbf16>, vector<8x128xf32> -> vector<8x128xf32>
    %400 = arith.truncf %389 : vector<8x32xf32> to vector<8x32xbf16>
    %cst_113 = arith.constant dense<0.000000e+00> : vector<8x128xf32>
    %401 = tpu.matmul %400, %63, %cst_113 {dimension_numbers = #tpu.dot_dimension_numbers<[1], [0], [0], [1], [0, 0, 1, 1], [], []>} : vector<8x32xbf16>, vector<32x128xbf16>, vector<8x128xf32> -> vector<8x128xf32>
    %402 = arith.addf %399, %401 : vector<8x128xf32>
    %403 = vector.broadcast %64 : vector<1x128xf32> to vector<8x128xf32>
    %404 = arith.addf %402, %403 : vector<8x128xf32>
    %405 = vector.extract_strided_slice %404 {offsets = [0, 0], sizes = [8, 32], strides = [1, 1]} : vector<8x128xf32> to vector<8x32xf32>
    %cst_114 = arith.constant 0.000000e+00 : f32
    %406 = vector.broadcast %cst_114 : f32 to vector<8x32xf32>
    %407 = arith.subf %406, %405 : vector<8x32xf32>
    %408 = math.exp %407 : vector<8x32xf32>
    %cst_115 = arith.constant 1.000000e+00 : f32
    %409 = vector.broadcast %cst_115 : f32 to vector<8x32xf32>
    %410 = arith.addf %409, %408 : vector<8x32xf32>
    %411 = tpu.reciprocal %410 {approx = true} : vector<8x32xf32> -> vector<8x32xf32>
    %412 = vector.extract_strided_slice %404 {offsets = [0, 32], sizes = [8, 32], strides = [1, 1]} : vector<8x128xf32> to vector<8x32xf32>
    %cst_116 = arith.constant 0.000000e+00 : f32
    %413 = vector.broadcast %cst_116 : f32 to vector<8x32xf32>
    %414 = arith.subf %413, %412 : vector<8x32xf32>
    %415 = math.exp %414 : vector<8x32xf32>
    %cst_117 = arith.constant 1.000000e+00 : f32
    %416 = vector.broadcast %cst_117 : f32 to vector<8x32xf32>
    %417 = arith.addf %416, %415 : vector<8x32xf32>
    %418 = tpu.reciprocal %417 {approx = true} : vector<8x32xf32> -> vector<8x32xf32>
    %419 = vector.extract_strided_slice %404 {offsets = [0, 64], sizes = [8, 32], strides = [1, 1]} : vector<8x128xf32> to vector<8x32xf32>
    %420 = math.tanh %419 : vector<8x32xf32>
    %421 = vector.extract_strided_slice %404 {offsets = [0, 96], sizes = [8, 32], strides = [1, 1]} : vector<8x128xf32> to vector<8x32xf32>
    %cst_118 = arith.constant 0.000000e+00 : f32
    %422 = vector.broadcast %cst_118 : f32 to vector<8x32xf32>
    %423 = arith.subf %422, %421 : vector<8x32xf32>
    %424 = math.exp %423 : vector<8x32xf32>
    %cst_119 = arith.constant 1.000000e+00 : f32
    %425 = vector.broadcast %cst_119 : f32 to vector<8x32xf32>
    %426 = arith.addf %425, %424 : vector<8x32xf32>
    %427 = tpu.reciprocal %426 {approx = true} : vector<8x32xf32> -> vector<8x32xf32>
    %428 = arith.mulf %418, %387 : vector<8x32xf32>
    %429 = arith.mulf %411, %420 : vector<8x32xf32>
    %430 = arith.addf %428, %429 : vector<8x32xf32>
    %431 = math.tanh %430 : vector<8x32xf32>
    %432 = arith.mulf %427, %431 : vector<8x32xf32>
    %433 = tpu.concatenate %315, %432 in 1 : vector<8x32xf32>, vector<8x32xf32> -> vector<8x64xf32>
    %434 = arith.truncf %433 : vector<8x64xf32> to vector<8x64xbf16>
    %cst_120 = arith.constant dense<0.000000e+00> : vector<8x128xf32>
    %435 = tpu.matmul %434, %65, %cst_120 {dimension_numbers = #tpu.dot_dimension_numbers<[1], [0], [0], [1], [0, 0, 1, 1], [], []>} : vector<8x64xbf16>, vector<64x128xbf16>, vector<8x128xf32> -> vector<8x128xf32>
    %436 = vector.broadcast %66 : vector<1x128xf32> to vector<8x128xf32>
    %437 = arith.addf %435, %436 : vector<8x128xf32>
    %c6 = arith.constant 6 : index
    %c0_121 = arith.constant 0 : index
    %c0_122 = arith.constant 0 : index
    %438 = vector.load %arg13[%c6, %c0_121, %c0_122] : memref<8x8x128xf32, #tpu.memory_space<vmem>>, vector<1x8x128xf32>
    %439 = vector.shape_cast %438 : vector<1x8x128xf32> to vector<8x128xf32>
    %440 = vector.shape_cast %437 : vector<8x128xf32> to vector<1x8x128xf32>
    tpu.vector_store %arg13[%c6, %c0_121, %c0_122], %440 {strides = array<i32>} : memref<8x8x128xf32, #tpu.memory_space<vmem>>, vector<1x8x128xf32>,
    %441 = arith.truncf %44 : vector<8x32xf32> to vector<8x32xbf16>
    %cst_123 = arith.constant dense<0.000000e+00> : vector<8x128xf32>
    %442 = tpu.matmul %441, %62, %cst_123 {dimension_numbers = #tpu.dot_dimension_numbers<[1], [0], [0], [1], [0, 0, 1, 1], [], []>} : vector<8x32xbf16>, vector<32x128xbf16>, vector<8x128xf32> -> vector<8x128xf32>
    %443 = arith.truncf %432 : vector<8x32xf32> to vector<8x32xbf16>
    %cst_124 = arith.constant dense<0.000000e+00> : vector<8x128xf32>
    %444 = tpu.matmul %443, %63, %cst_124 {dimension_numbers = #tpu.dot_dimension_numbers<[1], [0], [0], [1], [0, 0, 1, 1], [], []>} : vector<8x32xbf16>, vector<32x128xbf16>, vector<8x128xf32> -> vector<8x128xf32>
    %445 = arith.addf %442, %444 : vector<8x128xf32>
    %446 = vector.broadcast %64 : vector<1x128xf32> to vector<8x128xf32>
    %447 = arith.addf %445, %446 : vector<8x128xf32>
    %448 = vector.extract_strided_slice %447 {offsets = [0, 0], sizes = [8, 32], strides = [1, 1]} : vector<8x128xf32> to vector<8x32xf32>
    %cst_125 = arith.constant 0.000000e+00 : f32
    %449 = vector.broadcast %cst_125 : f32 to vector<8x32xf32>
    %450 = arith.subf %449, %448 : vector<8x32xf32>
    %451 = math.exp %450 : vector<8x32xf32>
    %cst_126 = arith.constant 1.000000e+00 : f32
    %452 = vector.broadcast %cst_126 : f32 to vector<8x32xf32>
    %453 = arith.addf %452, %451 : vector<8x32xf32>
    %454 = tpu.reciprocal %453 {approx = true} : vector<8x32xf32> -> vector<8x32xf32>
    %455 = vector.extract_strided_slice %447 {offsets = [0, 32], sizes = [8, 32], strides = [1, 1]} : vector<8x128xf32> to vector<8x32xf32>
    %cst_127 = arith.constant 0.000000e+00 : f32
    %456 = vector.broadcast %cst_127 : f32 to vector<8x32xf32>
    %457 = arith.subf %456, %455 : vector<8x32xf32>
    %458 = math.exp %457 : vector<8x32xf32>
    %cst_128 = arith.constant 1.000000e+00 : f32
    %459 = vector.broadcast %cst_128 : f32 to vector<8x32xf32>
    %460 = arith.addf %459, %458 : vector<8x32xf32>
    %461 = tpu.reciprocal %460 {approx = true} : vector<8x32xf32> -> vector<8x32xf32>
    %462 = vector.extract_strided_slice %447 {offsets = [0, 64], sizes = [8, 32], strides = [1, 1]} : vector<8x128xf32> to vector<8x32xf32>
    %463 = math.tanh %462 : vector<8x32xf32>
    %464 = vector.extract_strided_slice %447 {offsets = [0, 96], sizes = [8, 32], strides = [1, 1]} : vector<8x128xf32> to vector<8x32xf32>
    %cst_129 = arith.constant 0.000000e+00 : f32
    %465 = vector.broadcast %cst_129 : f32 to vector<8x32xf32>
    %466 = arith.subf %465, %464 : vector<8x32xf32>
    %467 = math.exp %466 : vector<8x32xf32>
    %cst_130 = arith.constant 1.000000e+00 : f32
    %468 = vector.broadcast %cst_130 : f32 to vector<8x32xf32>
    %469 = arith.addf %468, %467 : vector<8x32xf32>
    %470 = tpu.reciprocal %469 {approx = true} : vector<8x32xf32> -> vector<8x32xf32>
    %471 = arith.mulf %461, %430 : vector<8x32xf32>
    %472 = arith.mulf %454, %463 : vector<8x32xf32>
    %473 = arith.addf %471, %472 : vector<8x32xf32>
    %474 = math.tanh %473 : vector<8x32xf32>
    %475 = arith.mulf %470, %474 : vector<8x32xf32>
    %476 = tpu.concatenate %280, %475 in 1 : vector<8x32xf32>, vector<8x32xf32> -> vector<8x64xf32>
    %477 = arith.truncf %476 : vector<8x64xf32> to vector<8x64xbf16>
    %cst_131 = arith.constant dense<0.000000e+00> : vector<8x128xf32>
    %478 = tpu.matmul %477, %65, %cst_131 {dimension_numbers = #tpu.dot_dimension_numbers<[1], [0], [0], [1], [0, 0, 1, 1], [], []>} : vector<8x64xbf16>, vector<64x128xbf16>, vector<8x128xf32> -> vector<8x128xf32>
    %479 = vector.broadcast %66 : vector<1x128xf32> to vector<8x128xf32>
    %480 = arith.addf %478, %479 : vector<8x128xf32>
    %c5 = arith.constant 5 : index
    %c0_132 = arith.constant 0 : index
    %c0_133 = arith.constant 0 : index
    %481 = vector.load %arg13[%c5, %c0_132, %c0_133] : memref<8x8x128xf32, #tpu.memory_space<vmem>>, vector<1x8x128xf32>
    %482 = vector.shape_cast %481 : vector<1x8x128xf32> to vector<8x128xf32>
    %483 = vector.shape_cast %480 : vector<8x128xf32> to vector<1x8x128xf32>
    tpu.vector_store %arg13[%c5, %c0_132, %c0_133], %483 {strides = array<i32>} : memref<8x8x128xf32, #tpu.memory_space<vmem>>, vector<1x8x128xf32>,
    %484 = arith.truncf %37 : vector<8x32xf32> to vector<8x32xbf16>
    %cst_134 = arith.constant dense<0.000000e+00> : vector<8x128xf32>
    %485 = tpu.matmul %484, %62, %cst_134 {dimension_numbers = #tpu.dot_dimension_numbers<[1], [0], [0], [1], [0, 0, 1, 1], [], []>} : vector<8x32xbf16>, vector<32x128xbf16>, vector<8x128xf32> -> vector<8x128xf32>
    %486 = arith.truncf %475 : vector<8x32xf32> to vector<8x32xbf16>
    %cst_135 = arith.constant dense<0.000000e+00> : vector<8x128xf32>
    %487 = tpu.matmul %486, %63, %cst_135 {dimension_numbers = #tpu.dot_dimension_numbers<[1], [0], [0], [1], [0, 0, 1, 1], [], []>} : vector<8x32xbf16>, vector<32x128xbf16>, vector<8x128xf32> -> vector<8x128xf32>
    %488 = arith.addf %485, %487 : vector<8x128xf32>
    %489 = vector.broadcast %64 : vector<1x128xf32> to vector<8x128xf32>
    %490 = arith.addf %488, %489 : vector<8x128xf32>
    %491 = vector.extract_strided_slice %490 {offsets = [0, 0], sizes = [8, 32], strides = [1, 1]} : vector<8x128xf32> to vector<8x32xf32>
    %cst_136 = arith.constant 0.000000e+00 : f32
    %492 = vector.broadcast %cst_136 : f32 to vector<8x32xf32>
    %493 = arith.subf %492, %491 : vector<8x32xf32>
    %494 = math.exp %493 : vector<8x32xf32>
    %cst_137 = arith.constant 1.000000e+00 : f32
    %495 = vector.broadcast %cst_137 : f32 to vector<8x32xf32>
    %496 = arith.addf %495, %494 : vector<8x32xf32>
    %497 = tpu.reciprocal %496 {approx = true} : vector<8x32xf32> -> vector<8x32xf32>
    %498 = vector.extract_strided_slice %490 {offsets = [0, 32], sizes = [8, 32], strides = [1, 1]} : vector<8x128xf32> to vector<8x32xf32>
    %cst_138 = arith.constant 0.000000e+00 : f32
    %499 = vector.broadcast %cst_138 : f32 to vector<8x32xf32>
    %500 = arith.subf %499, %498 : vector<8x32xf32>
    %501 = math.exp %500 : vector<8x32xf32>
    %cst_139 = arith.constant 1.000000e+00 : f32
    %502 = vector.broadcast %cst_139 : f32 to vector<8x32xf32>
    %503 = arith.addf %502, %501 : vector<8x32xf32>
    %504 = tpu.reciprocal %503 {approx = true} : vector<8x32xf32> -> vector<8x32xf32>
    %505 = vector.extract_strided_slice %490 {offsets = [0, 64], sizes = [8, 32], strides = [1, 1]} : vector<8x128xf32> to vector<8x32xf32>
    %506 = math.tanh %505 : vector<8x32xf32>
    %507 = vector.extract_strided_slice %490 {offsets = [0, 96], sizes = [8, 32], strides = [1, 1]} : vector<8x128xf32> to vector<8x32xf32>
    %cst_140 = arith.constant 0.000000e+00 : f32
    %508 = vector.broadcast %cst_140 : f32 to vector<8x32xf32>
    %509 = arith.subf %508, %507 : vector<8x32xf32>
    %510 = math.exp %509 : vector<8x32xf32>
    %cst_141 = arith.constant 1.000000e+00 : f32
    %511 = vector.broadcast %cst_141 : f32 to vector<8x32xf32>
    %512 = arith.addf %511, %510 : vector<8x32xf32>
    %513 = tpu.reciprocal %512 {approx = true} : vector<8x32xf32> -> vector<8x32xf32>
    %514 = arith.mulf %504, %473 : vector<8x32xf32>
    %515 = arith.mulf %497, %506 : vector<8x32xf32>
    %516 = arith.addf %514, %515 : vector<8x32xf32>
    %517 = math.tanh %516 : vector<8x32xf32>
    %518 = arith.mulf %513, %517 : vector<8x32xf32>
    %519 = tpu.concatenate %245, %518 in 1 : vector<8x32xf32>, vector<8x32xf32> -> vector<8x64xf32>
    %520 = arith.truncf %519 : vector<8x64xf32> to vector<8x64xbf16>
    %cst_142 = arith.constant dense<0.000000e+00> : vector<8x128xf32>
    %521 = tpu.matmul %520, %65, %cst_142 {dimension_numbers = #tpu.dot_dimension_numbers<[1], [0], [0], [1], [0, 0, 1, 1], [], []>} : vector<8x64xbf16>, vector<64x128xbf16>, vector<8x128xf32> -> vector<8x128xf32>
    %522 = vector.broadcast %66 : vector<1x128xf32> to vector<8x128xf32>
    %523 = arith.addf %521, %522 : vector<8x128xf32>
    %c4 = arith.constant 4 : index
    %c0_143 = arith.constant 0 : index
    %c0_144 = arith.constant 0 : index
    %524 = vector.load %arg13[%c4, %c0_143, %c0_144] : memref<8x8x128xf32, #tpu.memory_space<vmem>>, vector<1x8x128xf32>
    %525 = vector.shape_cast %524 : vector<1x8x128xf32> to vector<8x128xf32>
    %526 = vector.shape_cast %523 : vector<8x128xf32> to vector<1x8x128xf32>
    tpu.vector_store %arg13[%c4, %c0_143, %c0_144], %526 {strides = array<i32>} : memref<8x8x128xf32, #tpu.memory_space<vmem>>, vector<1x8x128xf32>,
    %527 = arith.truncf %30 : vector<8x32xf32> to vector<8x32xbf16>
    %cst_145 = arith.constant dense<0.000000e+00> : vector<8x128xf32>
    %528 = tpu.matmul %527, %62, %cst_145 {dimension_numbers = #tpu.dot_dimension_numbers<[1], [0], [0], [1], [0, 0, 1, 1], [], []>} : vector<8x32xbf16>, vector<32x128xbf16>, vector<8x128xf32> -> vector<8x128xf32>
    %529 = arith.truncf %518 : vector<8x32xf32> to vector<8x32xbf16>
    %cst_146 = arith.constant dense<0.000000e+00> : vector<8x128xf32>
    %530 = tpu.matmul %529, %63, %cst_146 {dimension_numbers = #tpu.dot_dimension_numbers<[1], [0], [0], [1], [0, 0, 1, 1], [], []>} : vector<8x32xbf16>, vector<32x128xbf16>, vector<8x128xf32> -> vector<8x128xf32>
    %531 = arith.addf %528, %530 : vector<8x128xf32>
    %532 = vector.broadcast %64 : vector<1x128xf32> to vector<8x128xf32>
    %533 = arith.addf %531, %532 : vector<8x128xf32>
    %534 = vector.extract_strided_slice %533 {offsets = [0, 0], sizes = [8, 32], strides = [1, 1]} : vector<8x128xf32> to vector<8x32xf32>
    %cst_147 = arith.constant 0.000000e+00 : f32
    %535 = vector.broadcast %cst_147 : f32 to vector<8x32xf32>
    %536 = arith.subf %535, %534 : vector<8x32xf32>
    %537 = math.exp %536 : vector<8x32xf32>
    %cst_148 = arith.constant 1.000000e+00 : f32
    %538 = vector.broadcast %cst_148 : f32 to vector<8x32xf32>
    %539 = arith.addf %538, %537 : vector<8x32xf32>
    %540 = tpu.reciprocal %539 {approx = true} : vector<8x32xf32> -> vector<8x32xf32>
    %541 = vector.extract_strided_slice %533 {offsets = [0, 32], sizes = [8, 32], strides = [1, 1]} : vector<8x128xf32> to vector<8x32xf32>
    %cst_149 = arith.constant 0.000000e+00 : f32
    %542 = vector.broadcast %cst_149 : f32 to vector<8x32xf32>
    %543 = arith.subf %542, %541 : vector<8x32xf32>
    %544 = math.exp %543 : vector<8x32xf32>
    %cst_150 = arith.constant 1.000000e+00 : f32
    %545 = vector.broadcast %cst_150 : f32 to vector<8x32xf32>
    %546 = arith.addf %545, %544 : vector<8x32xf32>
    %547 = tpu.reciprocal %546 {approx = true} : vector<8x32xf32> -> vector<8x32xf32>
    %548 = vector.extract_strided_slice %533 {offsets = [0, 64], sizes = [8, 32], strides = [1, 1]} : vector<8x128xf32> to vector<8x32xf32>
    %549 = math.tanh %548 : vector<8x32xf32>
    %550 = vector.extract_strided_slice %533 {offsets = [0, 96], sizes = [8, 32], strides = [1, 1]} : vector<8x128xf32> to vector<8x32xf32>
    %cst_151 = arith.constant 0.000000e+00 : f32
    %551 = vector.broadcast %cst_151 : f32 to vector<8x32xf32>
    %552 = arith.subf %551, %550 : vector<8x32xf32>
    %553 = math.exp %552 : vector<8x32xf32>
    %cst_152 = arith.constant 1.000000e+00 : f32
    %554 = vector.broadcast %cst_152 : f32 to vector<8x32xf32>
    %555 = arith.addf %554, %553 : vector<8x32xf32>
    %556 = tpu.reciprocal %555 {approx = true} : vector<8x32xf32> -> vector<8x32xf32>
    %557 = arith.mulf %547, %516 : vector<8x32xf32>
    %558 = arith.mulf %540, %549 : vector<8x32xf32>
    %559 = arith.addf %557, %558 : vector<8x32xf32>
    %560 = math.tanh %559 : vector<8x32xf32>
    %561 = arith.mulf %556, %560 : vector<8x32xf32>
    %562 = tpu.concatenate %210, %561 in 1 : vector<8x32xf32>, vector<8x32xf32> -> vector<8x64xf32>
    %563 = arith.truncf %562 : vector<8x64xf32> to vector<8x64xbf16>
    %cst_153 = arith.constant dense<0.000000e+00> : vector<8x128xf32>
    %564 = tpu.matmul %563, %65, %cst_153 {dimension_numbers = #tpu.dot_dimension_numbers<[1], [0], [0], [1], [0, 0, 1, 1], [], []>} : vector<8x64xbf16>, vector<64x128xbf16>, vector<8x128xf32> -> vector<8x128xf32>
    %565 = vector.broadcast %66 : vector<1x128xf32> to vector<8x128xf32>
    %566 = arith.addf %564, %565 : vector<8x128xf32>
    %c3 = arith.constant 3 : index
    %c0_154 = arith.constant 0 : index
    %c0_155 = arith.constant 0 : index
    %567 = vector.load %arg13[%c3, %c0_154, %c0_155] : memref<8x8x128xf32, #tpu.memory_space<vmem>>, vector<1x8x128xf32>
    %568 = vector.shape_cast %567 : vector<1x8x128xf32> to vector<8x128xf32>
    %569 = vector.shape_cast %566 : vector<8x128xf32> to vector<1x8x128xf32>
    tpu.vector_store %arg13[%c3, %c0_154, %c0_155], %569 {strides = array<i32>} : memref<8x8x128xf32, #tpu.memory_space<vmem>>, vector<1x8x128xf32>,
    %570 = arith.truncf %23 : vector<8x32xf32> to vector<8x32xbf16>
    %cst_156 = arith.constant dense<0.000000e+00> : vector<8x128xf32>
    %571 = tpu.matmul %570, %62, %cst_156 {dimension_numbers = #tpu.dot_dimension_numbers<[1], [0], [0], [1], [0, 0, 1, 1], [], []>} : vector<8x32xbf16>, vector<32x128xbf16>, vector<8x128xf32> -> vector<8x128xf32>
    %572 = arith.truncf %561 : vector<8x32xf32> to vector<8x32xbf16>
    %cst_157 = arith.constant dense<0.000000e+00> : vector<8x128xf32>
    %573 = tpu.matmul %572, %63, %cst_157 {dimension_numbers = #tpu.dot_dimension_numbers<[1], [0], [0], [1], [0, 0, 1, 1], [], []>} : vector<8x32xbf16>, vector<32x128xbf16>, vector<8x128xf32> -> vector<8x128xf32>
    %574 = arith.addf %571, %573 : vector<8x128xf32>
    %575 = vector.broadcast %64 : vector<1x128xf32> to vector<8x128xf32>
    %576 = arith.addf %574, %575 : vector<8x128xf32>
    %577 = vector.extract_strided_slice %576 {offsets = [0, 0], sizes = [8, 32], strides = [1, 1]} : vector<8x128xf32> to vector<8x32xf32>
    %cst_158 = arith.constant 0.000000e+00 : f32
    %578 = vector.broadcast %cst_158 : f32 to vector<8x32xf32>
    %579 = arith.subf %578, %577 : vector<8x32xf32>
    %580 = math.exp %579 : vector<8x32xf32>
    %cst_159 = arith.constant 1.000000e+00 : f32
    %581 = vector.broadcast %cst_159 : f32 to vector<8x32xf32>
    %582 = arith.addf %581, %580 : vector<8x32xf32>
    %583 = tpu.reciprocal %582 {approx = true} : vector<8x32xf32> -> vector<8x32xf32>
    %584 = vector.extract_strided_slice %576 {offsets = [0, 32], sizes = [8, 32], strides = [1, 1]} : vector<8x128xf32> to vector<8x32xf32>
    %cst_160 = arith.constant 0.000000e+00 : f32
    %585 = vector.broadcast %cst_160 : f32 to vector<8x32xf32>
    %586 = arith.subf %585, %584 : vector<8x32xf32>
    %587 = math.exp %586 : vector<8x32xf32>
    %cst_161 = arith.constant 1.000000e+00 : f32
    %588 = vector.broadcast %cst_161 : f32 to vector<8x32xf32>
    %589 = arith.addf %588, %587 : vector<8x32xf32>
    %590 = tpu.reciprocal %589 {approx = true} : vector<8x32xf32> -> vector<8x32xf32>
    %591 = vector.extract_strided_slice %576 {offsets = [0, 64], sizes = [8, 32], strides = [1, 1]} : vector<8x128xf32> to vector<8x32xf32>
    %592 = math.tanh %591 : vector<8x32xf32>
    %593 = vector.extract_strided_slice %576 {offsets = [0, 96], sizes = [8, 32], strides = [1, 1]} : vector<8x128xf32> to vector<8x32xf32>
    %cst_162 = arith.constant 0.000000e+00 : f32
    %594 = vector.broadcast %cst_162 : f32 to vector<8x32xf32>
    %595 = arith.subf %594, %593 : vector<8x32xf32>
    %596 = math.exp %595 : vector<8x32xf32>
    %cst_163 = arith.constant 1.000000e+00 : f32
    %597 = vector.broadcast %cst_163 : f32 to vector<8x32xf32>
    %598 = arith.addf %597, %596 : vector<8x32xf32>
    %599 = tpu.reciprocal %598 {approx = true} : vector<8x32xf32> -> vector<8x32xf32>
    %600 = arith.mulf %590, %559 : vector<8x32xf32>
    %601 = arith.mulf %583, %592 : vector<8x32xf32>
    %602 = arith.addf %600, %601 : vector<8x32xf32>
    %603 = math.tanh %602 : vector<8x32xf32>
    %604 = arith.mulf %599, %603 : vector<8x32xf32>
    %605 = tpu.concatenate %175, %604 in 1 : vector<8x32xf32>, vector<8x32xf32> -> vector<8x64xf32>
    %606 = arith.truncf %605 : vector<8x64xf32> to vector<8x64xbf16>
    %cst_164 = arith.constant dense<0.000000e+00> : vector<8x128xf32>
    %607 = tpu.matmul %606, %65, %cst_164 {dimension_numbers = #tpu.dot_dimension_numbers<[1], [0], [0], [1], [0, 0, 1, 1], [], []>} : vector<8x64xbf16>, vector<64x128xbf16>, vector<8x128xf32> -> vector<8x128xf32>
    %608 = vector.broadcast %66 : vector<1x128xf32> to vector<8x128xf32>
    %609 = arith.addf %607, %608 : vector<8x128xf32>
    %c2 = arith.constant 2 : index
    %c0_165 = arith.constant 0 : index
    %c0_166 = arith.constant 0 : index
    %610 = vector.load %arg13[%c2, %c0_165, %c0_166] : memref<8x8x128xf32, #tpu.memory_space<vmem>>, vector<1x8x128xf32>
    %611 = vector.shape_cast %610 : vector<1x8x128xf32> to vector<8x128xf32>
    %612 = vector.shape_cast %609 : vector<8x128xf32> to vector<1x8x128xf32>
    tpu.vector_store %arg13[%c2, %c0_165, %c0_166], %612 {strides = array<i32>} : memref<8x8x128xf32, #tpu.memory_space<vmem>>, vector<1x8x128xf32>,
    %613 = arith.truncf %16 : vector<8x32xf32> to vector<8x32xbf16>
    %cst_167 = arith.constant dense<0.000000e+00> : vector<8x128xf32>
    %614 = tpu.matmul %613, %62, %cst_167 {dimension_numbers = #tpu.dot_dimension_numbers<[1], [0], [0], [1], [0, 0, 1, 1], [], []>} : vector<8x32xbf16>, vector<32x128xbf16>, vector<8x128xf32> -> vector<8x128xf32>
    %615 = arith.truncf %604 : vector<8x32xf32> to vector<8x32xbf16>
    %cst_168 = arith.constant dense<0.000000e+00> : vector<8x128xf32>
    %616 = tpu.matmul %615, %63, %cst_168 {dimension_numbers = #tpu.dot_dimension_numbers<[1], [0], [0], [1], [0, 0, 1, 1], [], []>} : vector<8x32xbf16>, vector<32x128xbf16>, vector<8x128xf32> -> vector<8x128xf32>
    %617 = arith.addf %614, %616 : vector<8x128xf32>
    %618 = vector.broadcast %64 : vector<1x128xf32> to vector<8x128xf32>
    %619 = arith.addf %617, %618 : vector<8x128xf32>
    %620 = vector.extract_strided_slice %619 {offsets = [0, 0], sizes = [8, 32], strides = [1, 1]} : vector<8x128xf32> to vector<8x32xf32>
    %cst_169 = arith.constant 0.000000e+00 : f32
    %621 = vector.broadcast %cst_169 : f32 to vector<8x32xf32>
    %622 = arith.subf %621, %620 : vector<8x32xf32>
    %623 = math.exp %622 : vector<8x32xf32>
    %cst_170 = arith.constant 1.000000e+00 : f32
    %624 = vector.broadcast %cst_170 : f32 to vector<8x32xf32>
    %625 = arith.addf %624, %623 : vector<8x32xf32>
    %626 = tpu.reciprocal %625 {approx = true} : vector<8x32xf32> -> vector<8x32xf32>
    %627 = vector.extract_strided_slice %619 {offsets = [0, 32], sizes = [8, 32], strides = [1, 1]} : vector<8x128xf32> to vector<8x32xf32>
    %cst_171 = arith.constant 0.000000e+00 : f32
    %628 = vector.broadcast %cst_171 : f32 to vector<8x32xf32>
    %629 = arith.subf %628, %627 : vector<8x32xf32>
    %630 = math.exp %629 : vector<8x32xf32>
    %cst_172 = arith.constant 1.000000e+00 : f32
    %631 = vector.broadcast %cst_172 : f32 to vector<8x32xf32>
    %632 = arith.addf %631, %630 : vector<8x32xf32>
    %633 = tpu.reciprocal %632 {approx = true} : vector<8x32xf32> -> vector<8x32xf32>
    %634 = vector.extract_strided_slice %619 {offsets = [0, 64], sizes = [8, 32], strides = [1, 1]} : vector<8x128xf32> to vector<8x32xf32>
    %635 = math.tanh %634 : vector<8x32xf32>
    %636 = vector.extract_strided_slice %619 {offsets = [0, 96], sizes = [8, 32], strides = [1, 1]} : vector<8x128xf32> to vector<8x32xf32>
    %cst_173 = arith.constant 0.000000e+00 : f32
    %637 = vector.broadcast %cst_173 : f32 to vector<8x32xf32>
    %638 = arith.subf %637, %636 : vector<8x32xf32>
    %639 = math.exp %638 : vector<8x32xf32>
    %cst_174 = arith.constant 1.000000e+00 : f32
    %640 = vector.broadcast %cst_174 : f32 to vector<8x32xf32>
    %641 = arith.addf %640, %639 : vector<8x32xf32>
    %642 = tpu.reciprocal %641 {approx = true} : vector<8x32xf32> -> vector<8x32xf32>
    %643 = arith.mulf %633, %602 : vector<8x32xf32>
    %644 = arith.mulf %626, %635 : vector<8x32xf32>
    %645 = arith.addf %643, %644 : vector<8x32xf32>
    %646 = math.tanh %645 : vector<8x32xf32>
    %647 = arith.mulf %642, %646 : vector<8x32xf32>
    %648 = tpu.concatenate %140, %647 in 1 : vector<8x32xf32>, vector<8x32xf32> -> vector<8x64xf32>
    %649 = arith.truncf %648 : vector<8x64xf32> to vector<8x64xbf16>
    %cst_175 = arith.constant dense<0.000000e+00> : vector<8x128xf32>
    %650 = tpu.matmul %649, %65, %cst_175 {dimension_numbers = #tpu.dot_dimension_numbers<[1], [0], [0], [1], [0, 0, 1, 1], [], []>} : vector<8x64xbf16>, vector<64x128xbf16>, vector<8x128xf32> -> vector<8x128xf32>
    %651 = vector.broadcast %66 : vector<1x128xf32> to vector<8x128xf32>
    %652 = arith.addf %650, %651 : vector<8x128xf32>
    %c1_176 = arith.constant 1 : index
    %c0_177 = arith.constant 0 : index
    %c0_178 = arith.constant 0 : index
    %653 = vector.load %arg13[%c1_176, %c0_177, %c0_178] : memref<8x8x128xf32, #tpu.memory_space<vmem>>, vector<1x8x128xf32>
    %654 = vector.shape_cast %653 : vector<1x8x128xf32> to vector<8x128xf32>
    %655 = vector.shape_cast %652 : vector<8x128xf32> to vector<1x8x128xf32>
    tpu.vector_store %arg13[%c1_176, %c0_177, %c0_178], %655 {strides = array<i32>} : memref<8x8x128xf32, #tpu.memory_space<vmem>>, vector<1x8x128xf32>,
    %656 = arith.truncf %9 : vector<8x32xf32> to vector<8x32xbf16>
    %cst_179 = arith.constant dense<0.000000e+00> : vector<8x128xf32>
    %657 = tpu.matmul %656, %62, %cst_179 {dimension_numbers = #tpu.dot_dimension_numbers<[1], [0], [0], [1], [0, 0, 1, 1], [], []>} : vector<8x32xbf16>, vector<32x128xbf16>, vector<8x128xf32> -> vector<8x128xf32>
    %658 = arith.truncf %647 : vector<8x32xf32> to vector<8x32xbf16>
    %cst_180 = arith.constant dense<0.000000e+00> : vector<8x128xf32>
    %659 = tpu.matmul %658, %63, %cst_180 {dimension_numbers = #tpu.dot_dimension_numbers<[1], [0], [0], [1], [0, 0, 1, 1], [], []>} : vector<8x32xbf16>, vector<32x128xbf16>, vector<8x128xf32> -> vector<8x128xf32>
    %660 = arith.addf %657, %659 : vector<8x128xf32>
    %661 = vector.broadcast %64 : vector<1x128xf32> to vector<8x128xf32>
    %662 = arith.addf %660, %661 : vector<8x128xf32>
    %663 = vector.extract_strided_slice %662 {offsets = [0, 0], sizes = [8, 32], strides = [1, 1]} : vector<8x128xf32> to vector<8x32xf32>
    %cst_181 = arith.constant 0.000000e+00 : f32
    %664 = vector.broadcast %cst_181 : f32 to vector<8x32xf32>
    %665 = arith.subf %664, %663 : vector<8x32xf32>
    %666 = math.exp %665 : vector<8x32xf32>
    %cst_182 = arith.constant 1.000000e+00 : f32
    %667 = vector.broadcast %cst_182 : f32 to vector<8x32xf32>
    %668 = arith.addf %667, %666 : vector<8x32xf32>
    %669 = tpu.reciprocal %668 {approx = true} : vector<8x32xf32> -> vector<8x32xf32>
    %670 = vector.extract_strided_slice %662 {offsets = [0, 32], sizes = [8, 32], strides = [1, 1]} : vector<8x128xf32> to vector<8x32xf32>
    %cst_183 = arith.constant 0.000000e+00 : f32
    %671 = vector.broadcast %cst_183 : f32 to vector<8x32xf32>
    %672 = arith.subf %671, %670 : vector<8x32xf32>
    %673 = math.exp %672 : vector<8x32xf32>
    %cst_184 = arith.constant 1.000000e+00 : f32
    %674 = vector.broadcast %cst_184 : f32 to vector<8x32xf32>
    %675 = arith.addf %674, %673 : vector<8x32xf32>
    %676 = tpu.reciprocal %675 {approx = true} : vector<8x32xf32> -> vector<8x32xf32>
    %677 = vector.extract_strided_slice %662 {offsets = [0, 64], sizes = [8, 32], strides = [1, 1]} : vector<8x128xf32> to vector<8x32xf32>
    %678 = math.tanh %677 : vector<8x32xf32>
    %679 = vector.extract_strided_slice %662 {offsets = [0, 96], sizes = [8, 32], strides = [1, 1]} : vector<8x128xf32> to vector<8x32xf32>
    %cst_185 = arith.constant 0.000000e+00 : f32
    %680 = vector.broadcast %cst_185 : f32 to vector<8x32xf32>
    %681 = arith.subf %680, %679 : vector<8x32xf32>
    %682 = math.exp %681 : vector<8x32xf32>
    %cst_186 = arith.constant 1.000000e+00 : f32
    %683 = vector.broadcast %cst_186 : f32 to vector<8x32xf32>
    %684 = arith.addf %683, %682 : vector<8x32xf32>
    %685 = tpu.reciprocal %684 {approx = true} : vector<8x32xf32> -> vector<8x32xf32>
    %686 = arith.mulf %676, %645 : vector<8x32xf32>
    %687 = arith.mulf %669, %678 : vector<8x32xf32>
    %688 = arith.addf %686, %687 : vector<8x32xf32>
    %689 = math.tanh %688 : vector<8x32xf32>
    %690 = arith.mulf %685, %689 : vector<8x32xf32>
    %691 = tpu.concatenate %105, %690 in 1 : vector<8x32xf32>, vector<8x32xf32> -> vector<8x64xf32>
    %692 = arith.truncf %691 : vector<8x64xf32> to vector<8x64xbf16>
    %cst_187 = arith.constant dense<0.000000e+00> : vector<8x128xf32>
    %693 = tpu.matmul %692, %65, %cst_187 {dimension_numbers = #tpu.dot_dimension_numbers<[1], [0], [0], [1], [0, 0, 1, 1], [], []>} : vector<8x64xbf16>, vector<64x128xbf16>, vector<8x128xf32> -> vector<8x128xf32>
    %694 = vector.broadcast %66 : vector<1x128xf32> to vector<8x128xf32>
    %695 = arith.addf %693, %694 : vector<8x128xf32>
    %c0_188 = arith.constant 0 : index
    %c0_189 = arith.constant 0 : index
    %c0_190 = arith.constant 0 : index
    %696 = vector.load %arg13[%c0_188, %c0_189, %c0_190] : memref<8x8x128xf32, #tpu.memory_space<vmem>>, vector<1x8x128xf32>
    %697 = vector.shape_cast %696 : vector<1x8x128xf32> to vector<8x128xf32>
    %698 = vector.shape_cast %695 : vector<8x128xf32> to vector<1x8x128xf32>
    tpu.vector_store %arg13[%c0_188, %c0_189, %c0_190], %698 {strides = array<i32>} : memref<8x8x128xf32, #tpu.memory_space<vmem>>, vector<1x8x128xf32>,
    return
  }
  func.func @transform_0(%arg0: i32) -> (i32, i32) {
    %c0_i32 = arith.constant 0 : i32
    %c0_i32_0 = arith.constant 0 : i32
    return %arg0, %c0_i32 : i32, i32
  }
  func.func @transform_1(%arg0: i32) -> (i32, i32) {
    %c0_i32 = arith.constant 0 : i32
    %c0_i32_0 = arith.constant 0 : i32
    %c0_i32_1 = arith.constant 0 : i32
    return %c0_i32, %c0_i32_0 : i32, i32
  }
  func.func @transform_2(%arg0: i32) -> (i32, i32) {
    %c0_i32 = arith.constant 0 : i32
    %c0_i32_0 = arith.constant 0 : i32
    %c0_i32_1 = arith.constant 0 : i32
    return %c0_i32, %c0_i32_0 : i32, i32
  }
  func.func @transform_3(%arg0: i32) -> (i32, i32) {
    %c0_i32 = arith.constant 0 : i32
    %c0_i32_0 = arith.constant 0 : i32
    %c0_i32_1 = arith.constant 0 : i32
    return %c0_i32, %c0_i32_0 : i32, i32
  }
  func.func @transform_4(%arg0: i32) -> (i32, i32) {
    %c0_i32 = arith.constant 0 : i32
    %c0_i32_0 = arith.constant 0 : i32
    %c0_i32_1 = arith.constant 0 : i32
    return %c0_i32, %c0_i32_0 : i32, i32
  }
  func.func @transform_5(%arg0: i32) -> (i32, i32) {
    %c0_i32 = arith.constant 0 : i32
    %c0_i32_0 = arith.constant 0 : i32
    %c0_i32_1 = arith.constant 0 : i32
    return %c0_i32, %c0_i32_0 : i32, i32
  }
  func.func @transform_6(%arg0: i32) -> (i32, i32) {
    %c0_i32 = arith.constant 0 : i32
    %c0_i32_0 = arith.constant 0 : i32
    %c0_i32_1 = arith.constant 0 : i32
    return %c0_i32, %c0_i32_0 : i32, i32
  }
  func.func @transform_7(%arg0: i32) -> (i32, i32) {
    %c0_i32 = arith.constant 0 : i32
    %c0_i32_0 = arith.constant 0 : i32
    %c0_i32_1 = arith.constant 0 : i32
    return %c0_i32, %c0_i32_0 : i32, i32
  }
  func.func @transform_8(%arg0: i32) -> (i32, i32) {
    %c0_i32 = arith.constant 0 : i32
    %c0_i32_0 = arith.constant 0 : i32
    %c0_i32_1 = arith.constant 0 : i32
    return %c0_i32, %c0_i32_0 : i32, i32
  }
  func.func @transform_9(%arg0: i32) -> (i32, i32) {
    %c0_i32 = arith.constant 0 : i32
    %c0_i32_0 = arith.constant 0 : i32
    %c0_i32_1 = arith.constant 0 : i32
    return %c0_i32, %c0_i32_0 : i32, i32
  }
  func.func @transform_10(%arg0: i32) -> (i32, i32, i32) {
    %c0_i32 = arith.constant 0 : i32
    %c0_i32_0 = arith.constant 0 : i32
    %c0_i32_1 = arith.constant 0 : i32
    return %c0_i32, %arg0, %c0_i32_0 : i32, i32, i32
  }
  func.func @transform_11(%arg0: i32) -> (i32, i32, i32) {
    %c0_i32 = arith.constant 0 : i32
    %c0_i32_0 = arith.constant 0 : i32
    %c0_i32_1 = arith.constant 0 : i32
    return %c0_i32, %arg0, %c0_i32_0 : i32, i32, i32
  }
  func.func @transform_12(%arg0: i32) -> (i32, i32, i32) {
    %c0_i32 = arith.constant 0 : i32
    %c0_i32_0 = arith.constant 0 : i32
    %c0_i32_1 = arith.constant 0 : i32
    return %c0_i32, %arg0, %c0_i32_0 : i32, i32, i32
  }
}

</mosaic_0001>

<llo_original>
// kernel: tpu_custom_call.1
$region0: #{tpu_custom_call.1}
  #allocation0 [shape = 'u32[]', space=smem, size = 0x4, offset = 0x4, fixed_abs, tag = 'smem constant byte address 0x4 - core index']
  #allocation1 [shape = 'u32[144,128]{1,0:T(1,128)}', space=vmem, size = 0x12000, scoped, tag = 'internal scratch']
  %s0 = inlined_call_operand.vmem [shape: s32[16,8], index: 0, kind: input, shape index: {}]
  %s1 = inlined_call_operand.hbm [shape: bf16[32,32], index: 1, kind: input, shape index: {}]
  %s2 = inlined_call_operand.hbm [shape: bf16[32,128], index: 2, kind: input, shape index: {}]
  %s3 = inlined_call_operand.hbm [shape: bf16[32,128], index: 3, kind: input, shape index: {}]
  %s4 = inlined_call_operand.vmem [shape: f32[1,128], index: 4, kind: input, shape index: {}]
  %s5 = inlined_call_operand.hbm [shape: bf16[32,128], index: 5, kind: input, shape index: {}]
  %s6 = inlined_call_operand.hbm [shape: bf16[32,128], index: 6, kind: input, shape index: {}]
  %s7 = inlined_call_operand.hbm [shape: f32[1,128], index: 7, kind: input, shape index: {}]
  %s8 = inlined_call_operand.vmem [shape: bf16[64,128], index: 8, kind: input, shape index: {}]
  %s9 = inlined_call_operand.hbm [shape: f32[1,128], index: 9, kind: input, shape index: {}]
  %s10 = inlined_call_operand.hbm [shape: f32[2,16,32], index: 10, kind: input, shape index: {}]
  %s11 = inlined_call_operand.vmem [shape: f32[2,16,32], index: 11, kind: input, shape index: {}]
  %s12 = inlined_call_operand.hbm [shape: f32[8,16,128], index: 12, kind: output, shape index: {}]
  %s13 = sld [smem:[#allocation0]]
  $region151: #{tpu_custom_call.1} parent=0
    _
  %s15 = ssub.s32 1, %s13
  %s16 = scalar_select 0, %s15, %s13
  $region1: #{tpu_custom_call.1} parent=0
    #allocation2 [shape = 'u8[8192]{0}', space=vmem, size = 0x2000, scoped, tag = 'input window, operand 1, single buffered']
    #allocation3 [shape = 's32[2]{0}', space=sflag, size = 0x8, scoped, tag = 'scoped memory for tpu_custom_call.1']
    #allocation4 [shape = 's32[2]{0}', space=sflag, size = 0x8, scoped, tag = 'scoped memory for tpu_custom_call.1']
    #allocation5 [shape = 'u8[8192]{0}', space=vmem, size = 0x2000, scoped, tag = 'input window, operand 2, single buffered']
    #allocation6 [shape = 's32[1]{0}', space=sflag, size = 0x4, scoped, tag = 'scoped memory for tpu_custom_call.1']
    #allocation7 [shape = 'u8[8192]{0}', space=vmem, size = 0x2000, scoped, tag = 'input window, operand 3, single buffered']
    #allocation8 [shape = 'u8[8192]{0}', space=vmem, size = 0x2000, scoped, tag = 'input window, operand 5, single buffered']
    #allocation9 [shape = 's32[1]{0}', space=sflag, size = 0x4, scoped, tag = 'scoped memory for tpu_custom_call.1']
    #allocation10 [shape = 'u8[8192]{0}', space=vmem, size = 0x2000, scoped, tag = 'input window, operand 6, single buffered']
    #allocation11 [shape = 'u8[512]{0}', space=vmem, size = 0x400, scoped, tag = 'input window, operand 7, single buffered']
    #allocation12 [shape = 's32[1]{0}', space=sflag, size = 0x4, scoped, tag = 'scoped memory for tpu_custom_call.1']
    #allocation13 [shape = 'u8[512]{0}', space=vmem, size = 0x400, scoped, tag = 'input window, operand 9, single buffered']
    #allocation14 [shape = 'u8[16384]{0}', space=vmem, size = 0x4000, scoped, tag = 'input window, operand 10']
    #allocation15 [shape = 's32[2]{0}', space=sflag, size = 0x8, scoped, tag = 'scoped memory for tpu_custom_call.1']
    #allocation16 [shape = 'u8[16384]{0}', space=vmem, size = 0x4000, scoped, tag = 'input window, operand 11']
    #allocation17 [shape = 'u8[65536]{0}', space=vmem, size = 0x10000, scoped, tag = 'output window, operand 0']
    %17 = vsyncpa [#allocation3], 0
    %18 = vsyncpa [#allocation6], 0
    %19 = vsyncpa [#allocation9], 0
    %20 = vsyncpa [#allocation12], 0
    %21 = vsyncpa [#allocation15], 0
    %s22 = scalar_lea.sflag [#allocation15], 1
    %23 = vsyncpa %s22, 0
    %24 = vsyncpa [#allocation4], 0
    %s25 = scalar_lea.sflag [#allocation4], 1
    %26 = vsyncpa %s25, 0
    loop: start=0, step=1, limit=4
    $region2: #{tpu_custom_call.1} parent=1 // loop_pre_header
      _
    $region3: #{tpu_custom_call.1} parent=1 // loop_header
      %s28 = sphi 0, %s32
      %p29 = scmp.ge.s32.totalorder %s28, 4
      %s38 = sphi 0, %s40
      %s41 = sphi 0, %s38
      %s42 = sphi 0, %s41
      %s58 = sphi 0, %s42
      %s62 = sphi 0, %s62
      %s64 = sphi 0, %s62
      %s65 = sphi 0, %s64
      %s79 = sphi 0, %s65
      %s83 = sphi 0, %s83
      %s85 = sphi 0, %s83
      %s86 = sphi 0, %s85
      %s100 = sphi 0, %s86
      %s104 = sphi 0, %s104
      %s106 = sphi 0, %s104
      %s107 = sphi 0, %s106
      %s121 = sphi 0, %s107
      %s125 = sphi 0, %s125
      %s127 = sphi 0, %s125
      %s128 = sphi 0, %s127
      %s142 = sphi 0, %s128
      %s146 = sphi 0, %s146
      %s148 = sphi 0, %s146
      %s149 = sphi 0, %s148
      %s163 = sphi 0, %s149
      %s167 = sphi 0, %s167
      %s169 = sphi 0, %s167
      %s170 = sphi 0, %s169
      %s184 = sphi 0, %s170
      %s188 = sphi 0, %s188
      %s190 = sphi 0, %s188
      %s191 = sphi 0, %s190
      %s205 = sphi 0, %s191
      %s209 = sphi 0, %s209
      %s211 = sphi 0, %s209
      %s212 = sphi 0, %s211
      %s226 = sphi 0, %s212
      %s230 = sphi 0, %s230
      %s232 = sphi 0, %s230
      %s233 = sphi 0, %s232
      %s247 = sphi 0, %s233
      %s253 = sphi 0, %s255
      %s256 = sphi 0, %s253
      %s257 = sphi 0, %s256
      %s273 = sphi 0, %s257
      %s279 = sphi 0, %s281
      %s282 = sphi 0, %s279
      %s283 = sphi 0, %s282
      %s299 = sphi 0, %s283
      %s305 = sphi 0, %s307
      %s308 = sphi 0, %s305
      %s309 = sphi 0, %s308
      %s325 = sphi 0, %s309
    $region4: #{tpu_custom_call.1} parent=1 // loop_header_branch
      %31 = sbr.rel (%p29) target = $region8
    $region5: #{tpu_custom_call.1} parent=1 // loop_body
      %s33 = ssub.s32 %s28, 1
      %s34 = ssub.s32 %s28, 2
      %s35 = sadd.s32 %s28, 1
      %s36 = ssub.s32 %s28, %s35
      %p37 = scmp.eq.s32.totalorder %s36, 0
      %s39 = sadd.s32 %s38, 1
      %s40 = scalar_select %p37, %s38, %s39
      %p43 = pneg %p37
      %p44 = scmp.eq.s32.totalorder %s28, 1
      %p45 = por %p43, %p44
      %p46 = scmp.ne.s32.totalorder %s38, %s41
      %p47 = scmp.eq.s32.totalorder %s28, 0
      %p48 = por %p46, %p47
      %p49 = scmp.ne.s32.totalorder %s38, %s41
      %p50 = scmp.eq.s32.totalorder %s33, 1
      %p51 = por %p49, %p50
      %p52 = scmp.ne.s32.totalorder %s41, %s42
      %p53 = scmp.eq.s32.totalorder %s33, 0
      %p54 = por %p52, %p53
      %p55 = scmp.ne.s32.totalorder %s41, %s42
      %p56 = scmp.eq.s32.totalorder %s34, 1
      %p57 = por %p55, %p56
      %p59 = scmp.ne.s32.totalorder %s42, %s58
      %p60 = scmp.eq.s32.totalorder %s34, 0
      %p61 = por %p59, %p60
      %s63 = sadd.s32 %s62, 1
      %p66 = scmp.eq.s32.totalorder %s28, 1
      %p67 = scmp.ne.s32.totalorder %s62, %s64
      %p68 = scmp.eq.s32.totalorder %s28, 0
      %p69 = por %p67, %p68
      %p70 = scmp.ne.s32.totalorder %s62, %s64
      %p71 = scmp.eq.s32.totalorder %s33, 1
      %p72 = por %p70, %p71
      %p73 = scmp.ne.s32.totalorder %s64, %s65
      %p74 = scmp.eq.s32.totalorder %s33, 0
      %p75 = por %p73, %p74
      %p76 = scmp.ne.s32.totalorder %s64, %s65
      %p77 = scmp.eq.s32.totalorder %s34, 1
      %p78 = por %p76, %p77
      %p80 = scmp.ne.s32.totalorder %s65, %s79
      %p81 = scmp.eq.s32.totalorder %s34, 0
      %p82 = por %p80, %p81
      %s84 = sadd.s32 %s83, 1
      %p87 = scmp.eq.s32.totalorder %s28, 1
      %p88 = scmp.ne.s32.totalorder %s83, %s85
      %p89 = scmp.eq.s32.totalorder %s28, 0
      %p90 = por %p88, %p89
      %p91 = scmp.ne.s32.totalorder %s83, %s85
      %p92 = scmp.eq.s32.totalorder %s33, 1
      %p93 = por %p91, %p92
      %p94 = scmp.ne.s32.totalorder %s85, %s86
      %p95 = scmp.eq.s32.totalorder %s33, 0
      %p96 = por %p94, %p95
      %p97 = scmp.ne.s32.totalorder %s85, %s86
      %p98 = scmp.eq.s32.totalorder %s34, 1
      %p99 = por %p97, %p98
      %p101 = scmp.ne.s32.totalorder %s86, %s100
      %p102 = scmp.eq.s32.totalorder %s34, 0
      %p103 = por %p101, %p102
      %s105 = sadd.s32 %s104, 1
      %p108 = scmp.eq.s32.totalorder %s28, 1
      %p109 = scmp.ne.s32.totalorder %s104, %s106
      %p110 = scmp.eq.s32.totalorder %s28, 0
      %p111 = por %p109, %p110
      %p112 = scmp.ne.s32.totalorder %s104, %s106
      %p113 = scmp.eq.s32.totalorder %s33, 1
      %p114 = por %p112, %p113
      %p115 = scmp.ne.s32.totalorder %s106, %s107
      %p116 = scmp.eq.s32.totalorder %s33, 0
      %p117 = por %p115, %p116
      %p118 = scmp.ne.s32.totalorder %s106, %s107
      %p119 = scmp.eq.s32.totalorder %s34, 1
      %p120 = por %p118, %p119
      %p122 = scmp.ne.s32.totalorder %s107, %s121
      %p123 = scmp.eq.s32.totalorder %s34, 0
      %p124 = por %p122, %p123
      %s126 = sadd.s32 %s125, 1
      %p129 = scmp.eq.s32.totalorder %s28, 1
      %p130 = scmp.ne.s32.totalorder %s125, %s127
      %p131 = scmp.eq.s32.totalorder %s28, 0
      %p132 = por %p130, %p131
      %p133 = scmp.ne.s32.totalorder %s125, %s127
      %p134 = scmp.eq.s32.totalorder %s33, 1
      %p135 = por %p133, %p134
      %p136 = scmp.ne.s32.totalorder %s127, %s128
      %p137 = scmp.eq.s32.totalorder %s33, 0
      %p138 = por %p136, %p137
      %p139 = scmp.ne.s32.totalorder %s127, %s128
      %p140 = scmp.eq.s32.totalorder %s34, 1
      %p141 = por %p139, %p140
      %p143 = scmp.ne.s32.totalorder %s128, %s142
      %p144 = scmp.eq.s32.totalorder %s34, 0
      %p145 = por %p143, %p144
      %s147 = sadd.s32 %s146, 1
      %p150 = scmp.eq.s32.totalorder %s28, 1
      %p151 = scmp.ne.s32.totalorder %s146, %s148
      %p152 = scmp.eq.s32.totalorder %s28, 0
      %p153 = por %p151, %p152
      %p154 = scmp.ne.s32.totalorder %s146, %s148
      %p155 = scmp.eq.s32.totalorder %s33, 1
      %p156 = por %p154, %p155
      %p157 = scmp.ne.s32.totalorder %s148, %s149
      %p158 = scmp.eq.s32.totalorder %s33, 0
      %p159 = por %p157, %p158
      %p160 = scmp.ne.s32.totalorder %s148, %s149
      %p161 = scmp.eq.s32.totalorder %s34, 1
      %p162 = por %p160, %p161
      %p164 = scmp.ne.s32.totalorder %s149, %s163
      %p165 = scmp.eq.s32.totalorder %s34, 0
      %p166 = por %p164, %p165
      %s168 = sadd.s32 %s167, 1
      %p171 = scmp.eq.s32.totalorder %s28, 1
      %p172 = scmp.ne.s32.totalorder %s167, %s169
      %p173 = scmp.eq.s32.totalorder %s28, 0
      %p174 = por %p172, %p173
      %p175 = scmp.ne.s32.totalorder %s167, %s169
      %p176 = scmp.eq.s32.totalorder %s33, 1
      %p177 = por %p175, %p176
      %p178 = scmp.ne.s32.totalorder %s169, %s170
      %p179 = scmp.eq.s32.totalorder %s33, 0
      %p180 = por %p178, %p179
      %p181 = scmp.ne.s32.totalorder %s169, %s170
      %p182 = scmp.eq.s32.totalorder %s34, 1
      %p183 = por %p181, %p182
      %p185 = scmp.ne.s32.totalorder %s170, %s184
      %p186 = scmp.eq.s32.totalorder %s34, 0
      %p187 = por %p185, %p186
      %s189 = sadd.s32 %s188, 1
      %p192 = scmp.eq.s32.totalorder %s28, 1
      %p193 = scmp.ne.s32.totalorder %s188, %s190
      %p194 = scmp.eq.s32.totalorder %s28, 0
      %p195 = por %p193, %p194
      %p196 = scmp.ne.s32.totalorder %s188, %s190
      %p197 = scmp.eq.s32.totalorder %s33, 1
      %p198 = por %p196, %p197
      %p199 = scmp.ne.s32.totalorder %s190, %s191
      %p200 = scmp.eq.s32.totalorder %s33, 0
      %p201 = por %p199, %p200
      %p202 = scmp.ne.s32.totalorder %s190, %s191
      %p203 = scmp.eq.s32.totalorder %s34, 1
      %p204 = por %p202, %p203
      %p206 = scmp.ne.s32.totalorder %s191, %s205
      %p207 = scmp.eq.s32.totalorder %s34, 0
      %p208 = por %p206, %p207
      %s210 = sadd.s32 %s209, 1
      %p213 = scmp.eq.s32.totalorder %s28, 1
      %p214 = scmp.ne.s32.totalorder %s209, %s211
      %p215 = scmp.eq.s32.totalorder %s28, 0
      %p216 = por %p214, %p215
      %p217 = scmp.ne.s32.totalorder %s209, %s211
      %p218 = scmp.eq.s32.totalorder %s33, 1
      %p219 = por %p217, %p218
      %p220 = scmp.ne.s32.totalorder %s211, %s212
      %p221 = scmp.eq.s32.totalorder %s33, 0
      %p222 = por %p220, %p221
      %p223 = scmp.ne.s32.totalorder %s211, %s212
      %p224 = scmp.eq.s32.totalorder %s34, 1
      %p225 = por %p223, %p224
      %p227 = scmp.ne.s32.totalorder %s212, %s226
      %p228 = scmp.eq.s32.totalorder %s34, 0
      %p229 = por %p227, %p228
      %s231 = sadd.s32 %s230, 1
      %p234 = scmp.eq.s32.totalorder %s28, 1
      %p235 = scmp.ne.s32.totalorder %s230, %s232
      %p236 = scmp.eq.s32.totalorder %s28, 0
      %p237 = por %p235, %p236
      %p238 = scmp.ne.s32.totalorder %s230, %s232
      %p239 = scmp.eq.s32.totalorder %s33, 1
      %p240 = por %p238, %p239
      %p241 = scmp.ne.s32.totalorder %s232, %s233
      %p242 = scmp.eq.s32.totalorder %s33, 0
      %p243 = por %p241, %p242
      %p244 = scmp.ne.s32.totalorder %s232, %s233
      %p245 = scmp.eq.s32.totalorder %s34, 1
      %p246 = por %p244, %p245
      %p248 = scmp.ne.s32.totalorder %s233, %s247
      %p249 = scmp.eq.s32.totalorder %s34, 0
      %p250 = por %p248, %p249
      %s251 = ssub.s32 %s28, %s35
      %p252 = scmp.eq.s32.totalorder %s251, 0
      %s254 = sadd.s32 %s253, 1
      %s255 = scalar_select %p252, %s253, %s254
      %p258 = pneg %p252
      %p259 = scmp.eq.s32.totalorder %s28, 1
      %p260 = por %p258, %p259
      %p261 = scmp.ne.s32.totalorder %s253, %s256
      %p262 = scmp.eq.s32.totalorder %s28, 0
      %p263 = por %p261, %p262
      %p264 = scmp.ne.s32.totalorder %s253, %s256
      %p265 = scmp.eq.s32.totalorder %s33, 1
      %p266 = por %p264, %p265
      %p267 = scmp.ne.s32.totalorder %s256, %s257
      %p268 = scmp.eq.s32.totalorder %s33, 0
      %p269 = por %p267, %p268
      %p270 = scmp.ne.s32.totalorder %s256, %s257
      %p271 = scmp.eq.s32.totalorder %s34, 1
      %p272 = por %p270, %p271
      %p274 = scmp.ne.s32.totalorder %s257, %s273
      %p275 = scmp.eq.s32.totalorder %s34, 0
      %p276 = por %p274, %p275
      %s277 = ssub.s32 %s28, %s35
      %p278 = scmp.eq.s32.totalorder %s277, 0
      %s280 = sadd.s32 %s279, 1
      %s281 = scalar_select %p278, %s279, %s280
      %p284 = pneg %p278
      %p285 = scmp.eq.s32.totalorder %s28, 1
      %p286 = por %p284, %p285
      %p287 = scmp.ne.s32.totalorder %s279, %s282
      %p288 = scmp.eq.s32.totalorder %s28, 0
      %p289 = por %p287, %p288
      %p290 = scmp.ne.s32.totalorder %s279, %s282
      %p291 = scmp.eq.s32.totalorder %s33, 1
      %p292 = por %p290, %p291
      %p293 = scmp.ne.s32.totalorder %s282, %s283
      %p294 = scmp.eq.s32.totalorder %s33, 0
      %p295 = por %p293, %p294
      %p296 = scmp.ne.s32.totalorder %s282, %s283
      %p297 = scmp.eq.s32.totalorder %s34, 1
      %p298 = por %p296, %p297
      %p300 = scmp.ne.s32.totalorder %s283, %s299
      %p301 = scmp.eq.s32.totalorder %s34, 0
      %p302 = por %p300, %p301
      %s303 = ssub.s32 %s28, %s35
      %p304 = scmp.eq.s32.totalorder %s303, 0
      %s306 = sadd.s32 %s305, 1
      %s307 = scalar_select %p304, %s305, %s306
      %p310 = pneg %p304
      %p311 = scmp.eq.s32.totalorder %s28, 1
      %p312 = por %p310, %p311
      %p313 = scmp.ne.s32.totalorder %s305, %s308
      %p314 = scmp.eq.s32.totalorder %s28, 0
      %p315 = por %p313, %p314
      %p316 = scmp.ne.s32.totalorder %s305, %s308
      %p317 = scmp.eq.s32.totalorder %s33, 1
      %p318 = por %p316, %p317
      %p319 = scmp.ne.s32.totalorder %s308, %s309
      %p320 = scmp.eq.s32.totalorder %s33, 0
      %p321 = por %p319, %p320
      %p322 = scmp.ne.s32.totalorder %s308, %s309
      %p323 = scmp.eq.s32.totalorder %s34, 1
      %p324 = por %p322, %p323
      %p326 = scmp.ne.s32.totalorder %s309, %s325
      %p327 = scmp.eq.s32.totalorder %s34, 0
      %p328 = por %p326, %p327
      %p329 = scmp.le.s32.totalorder 1, %s28
      %p330 = scmp.lt.s32.totalorder %s28, 3
      %p331 = pnand %p329, %p330
      %p332 = pneg %p331
      // Predicated region
      $region9: #{tpu_custom_call.1} parent=5 // pred_check
        _
      $region10: #{tpu_custom_call.1} parent=5 // pred_check_branch
        %334 = sbr.rel (%p331) target = $region12
      $region11: #{tpu_custom_call.1} parent=5 // pred_region
        %s335 = ssub.s32 %s28, 1
        // Predicated region
        $region13: #{tpu_custom_call.1} parent=11 // pred_check
          %p336 = pneg %p75
        $region14: #{tpu_custom_call.1} parent=11 // pred_check_branch
          %338 = sbr.rel (%p336) target = $region16
        $region15: #{tpu_custom_call.1} parent=11 // pred_region
          %s340 = ssub.s32 256, 256
          %341 = vsyncadd [#allocation3], %s340
          %s342 = sshll.u32 [#allocation2], 4
          %s343 = int_to_ptr.vmem [resolvable:$true] %s342
          %348 = dma.hbm_to_vmem [thread:$0]  %s1, 256, %s343, [#allocation3], 64, 64, 4
        $region16: #{tpu_custom_call.1} parent=11 // pred_fallthru
          _
        // Predicated region
        $region17: #{tpu_custom_call.1} parent=11 // pred_check
          %p349 = pneg %p96
        $region18: #{tpu_custom_call.1} parent=11 // pred_check_branch
          %351 = sbr.rel (%p349) target = $region20
        $region19: #{tpu_custom_call.1} parent=11 // pred_region
          %s353 = ssub.s32 256, 256
          %354 = vsyncadd [#allocation6], %s353
          %s355 = sshll.u32 [#allocation5], 4
          %s356 = int_to_ptr.vmem [resolvable:$true] %s355
          %361 = dma.hbm_to_vmem [thread:$0]  %s2, 256, %s356, [#allocation6], 64, 64, 4
        $region20: #{tpu_custom_call.1} parent=11 // pred_fallthru
          _
        // Predicated region
        $region21: #{tpu_custom_call.1} parent=11 // pred_check
          %p362 = pneg %p117
        $region22: #{tpu_custom_call.1} parent=11 // pred_check_branch
          %364 = sbr.rel (%p362) target = $region24
        $region23: #{tpu_custom_call.1} parent=11 // pred_region
          %s366 = ssub.s32 256, 256
          %367 = vsyncadd [#allocation6], %s366
          %s368 = sshll.u32 [#allocation7], 4
          %s369 = int_to_ptr.vmem [resolvable:$true] %s368
          %374 = dma.hbm_to_vmem [thread:$0]  %s3, 256, %s369, [#allocation6], 64, 64, 4
        $region24: #{tpu_custom_call.1} parent=11 // pred_fallthru
          _
        // Predicated region
        $region25: #{tpu_custom_call.1} parent=11 // pred_check
          %p375 = pneg %p138
        $region26: #{tpu_custom_call.1} parent=11 // pred_check_branch
          %377 = sbr.rel (%p375) target = $region28
        $region27: #{tpu_custom_call.1} parent=11 // pred_region
          _
        $region28: #{tpu_custom_call.1} parent=11 // pred_fallthru
          _
        // Predicated region
        $region29: #{tpu_custom_call.1} parent=11 // pred_check
          %p378 = pneg %p159
        $region30: #{tpu_custom_call.1} parent=11 // pred_check_branch
          %380 = sbr.rel (%p378) target = $region32
        $region31: #{tpu_custom_call.1} parent=11 // pred_region
          %s382 = ssub.s32 256, 256
          %383 = vsyncadd [#allocation9], %s382
          %s384 = sshll.u32 [#allocation8], 4
          %s385 = int_to_ptr.vmem [resolvable:$true] %s384
          %390 = dma.hbm_to_vmem [thread:$0]  %s5, 256, %s385, [#allocation9], 64, 64, 4
        $region32: #{tpu_custom_call.1} parent=11 // pred_fallthru
          _
        // Predicated region
        $region33: #{tpu_custom_call.1} parent=11 // pred_check
          %p391 = pneg %p180
        $region34: #{tpu_custom_call.1} parent=11 // pred_check_branch
          %393 = sbr.rel (%p391) target = $region36
        $region35: #{tpu_custom_call.1} parent=11 // pred_region
          %s395 = ssub.s32 256, 256
          %396 = vsyncadd [#allocation9], %s395
          %s397 = sshll.u32 [#allocation10], 4
          %s398 = int_to_ptr.vmem [resolvable:$true] %s397
          %403 = dma.hbm_to_vmem [thread:$0]  %s6, 256, %s398, [#allocation9], 64, 64, 4
        $region36: #{tpu_custom_call.1} parent=11 // pred_fallthru
          _
        // Predicated region
        $region37: #{tpu_custom_call.1} parent=11 // pred_check
          %p404 = pneg %p201
        $region38: #{tpu_custom_call.1} parent=11 // pred_check_branch
          %406 = sbr.rel (%p404) target = $region40
        $region39: #{tpu_custom_call.1} parent=11 // pred_region
          %s408 = ssub.s32 16, 16
          %409 = vsyncadd [#allocation12], %s408
          %s411 = sshll.u32 [#allocation11], 4
          %s412 = int_to_ptr.vmem [resolvable:$true] %s411
          %414 = dma.hbm_to_vmem [thread:$0]  %s7, 16, %s412, [#allocation12]
        $region40: #{tpu_custom_call.1} parent=11 // pred_fallthru
          _
        // Predicated region
        $region41: #{tpu_custom_call.1} parent=11 // pred_check
          %p415 = pneg %p222
        $region42: #{tpu_custom_call.1} parent=11 // pred_check_branch
          %417 = sbr.rel (%p415) target = $region44
        $region43: #{tpu_custom_call.1} parent=11 // pred_region
          _
        $region44: #{tpu_custom_call.1} parent=11 // pred_fallthru
          _
        // Predicated region
        $region45: #{tpu_custom_call.1} parent=11 // pred_check
          %p418 = pneg %p243
        $region46: #{tpu_custom_call.1} parent=11 // pred_check_branch
          %420 = sbr.rel (%p418) target = $region48
        $region47: #{tpu_custom_call.1} parent=11 // pred_region
          %s422 = ssub.s32 16, 16
          %423 = vsyncadd [#allocation12], %s422
          %s425 = sshll.u32 [#allocation13], 4
          %s426 = int_to_ptr.vmem [resolvable:$true] %s425
          %428 = dma.hbm_to_vmem [thread:$0]  %s9, 16, %s426, [#allocation12]
        $region48: #{tpu_custom_call.1} parent=11 // pred_fallthru
          _
      $region12: #{tpu_custom_call.1} parent=5 // pred_fallthru
        _
      %p429 = scmp.lt.s32.totalorder %s28, 2
      // Predicated region
      $region49: #{tpu_custom_call.1} parent=5 // pred_check
        %p430 = pneg %p429
      $region50: #{tpu_custom_call.1} parent=5 // pred_check_branch
        %432 = sbr.rel (%p430) target = $region52
      $region51: #{tpu_custom_call.1} parent=5 // pred_region
        // Predicated region
        $region53: #{tpu_custom_call.1} parent=51 // pred_check
          %p433 = pneg %p48
        $region54: #{tpu_custom_call.1} parent=51 // pred_check_branch
          %435 = sbr.rel (%p433) target = $region56
        $region55: #{tpu_custom_call.1} parent=51 // pred_region
          %p436 = scmp.lt.s32.totalorder %s28, 1
          %s437 = scalar_select %p436, %s28, 1
          %s438 = smul.addr %s437, 8
          %s439 = scalar_lea.vmem %s0, %s438
        $region56: #{tpu_custom_call.1} parent=51 // pred_fallthru
          _
        // Predicated region
        $region57: #{tpu_custom_call.1} parent=51 // pred_check
          %p440 = pneg %p263
        $region58: #{tpu_custom_call.1} parent=51 // pred_check_branch
          %442 = sbr.rel (%p440) target = $region60
        $region59: #{tpu_custom_call.1} parent=51 // pred_region
          %s443 = sand.u32 %s253, 1
          %s444 = scalar_lea.sflag [#allocation15], %s443
          %s445 = sand.u32 %s253, 1
          %s446 = smul.addr %s445, 16
          %s447 = scalar_lea.vmem [#allocation14], %s446
          %s449 = ssub.s32 256, 256
          %450 = vsyncadd %s444, %s449
          %s451 = smul.addr %s28, 128
          %s452 = scalar_lea.hbm %s10, %s451
          %s453 = sshll.u32 %s447, 4
          %s454 = int_to_ptr.vmem [resolvable:$true] %s453
          %459 = dma.hbm_to_vmem [thread:$0]  %s452, 256, %s454, %s444, 256, 128, 8
        $region60: #{tpu_custom_call.1} parent=51 // pred_fallthru
          _
        // Predicated region
        $region61: #{tpu_custom_call.1} parent=51 // pred_check
          %p460 = pneg %p289
        $region62: #{tpu_custom_call.1} parent=51 // pred_check_branch
          %462 = sbr.rel (%p460) target = $region64
        $region63: #{tpu_custom_call.1} parent=51 // pred_region
          %s463 = sand.u32 %s279, 1
          %s464 = sand.u32 %s279, 1
          %s465 = smul.addr %s464, 16
          %s466 = scalar_lea.vmem [#allocation16], %s465
          %s467 = smul.addr %s28, 8
          %s468 = scalar_lea.vmem %s11, %s467
          // Predicated region
          $region65: #{tpu_custom_call.1} parent=63 // pred_check
            _
          $region66: #{tpu_custom_call.1} parent=63 // pred_check_branch
            %470 = sbr.rel (0) target = $region68
          $region67: #{tpu_custom_call.1} parent=63 // pred_region
            // Predicated region
            $region69: #{tpu_custom_call.1} parent=67 // pred_check
              _
            $region70: #{tpu_custom_call.1} parent=67 // pred_check_branch
              %472 = sbr.rel (0) target = $region72
            $region71: #{tpu_custom_call.1} parent=67 // pred_region
              // Predicated region
              $region84: #{tpu_custom_call.1} parent=71 // pred_check
                _
              $region85: #{tpu_custom_call.1} parent=71 // pred_check_branch
                %489 = sbr.rel (0) target = $region87
              $region86: #{tpu_custom_call.1} parent=71 // pred_region
                loop: start=0, step=1, limit=1
                $region88: #{tpu_custom_call.1} parent=86 // loop_pre_header
                  _
                $region89: #{tpu_custom_call.1} parent=86 // loop_header
                  %s491 = sphi 0, %s495
                  %p492 = scmp.ge.s32.totalorder %s491, 1
                  %s496 = sphi %s468, %s468
                  %s497 = sphi %s466, %s466
                $region90: #{tpu_custom_call.1} parent=86 // loop_header_branch
                  %494 = sbr.rel (%p492) target = $region94
                $region91: #{tpu_custom_call.1} parent=86 // loop_body
                  %v498 = vld [vmem:[%s496] sm:$0xff]
                  %499 = vst [vmem:[%s497] sm:$0xff] %v498
                  %v500 = vld [vmem:[%s496 + $0x10] sm:$0xff]
                  %501 = vst [vmem:[%s497 + $0x8] sm:$0xff] %v500
                $region92: #{tpu_custom_call.1} parent=86 // loop_footer
                  %s495 = sadd.s32 1, %s491
                $region93: #{tpu_custom_call.1} parent=86 // loop_footer_branch
                  %490 = sbr.rel target = $region89
                $region94: #{tpu_custom_call.1} parent=86 // loop_exit
                  _
              $region87: #{tpu_custom_call.1} parent=71 // pred_fallthru
                _
              // Predicated region
              $region95: #{tpu_custom_call.1} parent=71 // pred_check
                _
              $region96: #{tpu_custom_call.1} parent=71 // pred_check_branch
                %503 = sbr.rel target = $region98
              $region97: #{tpu_custom_call.1} parent=71 // pred_region
                _
              $region98: #{tpu_custom_call.1} parent=71 // pred_fallthru
                _
            $region72: #{tpu_custom_call.1} parent=67 // pred_fallthru
              _
            // Predicated region
            $region73: #{tpu_custom_call.1} parent=67 // pred_check
              _
            $region74: #{tpu_custom_call.1} parent=67 // pred_check_branch
              %474 = sbr.rel target = $region76
            $region75: #{tpu_custom_call.1} parent=67 // pred_region
              loop: start=0, step=1, limit=1
              $region77: #{tpu_custom_call.1} parent=75 // loop_pre_header
                _
              $region78: #{tpu_custom_call.1} parent=75 // loop_header
                %s477 = sphi 0, %s481
                %p478 = scmp.ge.s32.totalorder %s477, 1
                %s482 = sphi %s468, %s468
                %s483 = sphi %s466, %s466
              $region79: #{tpu_custom_call.1} parent=75 // loop_header_branch
                %480 = sbr.rel (%p478) target = $region83
              $region80: #{tpu_custom_call.1} parent=75 // loop_body
                %v484 = vld [vmem:[%s482] sm:$0xff]
                %485 = vst [vmem:[%s483] sm:$0xff] %v484
                %v486 = vld [vmem:[%s482 + $0x10] sm:$0xff]
                %487 = vst [vmem:[%s483 + $0x8] sm:$0xff] %v486
              $region81: #{tpu_custom_call.1} parent=75 // loop_footer
                %s481 = sadd.s32 1, %s477
              $region82: #{tpu_custom_call.1} parent=75 // loop_footer_branch
                %476 = sbr.rel target = $region78
              $region83: #{tpu_custom_call.1} parent=75 // loop_exit
                _
            $region76: #{tpu_custom_call.1} parent=67 // pred_fallthru
              _
          $region68: #{tpu_custom_call.1} parent=63 // pred_fallthru
            _
          %504 = vnop
        $region64: #{tpu_custom_call.1} parent=51 // pred_fallthru
          _
      $region52: #{tpu_custom_call.1} parent=5 // pred_fallthru
        _
      %p505 = scmp.le.s32.totalorder 1, %s28
      %p506 = scmp.lt.s32.totalorder %s28, 3
      %p507 = pnand %p505, %p506
      %p508 = pneg %p507
      // Predicated region
      $region99: #{tpu_custom_call.1} parent=5 // pred_check
        _
      $region100: #{tpu_custom_call.1} parent=5 // pred_check_branch
        %510 = sbr.rel (%p507) target = $region102
      $region101: #{tpu_custom_call.1} parent=5 // pred_region
        %s511 = ssub.s32 %s28, 1
        // Predicated region
        $region103: #{tpu_custom_call.1} parent=101 // pred_check
          %p512 = pneg %p75
        $region104: #{tpu_custom_call.1} parent=101 // pred_check_branch
          %514 = sbr.rel (%p512) target = $region106
        $region105: #{tpu_custom_call.1} parent=101 // pred_region
          %515 = dma.done [#allocation3], 256
        $region106: #{tpu_custom_call.1} parent=101 // pred_fallthru
          _
        // Predicated region
        $region107: #{tpu_custom_call.1} parent=101 // pred_check
          %p516 = pneg %p96
        $region108: #{tpu_custom_call.1} parent=101 // pred_check_branch
          %518 = sbr.rel (%p516) target = $region110
        $region109: #{tpu_custom_call.1} parent=101 // pred_region
          %519 = dma.done [#allocation6], 256
        $region110: #{tpu_custom_call.1} parent=101 // pred_fallthru
          _
        // Predicated region
        $region111: #{tpu_custom_call.1} parent=101 // pred_check
          %p520 = pneg %p117
        $region112: #{tpu_custom_call.1} parent=101 // pred_check_branch
          %522 = sbr.rel (%p520) target = $region114
        $region113: #{tpu_custom_call.1} parent=101 // pred_region
          %523 = dma.done [#allocation6], 256
        $region114: #{tpu_custom_call.1} parent=101 // pred_fallthru
          _
        // Predicated region
        $region115: #{tpu_custom_call.1} parent=101 // pred_check
          %p524 = pneg %p159
        $region116: #{tpu_custom_call.1} parent=101 // pred_check_branch
          %526 = sbr.rel (%p524) target = $region118
        $region117: #{tpu_custom_call.1} parent=101 // pred_region
          %527 = dma.done [#allocation9], 256
        $region118: #{tpu_custom_call.1} parent=101 // pred_fallthru
          _
        // Predicated region
        $region119: #{tpu_custom_call.1} parent=101 // pred_check
          %p528 = pneg %p180
        $region120: #{tpu_custom_call.1} parent=101 // pred_check_branch
          %530 = sbr.rel (%p528) target = $region122
        $region121: #{tpu_custom_call.1} parent=101 // pred_region
          %531 = dma.done [#allocation9], 256
        $region122: #{tpu_custom_call.1} parent=101 // pred_fallthru
          _
        // Predicated region
        $region123: #{tpu_custom_call.1} parent=101 // pred_check
          %p532 = pneg %p201
        $region124: #{tpu_custom_call.1} parent=101 // pred_check_branch
          %534 = sbr.rel (%p532) target = $region126
        $region125: #{tpu_custom_call.1} parent=101 // pred_region
          %535 = dma.done [#allocation12], 16
        $region126: #{tpu_custom_call.1} parent=101 // pred_fallthru
          _
        // Predicated region
        $region127: #{tpu_custom_call.1} parent=101 // pred_check
          %p536 = pneg %p243
        $region128: #{tpu_custom_call.1} parent=101 // pred_check_branch
          %538 = sbr.rel (%p536) target = $region130
        $region129: #{tpu_custom_call.1} parent=101 // pred_region
          %539 = dma.done [#allocation12], 16
        $region130: #{tpu_custom_call.1} parent=101 // pred_fallthru
          _
        %s540 = sand.u32 %s256, 1
        %s541 = scalar_lea.sflag [#allocation15], %s540
        %s542 = sand.u32 %s256, 1
        %s543 = smul.addr %s542, 16
        %s544 = scalar_lea.vmem [#allocation14], %s543
        // Predicated region
        $region131: #{tpu_custom_call.1} parent=101 // pred_check
          %p545 = pneg %p269
        $region132: #{tpu_custom_call.1} parent=101 // pred_check_branch
          %547 = sbr.rel (%p545) target = $region134
        $region133: #{tpu_custom_call.1} parent=101 // pred_region
          %548 = dma.done %s541, 256
        $region134: #{tpu_custom_call.1} parent=101 // pred_fallthru
          _
        %s549 = sand.u32 %s282, 1
        %s550 = sand.u32 %s282, 1
        %s551 = smul.addr %s550, 16
        %s552 = scalar_lea.vmem [#allocation16], %s551
        // Predicated region
        $region135: #{tpu_custom_call.1} parent=101 // pred_check
          %p553 = pneg %p295
        $region136: #{tpu_custom_call.1} parent=101 // pred_check_branch
          %555 = sbr.rel (%p553) target = $region138
        $region137: #{tpu_custom_call.1} parent=101 // pred_region
          _
        $region138: #{tpu_custom_call.1} parent=101 // pred_fallthru
          _
        %p556 = scmp.lt.s32.totalorder %s33, 1
        %s557 = scalar_select %p556, %s33, 1
        %s558 = smul.addr %s557, 8
        %s559 = scalar_lea.vmem %s0, %s558
        %p560 = pneg %p54
        %p561 = pneg %p51
        %p562 = pneg %p75
        %p563 = pneg %p72
        %p564 = pneg %p96
        %p565 = pneg %p93
        %p566 = pneg %p117
        %p567 = pneg %p114
        %p568 = pneg %p138
        %p569 = pneg %p135
        %p570 = pneg %p159
        %p571 = pneg %p156
        %p572 = pneg %p180
        %p573 = pneg %p177
        %p574 = pneg %p201
        %p575 = pneg %p198
        %p576 = pneg %p222
        %p577 = pneg %p219
        %p578 = pneg %p243
        %p579 = pneg %p240
        %s580 = sand.u32 %s256, 1
        %s581 = scalar_lea.sflag [#allocation15], %s580
        %s582 = sand.u32 %s256, 1
        %s583 = smul.addr %s582, 16
        %s584 = scalar_lea.vmem [#allocation14], %s583
        %p585 = pneg %p269
        %p586 = pneg %p266
        %s587 = sand.u32 %s282, 1
        %s588 = sand.u32 %s282, 1
        %s589 = smul.addr %s588, 16
        %s590 = scalar_lea.vmem [#allocation16], %s589
        %p591 = pneg %p295
        %p592 = pneg %p292
        %p593 = pneg %p321
        %p594 = pneg %p318
        %s595 = sand.u32 %s308, 1
        %s596 = scalar_lea.sflag [#allocation4], %s595
        %s597 = sand.u32 %s308, 1
        %s598 = smul.addr %s597, 64
        %s599 = scalar_lea.vmem [#allocation17], %s598
        %p600 = scmp.lt.s32.totalorder %s33, 1
        %s601 = scalar_select %p600, %s33, 1
        %s602 = smul.addr %s601, 8
        %s603 = scalar_lea.vmem %s0, %s602
        %v605 = vld [vmem:[%s603] sm:$0xff]
        %v606 = vld [vmem:[#allocation2] sm:$0xf]
        %v607 = vld [vmem:[#allocation2 + $0x4] sm:$0xf]
        %v608 = vld [vmem:[#allocation2 + $0x8] sm:$0xf]
        %v609 = vld [vmem:[#allocation2 + $0xc] sm:$0xf]
        %v610 = vlaneseq
        %v611 = vand.u32 %v610, 127
        %612 = vset.pattern.permute.xlu0 0
        %613 = vperm.xlu0 %612, %v605
        %v614 = vpop.permute.xlu0 %613
        %vm615 = vcmp.eq.s32.totalorder %v614, %v611
        %v616 = vsel %vm615, 1, 0
        %v617 = vcvt.s32.f32 %v616
        %v618 = vpack.c.bf16 %v617, %v617
        %v623 = vunpack.c.l.b16 %v606
        %v624 = vunpack.c.l.b16 %v607
        %v625 = vunpack.c.l.b16 %v608
        %v626 = vunpack.c.l.b16 %v609
        %v627 = vpack.c.b16 %v624, %v623
        %v628 = vpack.c.b16 %v626, %v625
        %vm631 = vcmask 261120
        %v633 = vsel %vm631, %v618, 0
        %635 = vmatprep.subr.bf16.mxu0 0
        %636 = vmatpush1.bf16.msra.mxu0 %v627
        %637 = vmatprep.subr.bf16.mxu0 0
        %638 = vmatpush1.bf16.msra.mxu0 %v628
        %639 = vmatprep.subr.bf16.mxu0 0
        %640 = vmatpush1.bf16.msra.mxu0 0
        %641 = vmatprep.subr.bf16.mxu0 0
        %642 = vmatpush1.bf16.msra.mxu0 0
        %643 = vmatprep.subr.bf16.mxu0 0
        %644 = vmatpush1.bf16.msra.mxu0 0
        %645 = vmatprep.subr.bf16.mxu0 0
        %646 = vmatpush1.bf16.msra.mxu0 0
        %647 = vmatprep.subr.bf16.mxu0 0
        %648 = vmatpush1.bf16.msra.mxu0 0
        %649 = vmatprep.subr.bf16.mxu0 0
        %650 = vmatpush1.bf16.msra.mxu0 0
        %651 = vmatprep.subr.bf16.mxu0 0
        %652 = vmatpush1.bf16.msra.mxu0 0
        %653 = vmatprep.subr.bf16.mxu0 0
        %654 = vmatpush1.bf16.msra.mxu0 0
        %655 = vmatprep.subr.bf16.mxu0 0
        %656 = vmatpush1.bf16.msra.mxu0 0
        %657 = vmatprep.subr.bf16.mxu0 0
        %658 = vmatpush1.bf16.msra.mxu0 0
        %659 = vmatprep.subr.bf16.mxu0 0
        %660 = vmatpush1.bf16.msra.mxu0 0
        %661 = vmatprep.subr.bf16.mxu0 0
        %662 = vmatpush1.bf16.msra.mxu0 0
        %663 = vmatprep.subr.bf16.mxu0 0
        %664 = vmatpush1.bf16.msra.mxu0 0
        %665 = vmatprep.subr.bf16.mxu0 0
        %666 = vmatpush1.bf16.msra.mxu0 0
        %667 = vmatprep.mubr.bf16.mxu0 0
        %668 = vmatmul.mubr.bf16.gmra.mrb[0].mxu0 %v633
        %v669 = vpop.f32.mrb[0].mxu0
        %v670 = vadd.f32 0.0, %v669
        %v671 = vpop.f32.mrb[0].mxu0
        %v672 = vpop.f32.mrb[0].mxu0
        %v673 = vpop.f32.mrb[0].mxu0
        %674 = vdwg.mxu0
        %675 = vset.pattern.permute.xlu0 1
        %676 = vperm.xlu0 %675, %v605
        %v677 = vpop.permute.xlu0 %676
        %vm678 = vcmp.eq.s32.totalorder %v677, %v611
        %v679 = vsel %vm678, 1, 0
        %v680 = vcvt.s32.f32 %v679
        %v681 = vpack.c.bf16 %v680, %v680
        %v683 = vsel %vm631, %v681, 0
        %685 = vmatprep.subr.bf16.mxu0 0
        %686 = vmatpush1.bf16.msra.mxu0 %v627
        %687 = vmatprep.subr.bf16.mxu0 0
        %688 = vmatpush1.bf16.msra.mxu0 %v628
        %689 = vmatprep.subr.bf16.mxu0 0
        %690 = vmatpush1.bf16.msra.mxu0 0
        %691 = vmatprep.subr.bf16.mxu0 0
        %692 = vmatpush1.bf16.msra.mxu0 0
        %693 = vmatprep.subr.bf16.mxu0 0
        %694 = vmatpush1.bf16.msra.mxu0 0
        %695 = vmatprep.subr.bf16.mxu0 0
        %696 = vmatpush1.bf16.msra.mxu0 0
        %697 = vmatprep.subr.bf16.mxu0 0
        %698 = vmatpush1.bf16.msra.mxu0 0
        %699 = vmatprep.subr.bf16.mxu0 0
        %700 = vmatpush1.bf16.msra.mxu0 0
        %701 = vmatprep.subr.bf16.mxu0 0
        %702 = vmatpush1.bf16.msra.mxu0 0
        %703 = vmatprep.subr.bf16.mxu0 0
        %704 = vmatpush1.bf16.msra.mxu0 0
        %705 = vmatprep.subr.bf16.mxu0 0
        %706 = vmatpush1.bf16.msra.mxu0 0
        %707 = vmatprep.subr.bf16.mxu0 0
        %708 = vmatpush1.bf16.msra.mxu0 0
        %709 = vmatprep.subr.bf16.mxu0 0
        %710 = vmatpush1.bf16.msra.mxu0 0
        %711 = vmatprep.subr.bf16.mxu0 0
        %712 = vmatpush1.bf16.msra.mxu0 0
        %713 = vmatprep.subr.bf16.mxu0 0
        %714 = vmatpush1.bf16.msra.mxu0 0
        %715 = vmatprep.subr.bf16.mxu0 0
        %716 = vmatpush1.bf16.msra.mxu0 0
        %717 = vmatprep.mubr.bf16.mxu0 0
        %718 = vmatmul.mubr.bf16.gmra.mrb[0].mxu0 %v683
        %v719 = vpop.f32.mrb[0].mxu0
        %v720 = vadd.f32 0.0, %v719
        %v721 = vpop.f32.mrb[0].mxu0
        %v722 = vpop.f32.mrb[0].mxu0
        %v723 = vpop.f32.mrb[0].mxu0
        %724 = vdwg.mxu0
        %725 = vset.pattern.permute.xlu0 2
        %726 = vperm.xlu0 %725, %v605
        %v727 = vpop.permute.xlu0 %726
        %vm728 = vcmp.eq.s32.totalorder %v727, %v611
        %v729 = vsel %vm728, 1, 0
        %v730 = vcvt.s32.f32 %v729
        %v731 = vpack.c.bf16 %v730, %v730
        %v733 = vsel %vm631, %v731, 0
        %735 = vmatprep.subr.bf16.mxu0 0
        %736 = vmatpush1.bf16.msra.mxu0 %v627
        %737 = vmatprep.subr.bf16.mxu0 0
        %738 = vmatpush1.bf16.msra.mxu0 %v628
        %739 = vmatprep.subr.bf16.mxu0 0
        %740 = vmatpush1.bf16.msra.mxu0 0
        %741 = vmatprep.subr.bf16.mxu0 0
        %742 = vmatpush1.bf16.msra.mxu0 0
        %743 = vmatprep.subr.bf16.mxu0 0
        %744 = vmatpush1.bf16.msra.mxu0 0
        %745 = vmatprep.subr.bf16.mxu0 0
        %746 = vmatpush1.bf16.msra.mxu0 0
        %747 = vmatprep.subr.bf16.mxu0 0
        %748 = vmatpush1.bf16.msra.mxu0 0
        %749 = vmatprep.subr.bf16.mxu0 0
        %750 = vmatpush1.bf16.msra.mxu0 0
        %751 = vmatprep.subr.bf16.mxu0 0
        %752 = vmatpush1.bf16.msra.mxu0 0
        %753 = vmatprep.subr.bf16.mxu0 0
        %754 = vmatpush1.bf16.msra.mxu0 0
        %755 = vmatprep.subr.bf16.mxu0 0
        %756 = vmatpush1.bf16.msra.mxu0 0
        %757 = vmatprep.subr.bf16.mxu0 0
        %758 = vmatpush1.bf16.msra.mxu0 0
        %759 = vmatprep.subr.bf16.mxu0 0
        %760 = vmatpush1.bf16.msra.mxu0 0
        %761 = vmatprep.subr.bf16.mxu0 0
        %762 = vmatpush1.bf16.msra.mxu0 0
        %763 = vmatprep.subr.bf16.mxu0 0
        %764 = vmatpush1.bf16.msra.mxu0 0
        %765 = vmatprep.subr.bf16.mxu0 0
        %766 = vmatpush1.bf16.msra.mxu0 0
        %767 = vmatprep.mubr.bf16.mxu0 0
        %768 = vmatmul.mubr.bf16.gmra.mrb[0].mxu0 %v733
        %v769 = vpop.f32.mrb[0].mxu0
        %v770 = vadd.f32 0.0, %v769
        %v771 = vpop.f32.mrb[0].mxu0
        %v772 = vpop.f32.mrb[0].mxu0
        %v773 = vpop.f32.mrb[0].mxu0
        %774 = vdwg.mxu0
        %775 = vset.pattern.permute.xlu0 3
        %776 = vperm.xlu0 %775, %v605
        %v777 = vpop.permute.xlu0 %776
        %vm778 = vcmp.eq.s32.totalorder %v777, %v611
        %v779 = vsel %vm778, 1, 0
        %v780 = vcvt.s32.f32 %v779
        %v781 = vpack.c.bf16 %v780, %v780
        %v783 = vsel %vm631, %v781, 0
        %785 = vmatprep.subr.bf16.mxu0 0
        %786 = vmatpush1.bf16.msra.mxu0 %v627
        %787 = vmatprep.subr.bf16.mxu0 0
        %788 = vmatpush1.bf16.msra.mxu0 %v628
        %789 = vmatprep.subr.bf16.mxu0 0
        %790 = vmatpush1.bf16.msra.mxu0 0
        %791 = vmatprep.subr.bf16.mxu0 0
        %792 = vmatpush1.bf16.msra.mxu0 0
        %793 = vmatprep.subr.bf16.mxu0 0
        %794 = vmatpush1.bf16.msra.mxu0 0
        %795 = vmatprep.subr.bf16.mxu0 0
        %796 = vmatpush1.bf16.msra.mxu0 0
        %797 = vmatprep.subr.bf16.mxu0 0
        %798 = vmatpush1.bf16.msra.mxu0 0
        %799 = vmatprep.subr.bf16.mxu0 0
        %800 = vmatpush1.bf16.msra.mxu0 0
        %801 = vmatprep.subr.bf16.mxu0 0
        %802 = vmatpush1.bf16.msra.mxu0 0
        %803 = vmatprep.subr.bf16.mxu0 0
        %804 = vmatpush1.bf16.msra.mxu0 0
        %805 = vmatprep.subr.bf16.mxu0 0
        %806 = vmatpush1.bf16.msra.mxu0 0
        %807 = vmatprep.subr.bf16.mxu0 0
        %808 = vmatpush1.bf16.msra.mxu0 0
        %809 = vmatprep.subr.bf16.mxu0 0
        %810 = vmatpush1.bf16.msra.mxu0 0
        %811 = vmatprep.subr.bf16.mxu0 0
        %812 = vmatpush1.bf16.msra.mxu0 0
        %813 = vmatprep.subr.bf16.mxu0 0
        %814 = vmatpush1.bf16.msra.mxu0 0
        %815 = vmatprep.subr.bf16.mxu0 0
        %816 = vmatpush1.bf16.msra.mxu0 0
        %817 = vmatprep.mubr.bf16.mxu0 0
        %818 = vmatmul.mubr.bf16.gmra.mrb[0].mxu0 %v783
        %v819 = vpop.f32.mrb[0].mxu0
        %v820 = vadd.f32 0.0, %v819
        %v821 = vpop.f32.mrb[0].mxu0
        %v822 = vpop.f32.mrb[0].mxu0
        %v823 = vpop.f32.mrb[0].mxu0
        %824 = vdwg.mxu0
        %825 = vset.pattern.permute.xlu0 4
        %826 = vperm.xlu0 %825, %v605
        %v827 = vpop.permute.xlu0 %826
        %vm828 = vcmp.eq.s32.totalorder %v827, %v611
        %v829 = vsel %vm828, 1, 0
        %v830 = vcvt.s32.f32 %v829
        %v831 = vpack.c.bf16 %v830, %v830
        %v833 = vsel %vm631, %v831, 0
        %835 = vmatprep.subr.bf16.mxu0 0
        %836 = vmatpush1.bf16.msra.mxu0 %v627
        %837 = vmatprep.subr.bf16.mxu0 0
        %838 = vmatpush1.bf16.msra.mxu0 %v628
        %839 = vmatprep.subr.bf16.mxu0 0
        %840 = vmatpush1.bf16.msra.mxu0 0
        %841 = vmatprep.subr.bf16.mxu0 0
        %842 = vmatpush1.bf16.msra.mxu0 0
        %843 = vmatprep.subr.bf16.mxu0 0
        %844 = vmatpush1.bf16.msra.mxu0 0
        %845 = vmatprep.subr.bf16.mxu0 0
        %846 = vmatpush1.bf16.msra.mxu0 0
        %847 = vmatprep.subr.bf16.mxu0 0
        %848 = vmatpush1.bf16.msra.mxu0 0
        %849 = vmatprep.subr.bf16.mxu0 0
        %850 = vmatpush1.bf16.msra.mxu0 0
        %851 = vmatprep.subr.bf16.mxu0 0
        %852 = vmatpush1.bf16.msra.mxu0 0
        %853 = vmatprep.subr.bf16.mxu0 0
        %854 = vmatpush1.bf16.msra.mxu0 0
        %855 = vmatprep.subr.bf16.mxu0 0
        %856 = vmatpush1.bf16.msra.mxu0 0
        %857 = vmatprep.subr.bf16.mxu0 0
        %858 = vmatpush1.bf16.msra.mxu0 0
        %859 = vmatprep.subr.bf16.mxu0 0
        %860 = vmatpush1.bf16.msra.mxu0 0
        %861 = vmatprep.subr.bf16.mxu0 0
        %862 = vmatpush1.bf16.msra.mxu0 0
        %863 = vmatprep.subr.bf16.mxu0 0
        %864 = vmatpush1.bf16.msra.mxu0 0
        %865 = vmatprep.subr.bf16.mxu0 0
        %866 = vmatpush1.bf16.msra.mxu0 0
        %867 = vmatprep.mubr.bf16.mxu0 0
        %868 = vmatmul.mubr.bf16.gmra.mrb[0].mxu0 %v833
        %v869 = vpop.f32.mrb[0].mxu0
        %v870 = vadd.f32 0.0, %v869
        %v871 = vpop.f32.mrb[0].mxu0
        %v872 = vpop.f32.mrb[0].mxu0
        %v873 = vpop.f32.mrb[0].mxu0
        %874 = vdwg.mxu0
        %875 = vset.pattern.permute.xlu0 5
        %876 = vperm.xlu0 %875, %v605
        %v877 = vpop.permute.xlu0 %876
        %vm878 = vcmp.eq.s32.totalorder %v877, %v611
        %v879 = vsel %vm878, 1, 0
        %v880 = vcvt.s32.f32 %v879
        %v881 = vpack.c.bf16 %v880, %v880
        %v883 = vsel %vm631, %v881, 0
        %885 = vmatprep.subr.bf16.mxu0 0
        %886 = vmatpush1.bf16.msra.mxu0 %v627
        %887 = vmatprep.subr.bf16.mxu0 0
        %888 = vmatpush1.bf16.msra.mxu0 %v628
        %889 = vmatprep.subr.bf16.mxu0 0
        %890 = vmatpush1.bf16.msra.mxu0 0
        %891 = vmatprep.subr.bf16.mxu0 0
        %892 = vmatpush1.bf16.msra.mxu0 0
        %893 = vmatprep.subr.bf16.mxu0 0
        %894 = vmatpush1.bf16.msra.mxu0 0
        %895 = vmatprep.subr.bf16.mxu0 0
        %896 = vmatpush1.bf16.msra.mxu0 0
        %897 = vmatprep.subr.bf16.mxu0 0
        %898 = vmatpush1.bf16.msra.mxu0 0
        %899 = vmatprep.subr.bf16.mxu0 0
        %900 = vmatpush1.bf16.msra.mxu0 0
        %901 = vmatprep.subr.bf16.mxu0 0
        %902 = vmatpush1.bf16.msra.mxu0 0
        %903 = vmatprep.subr.bf16.mxu0 0
        %904 = vmatpush1.bf16.msra.mxu0 0
        %905 = vmatprep.subr.bf16.mxu0 0
        %906 = vmatpush1.bf16.msra.mxu0 0
        %907 = vmatprep.subr.bf16.mxu0 0
        %908 = vmatpush1.bf16.msra.mxu0 0
        %909 = vmatprep.subr.bf16.mxu0 0
        %910 = vmatpush1.bf16.msra.mxu0 0
        %911 = vmatprep.subr.bf16.mxu0 0
        %912 = vmatpush1.bf16.msra.mxu0 0
        %913 = vmatprep.subr.bf16.mxu0 0
        %914 = vmatpush1.bf16.msra.mxu0 0
        %915 = vmatprep.subr.bf16.mxu0 0
        %916 = vmatpush1.bf16.msra.mxu0 0
        %917 = vmatprep.mubr.bf16.mxu0 0
        %918 = vmatmul.mubr.bf16.gmra.mrb[0].mxu0 %v883
        %v919 = vpop.f32.mrb[0].mxu0
        %v920 = vadd.f32 0.0, %v919
        %v921 = vpop.f32.mrb[0].mxu0
        %v922 = vpop.f32.mrb[0].mxu0
        %v923 = vpop.f32.mrb[0].mxu0
        %924 = vdwg.mxu0
        %925 = vset.pattern.permute.xlu0 6
        %926 = vperm.xlu0 %925, %v605
        %v927 = vpop.permute.xlu0 %926
        %vm928 = vcmp.eq.s32.totalorder %v927, %v611
        %v929 = vsel %vm928, 1, 0
        %v930 = vcvt.s32.f32 %v929
        %v931 = vpack.c.bf16 %v930, %v930
        %v933 = vsel %vm631, %v931, 0
        %935 = vmatprep.subr.bf16.mxu0 0
        %936 = vmatpush1.bf16.msra.mxu0 %v627
        %937 = vmatprep.subr.bf16.mxu0 0
        %938 = vmatpush1.bf16.msra.mxu0 %v628
        %939 = vmatprep.subr.bf16.mxu0 0
        %940 = vmatpush1.bf16.msra.mxu0 0
        %941 = vmatprep.subr.bf16.mxu0 0
        %942 = vmatpush1.bf16.msra.mxu0 0
        %943 = vmatprep.subr.bf16.mxu0 0
        %944 = vmatpush1.bf16.msra.mxu0 0
        %945 = vmatprep.subr.bf16.mxu0 0
        %946 = vmatpush1.bf16.msra.mxu0 0
        %947 = vmatprep.subr.bf16.mxu0 0
        %948 = vmatpush1.bf16.msra.mxu0 0
        %949 = vmatprep.subr.bf16.mxu0 0
        %950 = vmatpush1.bf16.msra.mxu0 0
        %951 = vmatprep.subr.bf16.mxu0 0
        %952 = vmatpush1.bf16.msra.mxu0 0
        %953 = vmatprep.subr.bf16.mxu0 0
        %954 = vmatpush1.bf16.msra.mxu0 0
        %955 = vmatprep.subr.bf16.mxu0 0
        %956 = vmatpush1.bf16.msra.mxu0 0
        %957 = vmatprep.subr.bf16.mxu0 0
        %958 = vmatpush1.bf16.msra.mxu0 0
        %959 = vmatprep.subr.bf16.mxu0 0
        %960 = vmatpush1.bf16.msra.mxu0 0
        %961 = vmatprep.subr.bf16.mxu0 0
        %962 = vmatpush1.bf16.msra.mxu0 0
        %963 = vmatprep.subr.bf16.mxu0 0
        %964 = vmatpush1.bf16.msra.mxu0 0
        %965 = vmatprep.subr.bf16.mxu0 0
        %966 = vmatpush1.bf16.msra.mxu0 0
        %967 = vmatprep.mubr.bf16.mxu0 0
        %968 = vmatmul.mubr.bf16.gmra.mrb[0].mxu0 %v933
        %v969 = vpop.f32.mrb[0].mxu0
        %v970 = vadd.f32 0.0, %v969
        %v971 = vpop.f32.mrb[0].mxu0
        %v972 = vpop.f32.mrb[0].mxu0
        %v973 = vpop.f32.mrb[0].mxu0
        %974 = vdwg.mxu0
        %975 = vset.pattern.permute.xlu0 7
        %976 = vperm.xlu0 %975, %v605
        %v977 = vpop.permute.xlu0 %976
        %vm978 = vcmp.eq.s32.totalorder %v977, %v611
        %v979 = vsel %vm978, 1, 0
        %v980 = vcvt.s32.f32 %v979
        %v981 = vpack.c.bf16 %v980, %v980
        %v983 = vsel %vm631, %v981, 0
        %985 = vmatprep.subr.bf16.mxu0 0
        %986 = vmatpush1.bf16.msra.mxu0 %v627
        %987 = vmatprep.subr.bf16.mxu0 0
        %988 = vmatpush1.bf16.msra.mxu0 %v628
        %989 = vmatprep.subr.bf16.mxu0 0
        %990 = vmatpush1.bf16.msra.mxu0 0
        %991 = vmatprep.subr.bf16.mxu0 0
        %992 = vmatpush1.bf16.msra.mxu0 0
        %993 = vmatprep.subr.bf16.mxu0 0
        %994 = vmatpush1.bf16.msra.mxu0 0
        %995 = vmatprep.subr.bf16.mxu0 0
        %996 = vmatpush1.bf16.msra.mxu0 0
        %997 = vmatprep.subr.bf16.mxu0 0
        %998 = vmatpush1.bf16.msra.mxu0 0
        %999 = vmatprep.subr.bf16.mxu0 0
        %1000 = vmatpush1.bf16.msra.mxu0 0
        %1001 = vmatprep.subr.bf16.mxu0 0
        %1002 = vmatpush1.bf16.msra.mxu0 0
        %1003 = vmatprep.subr.bf16.mxu0 0
        %1004 = vmatpush1.bf16.msra.mxu0 0
        %1005 = vmatprep.subr.bf16.mxu0 0
        %1006 = vmatpush1.bf16.msra.mxu0 0
        %1007 = vmatprep.subr.bf16.mxu0 0
        %1008 = vmatpush1.bf16.msra.mxu0 0
        %1009 = vmatprep.subr.bf16.mxu0 0
        %1010 = vmatpush1.bf16.msra.mxu0 0
        %1011 = vmatprep.subr.bf16.mxu0 0
        %1012 = vmatpush1.bf16.msra.mxu0 0
        %1013 = vmatprep.subr.bf16.mxu0 0
        %1014 = vmatpush1.bf16.msra.mxu0 0
        %1015 = vmatprep.subr.bf16.mxu0 0
        %1016 = vmatpush1.bf16.msra.mxu0 0
        %1017 = vmatprep.mubr.bf16.mxu0 0
        %1018 = vmatmul.mubr.bf16.gmra.mrb[0].mxu0 %v983
        %v1019 = vpop.f32.mrb[0].mxu0
        %v1020 = vadd.f32 0.0, %v1019
        %v1021 = vpop.f32.mrb[0].mxu0
        %v1022 = vpop.f32.mrb[0].mxu0
        %v1023 = vpop.f32.mrb[0].mxu0
        %1024 = vdwg.mxu0
        %v1025 = vld [vmem:[#allocation5] sm:$0xf]
        %v1026 = vld [vmem:[#allocation5 + $0x4] sm:$0xf]
        %v1027 = vld [vmem:[#allocation5 + $0x8] sm:$0xf]
        %v1028 = vld [vmem:[#allocation5 + $0xc] sm:$0xf]
        %v1029 = vld [vmem:[#allocation7] sm:$0xf]
        %v1030 = vld [vmem:[#allocation7 + $0x4] sm:$0xf]
        %v1031 = vld [vmem:[#allocation7 + $0x8] sm:$0xf]
        %v1032 = vld [vmem:[#allocation7 + $0xc] sm:$0xf]
        %v1033 = vld [vmem:[%s4] sm:$0x1]
        %v1034 = vld [vmem:[#allocation8] sm:$0xf]
        %v1035 = vld [vmem:[#allocation8 + $0x4] sm:$0xf]
        %v1036 = vld [vmem:[#allocation8 + $0x8] sm:$0xf]
        %v1037 = vld [vmem:[#allocation8 + $0xc] sm:$0xf]
        %v1038 = vld [vmem:[#allocation10] sm:$0xf]
        %v1039 = vld [vmem:[#allocation10 + $0x4] sm:$0xf]
        %v1040 = vld [vmem:[#allocation10 + $0x8] sm:$0xf]
        %v1041 = vld [vmem:[#allocation10 + $0xc] sm:$0xf]
        %v1042 = vld [vmem:[#allocation11] sm:$0x1]
        %v1043 = vld [vmem:[%s8] sm:$0xf]
        %v1044 = vld [vmem:[%s8 + $0x4] sm:$0xf]
        %v1045 = vld [vmem:[%s8 + $0x8] sm:$0xf]
        %v1046 = vld [vmem:[%s8 + $0xc] sm:$0xf]
        %v1047 = vld [vmem:[%s8 + $0x10] sm:$0xf]
        %v1048 = vld [vmem:[%s8 + $0x14] sm:$0xf]
        %v1049 = vld [vmem:[%s8 + $0x18] sm:$0xf]
        %v1050 = vld [vmem:[%s8 + $0x1c] sm:$0xf]
        %v1051 = vld [vmem:[#allocation13] sm:$0x1]
        %v1052 = vld [vmem:[%s544] sm:$0xff]
        %v1053 = vld [vmem:[%s552] sm:$0xff]
        %v1054 = vpack.c.bf16 %v670, %v670
        %v1055 = vpack.c.bf16 %v1052, %v1052
        %v1060 = vunpack.c.l.b16 %v1029
        %v1061 = vunpack.c.l.b16 %v1030
        %v1062 = vunpack.c.l.b16 %v1031
        %v1063 = vunpack.c.l.b16 %v1032
        %v1064 = vpack.c.b16 %v1061, %v1060
        %v1065 = vpack.c.b16 %v1063, %v1062
        %v1069 = vsel %vm631, %v1055, 0
        %1071 = vmatprep.subr.bf16.mxu0 0
        %1072 = vmatpush1.bf16.msra.mxu0 %v1064
        %1073 = vmatprep.subr.bf16.mxu0 0
        %1074 = vmatpush1.bf16.msra.mxu0 %v1065
        %1075 = vmatprep.subr.bf16.mxu0 0
        %1076 = vmatpush1.bf16.msra.mxu0 0
        %1077 = vmatprep.subr.bf16.mxu0 0
        %1078 = vmatpush1.bf16.msra.mxu0 0
        %1079 = vmatprep.subr.bf16.mxu0 0
        %1080 = vmatpush1.bf16.msra.mxu0 0
        %1081 = vmatprep.subr.bf16.mxu0 0
        %1082 = vmatpush1.bf16.msra.mxu0 0
        %1083 = vmatprep.subr.bf16.mxu0 0
        %1084 = vmatpush1.bf16.msra.mxu0 0
        %1085 = vmatprep.subr.bf16.mxu0 0
        %1086 = vmatpush1.bf16.msra.mxu0 0
        %1087 = vmatprep.subr.bf16.mxu0 0
        %1088 = vmatpush1.bf16.msra.mxu0 0
        %1089 = vmatprep.subr.bf16.mxu0 0
        %1090 = vmatpush1.bf16.msra.mxu0 0
        %1091 = vmatprep.subr.bf16.mxu0 0
        %1092 = vmatpush1.bf16.msra.mxu0 0
        %1093 = vmatprep.subr.bf16.mxu0 0
        %1094 = vmatpush1.bf16.msra.mxu0 0
        %1095 = vmatprep.subr.bf16.mxu0 0
        %1096 = vmatpush1.bf16.msra.mxu0 0
        %1097 = vmatprep.subr.bf16.mxu0 0
        %1098 = vmatpush1.bf16.msra.mxu0 0
        %1099 = vmatprep.subr.bf16.mxu0 0
        %1100 = vmatpush1.bf16.msra.mxu0 0
        %1101 = vmatprep.subr.bf16.mxu0 0
        %1102 = vmatpush1.bf16.msra.mxu0 0
        %1103 = vmatprep.mubr.bf16.mxu0 0
        %1104 = vmatmul.mubr.bf16.gmra.mrb[0].mxu0 %v1069
        %v1105 = vpop.f32.mrb[0].mxu0
        %v1106 = vadd.f32 0.0, %v1105
        %v1107 = vpop.f32.mrb[0].mxu0
        %v1108 = vpop.f32.mrb[0].mxu0
        %v1109 = vpop.f32.mrb[0].mxu0
        %1110 = vdwg.mxu0
        %v1115 = vunpack.c.l.b16 %v1025
        %v1116 = vunpack.c.l.b16 %v1026
        %v1117 = vunpack.c.l.b16 %v1027
        %v1118 = vunpack.c.l.b16 %v1028
        %v1119 = vpack.c.b16 %v1116, %v1115
        %v1120 = vpack.c.b16 %v1118, %v1117
        %v1124 = vsel %vm631, %v1054, 0
        %1126 = vmatprep.subr.bf16.mxu0 0
        %1127 = vmatpush1.bf16.msra.mxu0 %v1119
        %1128 = vmatprep.subr.bf16.mxu0 0
        %1129 = vmatpush1.bf16.msra.mxu0 %v1120
        %1130 = vmatprep.subr.bf16.mxu0 0
        %1131 = vmatpush1.bf16.msra.mxu0 0
        %1132 = vmatprep.subr.bf16.mxu0 0
        %1133 = vmatpush1.bf16.msra.mxu0 0
        %1134 = vmatprep.subr.bf16.mxu0 0
        %1135 = vmatpush1.bf16.msra.mxu0 0
        %1136 = vmatprep.subr.bf16.mxu0 0
        %1137 = vmatpush1.bf16.msra.mxu0 0
        %1138 = vmatprep.subr.bf16.mxu0 0
        %1139 = vmatpush1.bf16.msra.mxu0 0
        %1140 = vmatprep.subr.bf16.mxu0 0
        %1141 = vmatpush1.bf16.msra.mxu0 0
        %1142 = vmatprep.subr.bf16.mxu0 0
        %1143 = vmatpush1.bf16.msra.mxu0 0
        %1144 = vmatprep.subr.bf16.mxu0 0
        %1145 = vmatpush1.bf16.msra.mxu0 0
        %1146 = vmatprep.subr.bf16.mxu0 0
        %1147 = vmatpush1.bf16.msra.mxu0 0
        %1148 = vmatprep.subr.bf16.mxu0 0
        %1149 = vmatpush1.bf16.msra.mxu0 0
        %1150 = vmatprep.subr.bf16.mxu0 0
        %1151 = vmatpush1.bf16.msra.mxu0 0
        %1152 = vmatprep.subr.bf16.mxu0 0
        %1153 = vmatpush1.bf16.msra.mxu0 0
        %1154 = vmatprep.subr.bf16.mxu0 0
        %1155 = vmatpush1.bf16.msra.mxu0 0
        %1156 = vmatprep.subr.bf16.mxu0 0
        %1157 = vmatpush1.bf16.msra.mxu0 0
        %1158 = vmatprep.mubr.bf16.mxu0 0
        %1159 = vmatmul.mubr.bf16.gmra.mrb[0].mxu0 %v1124
        %v1160 = vpop.f32.mrb[0].mxu0
        %v1161 = vadd.f32 %v1106, %v1160
        %v1162 = vpop.f32.mrb[0].mxu0
        %v1163 = vpop.f32.mrb[0].mxu0
        %v1164 = vpop.f32.mrb[0].mxu0
        %1165 = vdwg.mxu0
        %v1167 = vlaneseq
        %v1168 = vshrl.u32 %v1167, 7
        %v1169 = vsub.s32 0, %v1168
        %v1170 = vrot.slane %v1033, %v1169
        %v1172 = vadd.f32 %v1161, %v1170
        %v1173 = vsub.f32 0.0, %v1172
        %v1174 = vmul.f32 %v1173, 1.442695
        %v1175 = vpow.pop %v1174
        %v1176 = vadd.f32 %v1175, 1.0
        %v1177 = vrcp.pop %v1176
        %v1178 = vtanh.pop %v1172
        %1180 = vrot.lane.b32.xlu0 %v1053, 32
        %v1181 = vpop.permute.xlu0 %1180
        %v1183 = vmul.f32 %v1177, %v1181
        %1185 = vrot.lane.b32.xlu0 %v1178, 64
        %v1186 = vpop.permute.xlu0 %1185
        %v1188 = vmul.f32 %v1177, %v1186
        %1190 = vrot.lane.b32.xlu0 %v1188, 32
        %v1191 = vpop.permute.xlu0 %1190
        %v1193 = vadd.f32 %v1183, %v1191
        %v1194 = vtanh.pop %v1193
        %1196 = vrot.lane.b32.xlu0 %v1194, 64
        %v1197 = vpop.permute.xlu0 %1196
        %v1199 = vmul.f32 %v1177, %v1197
        %v1200 = vpack.c.bf16 %v720, %v720
        %v1201 = vpack.c.bf16 %v1199, %v1199
        %1203 = vrot.lane.b32.xlu0 %v1201, 32
        %v1204 = vpop.permute.xlu0 %1203
        %v1206 = vsel %vm631, %v1204, 0
        %1208 = vmatprep.subr.bf16.mxu0 0
        %1209 = vmatpush1.bf16.msra.mxu0 %v1064
        %1210 = vmatprep.subr.bf16.mxu0 0
        %1211 = vmatpush1.bf16.msra.mxu0 %v1065
        %1212 = vmatprep.subr.bf16.mxu0 0
        %1213 = vmatpush1.bf16.msra.mxu0 0
        %1214 = vmatprep.subr.bf16.mxu0 0
        %1215 = vmatpush1.bf16.msra.mxu0 0
        %1216 = vmatprep.subr.bf16.mxu0 0
        %1217 = vmatpush1.bf16.msra.mxu0 0
        %1218 = vmatprep.subr.bf16.mxu0 0
        %1219 = vmatpush1.bf16.msra.mxu0 0
        %1220 = vmatprep.subr.bf16.mxu0 0
        %1221 = vmatpush1.bf16.msra.mxu0 0
        %1222 = vmatprep.subr.bf16.mxu0 0
        %1223 = vmatpush1.bf16.msra.mxu0 0
        %1224 = vmatprep.subr.bf16.mxu0 0
        %1225 = vmatpush1.bf16.msra.mxu0 0
        %1226 = vmatprep.subr.bf16.mxu0 0
        %1227 = vmatpush1.bf16.msra.mxu0 0
        %1228 = vmatprep.subr.bf16.mxu0 0
        %1229 = vmatpush1.bf16.msra.mxu0 0
        %1230 = vmatprep.subr.bf16.mxu0 0
        %1231 = vmatpush1.bf16.msra.mxu0 0
        %1232 = vmatprep.subr.bf16.mxu0 0
        %1233 = vmatpush1.bf16.msra.mxu0 0
        %1234 = vmatprep.subr.bf16.mxu0 0
        %1235 = vmatpush1.bf16.msra.mxu0 0
        %1236 = vmatprep.subr.bf16.mxu0 0
        %1237 = vmatpush1.bf16.msra.mxu0 0
        %1238 = vmatprep.subr.bf16.mxu0 0
        %1239 = vmatpush1.bf16.msra.mxu0 0
        %1240 = vmatprep.mubr.bf16.mxu0 0
        %1241 = vmatmul.mubr.bf16.gmra.mrb[0].mxu0 %v1206
        %v1242 = vpop.f32.mrb[0].mxu0
        %v1243 = vadd.f32 0.0, %v1242
        %v1244 = vpop.f32.mrb[0].mxu0
        %v1245 = vpop.f32.mrb[0].mxu0
        %v1246 = vpop.f32.mrb[0].mxu0
        %1247 = vdwg.mxu0
        %v1249 = vsel %vm631, %v1200, 0
        %1251 = vmatprep.subr.bf16.mxu0 0
        %1252 = vmatpush1.bf16.msra.mxu0 %v1119
        %1253 = vmatprep.subr.bf16.mxu0 0
        %1254 = vmatpush1.bf16.msra.mxu0 %v1120
        %1255 = vmatprep.subr.bf16.mxu0 0
        %1256 = vmatpush1.bf16.msra.mxu0 0
        %1257 = vmatprep.subr.bf16.mxu0 0
        %1258 = vmatpush1.bf16.msra.mxu0 0
        %1259 = vmatprep.subr.bf16.mxu0 0
        %1260 = vmatpush1.bf16.msra.mxu0 0
        %1261 = vmatprep.subr.bf16.mxu0 0
        %1262 = vmatpush1.bf16.msra.mxu0 0
        %1263 = vmatprep.subr.bf16.mxu0 0
        %1264 = vmatpush1.bf16.msra.mxu0 0
        %1265 = vmatprep.subr.bf16.mxu0 0
        %1266 = vmatpush1.bf16.msra.mxu0 0
        %1267 = vmatprep.subr.bf16.mxu0 0
        %1268 = vmatpush1.bf16.msra.mxu0 0
        %1269 = vmatprep.subr.bf16.mxu0 0
        %1270 = vmatpush1.bf16.msra.mxu0 0
        %1271 = vmatprep.subr.bf16.mxu0 0
        %1272 = vmatpush1.bf16.msra.mxu0 0
        %1273 = vmatprep.subr.bf16.mxu0 0
        %1274 = vmatpush1.bf16.msra.mxu0 0
        %1275 = vmatprep.subr.bf16.mxu0 0
        %1276 = vmatpush1.bf16.msra.mxu0 0
        %1277 = vmatprep.subr.bf16.mxu0 0
        %1278 = vmatpush1.bf16.msra.mxu0 0
        %1279 = vmatprep.subr.bf16.mxu0 0
        %1280 = vmatpush1.bf16.msra.mxu0 0
        %1281 = vmatprep.subr.bf16.mxu0 0
        %1282 = vmatpush1.bf16.msra.mxu0 0
        %1283 = vmatprep.mubr.bf16.mxu0 0
        %1284 = vmatmul.mubr.bf16.gmra.mrb[0].mxu0 %v1249
        %v1285 = vpop.f32.mrb[0].mxu0
        %v1286 = vadd.f32 %v1243, %v1285
        %v1287 = vpop.f32.mrb[0].mxu0
        %v1288 = vpop.f32.mrb[0].mxu0
        %v1289 = vpop.f32.mrb[0].mxu0
        %1290 = vdwg.mxu0
        %v1291 = vadd.f32 %v1286, %v1170
        %v1292 = vsub.f32 0.0, %v1291
        %v1293 = vmul.f32 %v1292, 1.442695
        %v1294 = vpow.pop %v1293
        %v1295 = vadd.f32 %v1294, 1.0
        %v1296 = vrcp.pop %v1295
        %v1297 = vtanh.pop %v1291
        %v1298 = vmul.f32 %v1296, %v1193
        %1300 = vrot.lane.b32.xlu0 %v1297, 64
        %v1301 = vpop.permute.xlu0 %1300
        %v1303 = vmul.f32 %v1296, %v1301
        %1305 = vrot.lane.b32.xlu0 %v1303, 32
        %v1306 = vpop.permute.xlu0 %1305
        %v1308 = vadd.f32 %v1298, %v1306
        %v1309 = vtanh.pop %v1308
        %1311 = vrot.lane.b32.xlu0 %v1309, 64
        %v1312 = vpop.permute.xlu0 %1311
        %v1314 = vmul.f32 %v1296, %v1312
        %v1315 = vpack.c.bf16 %v770, %v770
        %v1316 = vpack.c.bf16 %v1314, %v1314
        %1318 = vrot.lane.b32.xlu0 %v1316, 32
        %v1319 = vpop.permute.xlu0 %1318
        %v1321 = vsel %vm631, %v1319, 0
        %1323 = vmatprep.subr.bf16.mxu0 0
        %1324 = vmatpush1.bf16.msra.mxu0 %v1064
        %1325 = vmatprep.subr.bf16.mxu0 0
        %1326 = vmatpush1.bf16.msra.mxu0 %v1065
        %1327 = vmatprep.subr.bf16.mxu0 0
        %1328 = vmatpush1.bf16.msra.mxu0 0
        %1329 = vmatprep.subr.bf16.mxu0 0
        %1330 = vmatpush1.bf16.msra.mxu0 0
        %1331 = vmatprep.subr.bf16.mxu0 0
        %1332 = vmatpush1.bf16.msra.mxu0 0
        %1333 = vmatprep.subr.bf16.mxu0 0
        %1334 = vmatpush1.bf16.msra.mxu0 0
        %1335 = vmatprep.subr.bf16.mxu0 0
        %1336 = vmatpush1.bf16.msra.mxu0 0
        %1337 = vmatprep.subr.bf16.mxu0 0
        %1338 = vmatpush1.bf16.msra.mxu0 0
        %1339 = vmatprep.subr.bf16.mxu0 0
        %1340 = vmatpush1.bf16.msra.mxu0 0
        %1341 = vmatprep.subr.bf16.mxu0 0
        %1342 = vmatpush1.bf16.msra.mxu0 0
        %1343 = vmatprep.subr.bf16.mxu0 0
        %1344 = vmatpush1.bf16.msra.mxu0 0
        %1345 = vmatprep.subr.bf16.mxu0 0
        %1346 = vmatpush1.bf16.msra.mxu0 0
        %1347 = vmatprep.subr.bf16.mxu0 0
        %1348 = vmatpush1.bf16.msra.mxu0 0
        %1349 = vmatprep.subr.bf16.mxu0 0
        %1350 = vmatpush1.bf16.msra.mxu0 0
        %1351 = vmatprep.subr.bf16.mxu0 0
        %1352 = vmatpush1.bf16.msra.mxu0 0
        %1353 = vmatprep.subr.bf16.mxu0 0
        %1354 = vmatpush1.bf16.msra.mxu0 0
        %1355 = vmatprep.mubr.bf16.mxu0 0
        %1356 = vmatmul.mubr.bf16.gmra.mrb[0].mxu0 %v1321
        %v1357 = vpop.f32.mrb[0].mxu0
        %v1358 = vadd.f32 0.0, %v1357
        %v1359 = vpop.f32.mrb[0].mxu0
        %v1360 = vpop.f32.mrb[0].mxu0
        %v1361 = vpop.f32.mrb[0].mxu0
        %1362 = vdwg.mxu0
        %v1364 = vsel %vm631, %v1315, 0
        %1366 = vmatprep.subr.bf16.mxu0 0
        %1367 = vmatpush1.bf16.msra.mxu0 %v1119
        %1368 = vmatprep.subr.bf16.mxu0 0
        %1369 = vmatpush1.bf16.msra.mxu0 %v1120
        %1370 = vmatprep.subr.bf16.mxu0 0
        %1371 = vmatpush1.bf16.msra.mxu0 0
        %1372 = vmatprep.subr.bf16.mxu0 0
        %1373 = vmatpush1.bf16.msra.mxu0 0
        %1374 = vmatprep.subr.bf16.mxu0 0
        %1375 = vmatpush1.bf16.msra.mxu0 0
        %1376 = vmatprep.subr.bf16.mxu0 0
        %1377 = vmatpush1.bf16.msra.mxu0 0
        %1378 = vmatprep.subr.bf16.mxu0 0
        %1379 = vmatpush1.bf16.msra.mxu0 0
        %1380 = vmatprep.subr.bf16.mxu0 0
        %1381 = vmatpush1.bf16.msra.mxu0 0
        %1382 = vmatprep.subr.bf16.mxu0 0
        %1383 = vmatpush1.bf16.msra.mxu0 0
        %1384 = vmatprep.subr.bf16.mxu0 0
        %1385 = vmatpush1.bf16.msra.mxu0 0
        %1386 = vmatprep.subr.bf16.mxu0 0
        %1387 = vmatpush1.bf16.msra.mxu0 0
        %1388 = vmatprep.subr.bf16.mxu0 0
        %1389 = vmatpush1.bf16.msra.mxu0 0
        %1390 = vmatprep.subr.bf16.mxu0 0
        %1391 = vmatpush1.bf16.msra.mxu0 0
        %1392 = vmatprep.subr.bf16.mxu0 0
        %1393 = vmatpush1.bf16.msra.mxu0 0
        %1394 = vmatprep.subr.bf16.mxu0 0
        %1395 = vmatpush1.bf16.msra.mxu0 0
        %1396 = vmatprep.subr.bf16.mxu0 0
        %1397 = vmatpush1.bf16.msra.mxu0 0
        %1398 = vmatprep.mubr.bf16.mxu0 0
        %1399 = vmatmul.mubr.bf16.gmra.mrb[0].mxu0 %v1364
        %v1400 = vpop.f32.mrb[0].mxu0
        %v1401 = vadd.f32 %v1358, %v1400
        %v1402 = vpop.f32.mrb[0].mxu0
        %v1403 = vpop.f32.mrb[0].mxu0
        %v1404 = vpop.f32.mrb[0].mxu0
        %1405 = vdwg.mxu0
        %v1406 = vadd.f32 %v1401, %v1170
        %v1407 = vsub.f32 0.0, %v1406
        %v1408 = vmul.f32 %v1407, 1.442695
        %v1409 = vpow.pop %v1408
        %v1410 = vadd.f32 %v1409, 1.0
        %v1411 = vrcp.pop %v1410
        %v1412 = vtanh.pop %v1406
        %v1413 = vmul.f32 %v1411, %v1308
        %1415 = vrot.lane.b32.xlu0 %v1412, 64
        %v1416 = vpop.permute.xlu0 %1415
        %v1418 = vmul.f32 %v1411, %v1416
        %1420 = vrot.lane.b32.xlu0 %v1418, 32
        %v1421 = vpop.permute.xlu0 %1420
        %v1423 = vadd.f32 %v1413, %v1421
        %v1424 = vtanh.pop %v1423
        %1426 = vrot.lane.b32.xlu0 %v1424, 64
        %v1427 = vpop.permute.xlu0 %1426
        %v1429 = vmul.f32 %v1411, %v1427
        %v1430 = vpack.c.bf16 %v820, %v820
        %v1431 = vpack.c.bf16 %v1429, %v1429
        %1433 = vrot.lane.b32.xlu0 %v1431, 32
        %v1434 = vpop.permute.xlu0 %1433
        %v1436 = vsel %vm631, %v1434, 0
        %1438 = vmatprep.subr.bf16.mxu0 0
        %1439 = vmatpush1.bf16.msra.mxu0 %v1064
        %1440 = vmatprep.subr.bf16.mxu0 0
        %1441 = vmatpush1.bf16.msra.mxu0 %v1065
        %1442 = vmatprep.subr.bf16.mxu0 0
        %1443 = vmatpush1.bf16.msra.mxu0 0
        %1444 = vmatprep.subr.bf16.mxu0 0
        %1445 = vmatpush1.bf16.msra.mxu0 0
        %1446 = vmatprep.subr.bf16.mxu0 0
        %1447 = vmatpush1.bf16.msra.mxu0 0
        %1448 = vmatprep.subr.bf16.mxu0 0
        %1449 = vmatpush1.bf16.msra.mxu0 0
        %1450 = vmatprep.subr.bf16.mxu0 0
        %1451 = vmatpush1.bf16.msra.mxu0 0
        %1452 = vmatprep.subr.bf16.mxu0 0
        %1453 = vmatpush1.bf16.msra.mxu0 0
        %1454 = vmatprep.subr.bf16.mxu0 0
        %1455 = vmatpush1.bf16.msra.mxu0 0
        %1456 = vmatprep.subr.bf16.mxu0 0
        %1457 = vmatpush1.bf16.msra.mxu0 0
        %1458 = vmatprep.subr.bf16.mxu0 0
        %1459 = vmatpush1.bf16.msra.mxu0 0
        %1460 = vmatprep.subr.bf16.mxu0 0
        %1461 = vmatpush1.bf16.msra.mxu0 0
        %1462 = vmatprep.subr.bf16.mxu0 0
        %1463 = vmatpush1.bf16.msra.mxu0 0
        %1464 = vmatprep.subr.bf16.mxu0 0
        %1465 = vmatpush1.bf16.msra.mxu0 0
        %1466 = vmatprep.subr.bf16.mxu0 0
        %1467 = vmatpush1.bf16.msra.mxu0 0
        %1468 = vmatprep.subr.bf16.mxu0 0
        %1469 = vmatpush1.bf16.msra.mxu0 0
        %1470 = vmatprep.mubr.bf16.mxu0 0
        %1471 = vmatmul.mubr.bf16.gmra.mrb[0].mxu0 %v1436
        %v1472 = vpop.f32.mrb[0].mxu0
        %v1473 = vadd.f32 0.0, %v1472
        %v1474 = vpop.f32.mrb[0].mxu0
        %v1475 = vpop.f32.mrb[0].mxu0
        %v1476 = vpop.f32.mrb[0].mxu0
        %1477 = vdwg.mxu0
        %v1479 = vsel %vm631, %v1430, 0
        %1481 = vmatprep.subr.bf16.mxu0 0
        %1482 = vmatpush1.bf16.msra.mxu0 %v1119
        %1483 = vmatprep.subr.bf16.mxu0 0
        %1484 = vmatpush1.bf16.msra.mxu0 %v1120
        %1485 = vmatprep.subr.bf16.mxu0 0
        %1486 = vmatpush1.bf16.msra.mxu0 0
        %1487 = vmatprep.subr.bf16.mxu0 0
        %1488 = vmatpush1.bf16.msra.mxu0 0
        %1489 = vmatprep.subr.bf16.mxu0 0
        %1490 = vmatpush1.bf16.msra.mxu0 0
        %1491 = vmatprep.subr.bf16.mxu0 0
        %1492 = vmatpush1.bf16.msra.mxu0 0
        %1493 = vmatprep.subr.bf16.mxu0 0
        %1494 = vmatpush1.bf16.msra.mxu0 0
        %1495 = vmatprep.subr.bf16.mxu0 0
        %1496 = vmatpush1.bf16.msra.mxu0 0
        %1497 = vmatprep.subr.bf16.mxu0 0
        %1498 = vmatpush1.bf16.msra.mxu0 0
        %1499 = vmatprep.subr.bf16.mxu0 0
        %1500 = vmatpush1.bf16.msra.mxu0 0
        %1501 = vmatprep.subr.bf16.mxu0 0
        %1502 = vmatpush1.bf16.msra.mxu0 0
        %1503 = vmatprep.subr.bf16.mxu0 0
        %1504 = vmatpush1.bf16.msra.mxu0 0
        %1505 = vmatprep.subr.bf16.mxu0 0
        %1506 = vmatpush1.bf16.msra.mxu0 0
        %1507 = vmatprep.subr.bf16.mxu0 0
        %1508 = vmatpush1.bf16.msra.mxu0 0
        %1509 = vmatprep.subr.bf16.mxu0 0
        %1510 = vmatpush1.bf16.msra.mxu0 0
        %1511 = vmatprep.subr.bf16.mxu0 0
        %1512 = vmatpush1.bf16.msra.mxu0 0
        %1513 = vmatprep.mubr.bf16.mxu0 0
        %1514 = vmatmul.mubr.bf16.gmra.mrb[0].mxu0 %v1479
        %v1515 = vpop.f32.mrb[0].mxu0
        %v1516 = vadd.f32 %v1473, %v1515
        %v1517 = vpop.f32.mrb[0].mxu0
        %v1518 = vpop.f32.mrb[0].mxu0
        %v1519 = vpop.f32.mrb[0].mxu0
        %1520 = vdwg.mxu0
        %v1521 = vadd.f32 %v1516, %v1170
        %v1522 = vsub.f32 0.0, %v1521
        %v1523 = vmul.f32 %v1522, 1.442695
        %v1524 = vpow.pop %v1523
        %v1525 = vadd.f32 %v1524, 1.0
        %v1526 = vrcp.pop %v1525
        %v1527 = vtanh.pop %v1521
        %v1528 = vmul.f32 %v1526, %v1423
        %1530 = vrot.lane.b32.xlu0 %v1527, 64
        %v1531 = vpop.permute.xlu0 %1530
        %v1533 = vmul.f32 %v1526, %v1531
        %1535 = vrot.lane.b32.xlu0 %v1533, 32
        %v1536 = vpop.permute.xlu0 %1535
        %v1538 = vadd.f32 %v1528, %v1536
        %v1539 = vtanh.pop %v1538
        %1541 = vrot.lane.b32.xlu0 %v1539, 64
        %v1542 = vpop.permute.xlu0 %1541
        %v1544 = vmul.f32 %v1526, %v1542
        %v1545 = vpack.c.bf16 %v870, %v870
        %v1546 = vpack.c.bf16 %v1544, %v1544
        %1548 = vrot.lane.b32.xlu0 %v1546, 32
        %v1549 = vpop.permute.xlu0 %1548
        %v1551 = vsel %vm631, %v1549, 0
        %1553 = vmatprep.subr.bf16.mxu0 0
        %1554 = vmatpush1.bf16.msra.mxu0 %v1064
        %1555 = vmatprep.subr.bf16.mxu0 0
        %1556 = vmatpush1.bf16.msra.mxu0 %v1065
        %1557 = vmatprep.subr.bf16.mxu0 0
        %1558 = vmatpush1.bf16.msra.mxu0 0
        %1559 = vmatprep.subr.bf16.mxu0 0
        %1560 = vmatpush1.bf16.msra.mxu0 0
        %1561 = vmatprep.subr.bf16.mxu0 0
        %1562 = vmatpush1.bf16.msra.mxu0 0
        %1563 = vmatprep.subr.bf16.mxu0 0
        %1564 = vmatpush1.bf16.msra.mxu0 0
        %1565 = vmatprep.subr.bf16.mxu0 0
        %1566 = vmatpush1.bf16.msra.mxu0 0
        %1567 = vmatprep.subr.bf16.mxu0 0
        %1568 = vmatpush1.bf16.msra.mxu0 0
        %1569 = vmatprep.subr.bf16.mxu0 0
        %1570 = vmatpush1.bf16.msra.mxu0 0
        %1571 = vmatprep.subr.bf16.mxu0 0
        %1572 = vmatpush1.bf16.msra.mxu0 0
        %1573 = vmatprep.subr.bf16.mxu0 0
        %1574 = vmatpush1.bf16.msra.mxu0 0
        %1575 = vmatprep.subr.bf16.mxu0 0
        %1576 = vmatpush1.bf16.msra.mxu0 0
        %1577 = vmatprep.subr.bf16.mxu0 0
        %1578 = vmatpush1.bf16.msra.mxu0 0
        %1579 = vmatprep.subr.bf16.mxu0 0
        %1580 = vmatpush1.bf16.msra.mxu0 0
        %1581 = vmatprep.subr.bf16.mxu0 0
        %1582 = vmatpush1.bf16.msra.mxu0 0
        %1583 = vmatprep.subr.bf16.mxu0 0
        %1584 = vmatpush1.bf16.msra.mxu0 0
        %1585 = vmatprep.mubr.bf16.mxu0 0
        %1586 = vmatmul.mubr.bf16.gmra.mrb[0].mxu0 %v1551
        %v1587 = vpop.f32.mrb[0].mxu0
        %v1588 = vadd.f32 0.0, %v1587
        %v1589 = vpop.f32.mrb[0].mxu0
        %v1590 = vpop.f32.mrb[0].mxu0
        %v1591 = vpop.f32.mrb[0].mxu0
        %1592 = vdwg.mxu0
        %v1594 = vsel %vm631, %v1545, 0
        %1596 = vmatprep.subr.bf16.mxu0 0
        %1597 = vmatpush1.bf16.msra.mxu0 %v1119
        %1598 = vmatprep.subr.bf16.mxu0 0
        %1599 = vmatpush1.bf16.msra.mxu0 %v1120
        %1600 = vmatprep.subr.bf16.mxu0 0
        %1601 = vmatpush1.bf16.msra.mxu0 0
        %1602 = vmatprep.subr.bf16.mxu0 0
        %1603 = vmatpush1.bf16.msra.mxu0 0
        %1604 = vmatprep.subr.bf16.mxu0 0
        %1605 = vmatpush1.bf16.msra.mxu0 0
        %1606 = vmatprep.subr.bf16.mxu0 0
        %1607 = vmatpush1.bf16.msra.mxu0 0
        %1608 = vmatprep.subr.bf16.mxu0 0
        %1609 = vmatpush1.bf16.msra.mxu0 0
        %1610 = vmatprep.subr.bf16.mxu0 0
        %1611 = vmatpush1.bf16.msra.mxu0 0
        %1612 = vmatprep.subr.bf16.mxu0 0
        %1613 = vmatpush1.bf16.msra.mxu0 0
        %1614 = vmatprep.subr.bf16.mxu0 0
        %1615 = vmatpush1.bf16.msra.mxu0 0
        %1616 = vmatprep.subr.bf16.mxu0 0
        %1617 = vmatpush1.bf16.msra.mxu0 0
        %1618 = vmatprep.subr.bf16.mxu0 0
        %1619 = vmatpush1.bf16.msra.mxu0 0
        %1620 = vmatprep.subr.bf16.mxu0 0
        %1621 = vmatpush1.bf16.msra.mxu0 0
        %1622 = vmatprep.subr.bf16.mxu0 0
        %1623 = vmatpush1.bf16.msra.mxu0 0
        %1624 = vmatprep.subr.bf16.mxu0 0
        %1625 = vmatpush1.bf16.msra.mxu0 0
        %1626 = vmatprep.subr.bf16.mxu0 0
        %1627 = vmatpush1.bf16.msra.mxu0 0
        %1628 = vmatprep.mubr.bf16.mxu0 0
        %1629 = vmatmul.mubr.bf16.gmra.mrb[0].mxu0 %v1594
        %v1630 = vpop.f32.mrb[0].mxu0
        %v1631 = vadd.f32 %v1588, %v1630
        %v1632 = vpop.f32.mrb[0].mxu0
        %v1633 = vpop.f32.mrb[0].mxu0
        %v1634 = vpop.f32.mrb[0].mxu0
        %1635 = vdwg.mxu0
        %v1636 = vadd.f32 %v1631, %v1170
        %v1637 = vsub.f32 0.0, %v1636
        %v1638 = vmul.f32 %v1637, 1.442695
        %v1639 = vpow.pop %v1638
        %v1640 = vadd.f32 %v1639, 1.0
        %v1641 = vrcp.pop %v1640
        %v1642 = vtanh.pop %v1636
        %v1643 = vmul.f32 %v1641, %v1538
        %1645 = vrot.lane.b32.xlu0 %v1642, 64
        %v1646 = vpop.permute.xlu0 %1645
        %v1648 = vmul.f32 %v1641, %v1646
        %1650 = vrot.lane.b32.xlu0 %v1648, 32
        %v1651 = vpop.permute.xlu0 %1650
        %v1653 = vadd.f32 %v1643, %v1651
        %v1654 = vtanh.pop %v1653
        %1656 = vrot.lane.b32.xlu0 %v1654, 64
        %v1657 = vpop.permute.xlu0 %1656
        %v1659 = vmul.f32 %v1641, %v1657
        %v1660 = vpack.c.bf16 %v920, %v920
        %v1661 = vpack.c.bf16 %v1659, %v1659
        %1663 = vrot.lane.b32.xlu0 %v1661, 32
        %v1664 = vpop.permute.xlu0 %1663
        %v1666 = vsel %vm631, %v1664, 0
        %1668 = vmatprep.subr.bf16.mxu0 0
        %1669 = vmatpush1.bf16.msra.mxu0 %v1064
        %1670 = vmatprep.subr.bf16.mxu0 0
        %1671 = vmatpush1.bf16.msra.mxu0 %v1065
        %1672 = vmatprep.subr.bf16.mxu0 0
        %1673 = vmatpush1.bf16.msra.mxu0 0
        %1674 = vmatprep.subr.bf16.mxu0 0
        %1675 = vmatpush1.bf16.msra.mxu0 0
        %1676 = vmatprep.subr.bf16.mxu0 0
        %1677 = vmatpush1.bf16.msra.mxu0 0
        %1678 = vmatprep.subr.bf16.mxu0 0
        %1679 = vmatpush1.bf16.msra.mxu0 0
        %1680 = vmatprep.subr.bf16.mxu0 0
        %1681 = vmatpush1.bf16.msra.mxu0 0
        %1682 = vmatprep.subr.bf16.mxu0 0
        %1683 = vmatpush1.bf16.msra.mxu0 0
        %1684 = vmatprep.subr.bf16.mxu0 0
        %1685 = vmatpush1.bf16.msra.mxu0 0
        %1686 = vmatprep.subr.bf16.mxu0 0
        %1687 = vmatpush1.bf16.msra.mxu0 0
        %1688 = vmatprep.subr.bf16.mxu0 0
        %1689 = vmatpush1.bf16.msra.mxu0 0
        %1690 = vmatprep.subr.bf16.mxu0 0
        %1691 = vmatpush1.bf16.msra.mxu0 0
        %1692 = vmatprep.subr.bf16.mxu0 0
        %1693 = vmatpush1.bf16.msra.mxu0 0
        %1694 = vmatprep.subr.bf16.mxu0 0
        %1695 = vmatpush1.bf16.msra.mxu0 0
        %1696 = vmatprep.subr.bf16.mxu0 0
        %1697 = vmatpush1.bf16.msra.mxu0 0
        %1698 = vmatprep.subr.bf16.mxu0 0
        %1699 = vmatpush1.bf16.msra.mxu0 0
        %1700 = vmatprep.mubr.bf16.mxu0 0
        %1701 = vmatmul.mubr.bf16.gmra.mrb[0].mxu0 %v1666
        %v1702 = vpop.f32.mrb[0].mxu0
        %v1703 = vadd.f32 0.0, %v1702
        %v1704 = vpop.f32.mrb[0].mxu0
        %v1705 = vpop.f32.mrb[0].mxu0
        %v1706 = vpop.f32.mrb[0].mxu0
        %1707 = vdwg.mxu0
        %v1709 = vsel %vm631, %v1660, 0
        %1711 = vmatprep.subr.bf16.mxu0 0
        %1712 = vmatpush1.bf16.msra.mxu0 %v1119
        %1713 = vmatprep.subr.bf16.mxu0 0
        %1714 = vmatpush1.bf16.msra.mxu0 %v1120
        %1715 = vmatprep.subr.bf16.mxu0 0
        %1716 = vmatpush1.bf16.msra.mxu0 0
        %1717 = vmatprep.subr.bf16.mxu0 0
        %1718 = vmatpush1.bf16.msra.mxu0 0
        %1719 = vmatprep.subr.bf16.mxu0 0
        %1720 = vmatpush1.bf16.msra.mxu0 0
        %1721 = vmatprep.subr.bf16.mxu0 0
        %1722 = vmatpush1.bf16.msra.mxu0 0
        %1723 = vmatprep.subr.bf16.mxu0 0
        %1724 = vmatpush1.bf16.msra.mxu0 0
        %1725 = vmatprep.subr.bf16.mxu0 0
        %1726 = vmatpush1.bf16.msra.mxu0 0
        %1727 = vmatprep.subr.bf16.mxu0 0
        %1728 = vmatpush1.bf16.msra.mxu0 0
        %1729 = vmatprep.subr.bf16.mxu0 0
        %1730 = vmatpush1.bf16.msra.mxu0 0
        %1731 = vmatprep.subr.bf16.mxu0 0
        %1732 = vmatpush1.bf16.msra.mxu0 0
        %1733 = vmatprep.subr.bf16.mxu0 0
        %1734 = vmatpush1.bf16.msra.mxu0 0
        %1735 = vmatprep.subr.bf16.mxu0 0
        %1736 = vmatpush1.bf16.msra.mxu0 0
        %1737 = vmatprep.subr.bf16.mxu0 0
        %1738 = vmatpush1.bf16.msra.mxu0 0
        %1739 = vmatprep.subr.bf16.mxu0 0
        %1740 = vmatpush1.bf16.msra.mxu0 0
        %1741 = vmatprep.subr.bf16.mxu0 0
        %1742 = vmatpush1.bf16.msra.mxu0 0
        %1743 = vmatprep.mubr.bf16.mxu0 0
        %1744 = vmatmul.mubr.bf16.gmra.mrb[0].mxu0 %v1709
        %v1745 = vpop.f32.mrb[0].mxu0
        %v1746 = vadd.f32 %v1703, %v1745
        %v1747 = vpop.f32.mrb[0].mxu0
        %v1748 = vpop.f32.mrb[0].mxu0
        %v1749 = vpop.f32.mrb[0].mxu0
        %1750 = vdwg.mxu0
        %v1751 = vadd.f32 %v1746, %v1170
        %v1752 = vsub.f32 0.0, %v1751
        %v1753 = vmul.f32 %v1752, 1.442695
        %v1754 = vpow.pop %v1753
        %v1755 = vadd.f32 %v1754, 1.0
        %v1756 = vrcp.pop %v1755
        %v1757 = vtanh.pop %v1751
        %v1758 = vmul.f32 %v1756, %v1653
        %1760 = vrot.lane.b32.xlu0 %v1757, 64
        %v1761 = vpop.permute.xlu0 %1760
        %v1763 = vmul.f32 %v1756, %v1761
        %1765 = vrot.lane.b32.xlu0 %v1763, 32
        %v1766 = vpop.permute.xlu0 %1765
        %v1768 = vadd.f32 %v1758, %v1766
        %v1769 = vtanh.pop %v1768
        %1771 = vrot.lane.b32.xlu0 %v1769, 64
        %v1772 = vpop.permute.xlu0 %1771
        %v1774 = vmul.f32 %v1756, %v1772
        %v1775 = vpack.c.bf16 %v970, %v970
        %v1776 = vpack.c.bf16 %v1774, %v1774
        %1778 = vrot.lane.b32.xlu0 %v1776, 32
        %v1779 = vpop.permute.xlu0 %1778
        %v1781 = vsel %vm631, %v1779, 0
        %1783 = vmatprep.subr.bf16.mxu0 0
        %1784 = vmatpush1.bf16.msra.mxu0 %v1064
        %1785 = vmatprep.subr.bf16.mxu0 0
        %1786 = vmatpush1.bf16.msra.mxu0 %v1065
        %1787 = vmatprep.subr.bf16.mxu0 0
        %1788 = vmatpush1.bf16.msra.mxu0 0
        %1789 = vmatprep.subr.bf16.mxu0 0
        %1790 = vmatpush1.bf16.msra.mxu0 0
        %1791 = vmatprep.subr.bf16.mxu0 0
        %1792 = vmatpush1.bf16.msra.mxu0 0
        %1793 = vmatprep.subr.bf16.mxu0 0
        %1794 = vmatpush1.bf16.msra.mxu0 0
        %1795 = vmatprep.subr.bf16.mxu0 0
        %1796 = vmatpush1.bf16.msra.mxu0 0
        %1797 = vmatprep.subr.bf16.mxu0 0
        %1798 = vmatpush1.bf16.msra.mxu0 0
        %1799 = vmatprep.subr.bf16.mxu0 0
        %1800 = vmatpush1.bf16.msra.mxu0 0
        %1801 = vmatprep.subr.bf16.mxu0 0
        %1802 = vmatpush1.bf16.msra.mxu0 0
        %1803 = vmatprep.subr.bf16.mxu0 0
        %1804 = vmatpush1.bf16.msra.mxu0 0
        %1805 = vmatprep.subr.bf16.mxu0 0
        %1806 = vmatpush1.bf16.msra.mxu0 0
        %1807 = vmatprep.subr.bf16.mxu0 0
        %1808 = vmatpush1.bf16.msra.mxu0 0
        %1809 = vmatprep.subr.bf16.mxu0 0
        %1810 = vmatpush1.bf16.msra.mxu0 0
        %1811 = vmatprep.subr.bf16.mxu0 0
        %1812 = vmatpush1.bf16.msra.mxu0 0
        %1813 = vmatprep.subr.bf16.mxu0 0
        %1814 = vmatpush1.bf16.msra.mxu0 0
        %1815 = vmatprep.mubr.bf16.mxu0 0
        %1816 = vmatmul.mubr.bf16.gmra.mrb[0].mxu0 %v1781
        %v1817 = vpop.f32.mrb[0].mxu0
        %v1818 = vadd.f32 0.0, %v1817
        %v1819 = vpop.f32.mrb[0].mxu0
        %v1820 = vpop.f32.mrb[0].mxu0
        %v1821 = vpop.f32.mrb[0].mxu0
        %1822 = vdwg.mxu0
        %v1824 = vsel %vm631, %v1775, 0
        %1826 = vmatprep.subr.bf16.mxu0 0
        %1827 = vmatpush1.bf16.msra.mxu0 %v1119
        %1828 = vmatprep.subr.bf16.mxu0 0
        %1829 = vmatpush1.bf16.msra.mxu0 %v1120
        %1830 = vmatprep.subr.bf16.mxu0 0
        %1831 = vmatpush1.bf16.msra.mxu0 0
        %1832 = vmatprep.subr.bf16.mxu0 0
        %1833 = vmatpush1.bf16.msra.mxu0 0
        %1834 = vmatprep.subr.bf16.mxu0 0
        %1835 = vmatpush1.bf16.msra.mxu0 0
        %1836 = vmatprep.subr.bf16.mxu0 0
        %1837 = vmatpush1.bf16.msra.mxu0 0
        %1838 = vmatprep.subr.bf16.mxu0 0
        %1839 = vmatpush1.bf16.msra.mxu0 0
        %1840 = vmatprep.subr.bf16.mxu0 0
        %1841 = vmatpush1.bf16.msra.mxu0 0
        %1842 = vmatprep.subr.bf16.mxu0 0
        %1843 = vmatpush1.bf16.msra.mxu0 0
        %1844 = vmatprep.subr.bf16.mxu0 0
        %1845 = vmatpush1.bf16.msra.mxu0 0
        %1846 = vmatprep.subr.bf16.mxu0 0
        %1847 = vmatpush1.bf16.msra.mxu0 0
        %1848 = vmatprep.subr.bf16.mxu0 0
        %1849 = vmatpush1.bf16.msra.mxu0 0
        %1850 = vmatprep.subr.bf16.mxu0 0
        %1851 = vmatpush1.bf16.msra.mxu0 0
        %1852 = vmatprep.subr.bf16.mxu0 0
        %1853 = vmatpush1.bf16.msra.mxu0 0
        %1854 = vmatprep.subr.bf16.mxu0 0
        %1855 = vmatpush1.bf16.msra.mxu0 0
        %1856 = vmatprep.subr.bf16.mxu0 0
        %1857 = vmatpush1.bf16.msra.mxu0 0
        %1858 = vmatprep.mubr.bf16.mxu0 0
        %1859 = vmatmul.mubr.bf16.gmra.mrb[0].mxu0 %v1824
        %v1860 = vpop.f32.mrb[0].mxu0
        %v1861 = vadd.f32 %v1818, %v1860
        %v1862 = vpop.f32.mrb[0].mxu0
        %v1863 = vpop.f32.mrb[0].mxu0
        %v1864 = vpop.f32.mrb[0].mxu0
        %1865 = vdwg.mxu0
        %v1866 = vadd.f32 %v1861, %v1170
        %v1867 = vsub.f32 0.0, %v1866
        %v1868 = vmul.f32 %v1867, 1.442695
        %v1869 = vpow.pop %v1868
        %v1870 = vadd.f32 %v1869, 1.0
        %v1871 = vrcp.pop %v1870
        %v1872 = vtanh.pop %v1866
        %v1873 = vmul.f32 %v1871, %v1768
        %1875 = vrot.lane.b32.xlu0 %v1872, 64
        %v1876 = vpop.permute.xlu0 %1875
        %v1878 = vmul.f32 %v1871, %v1876
        %1880 = vrot.lane.b32.xlu0 %v1878, 32
        %v1881 = vpop.permute.xlu0 %1880
        %v1883 = vadd.f32 %v1873, %v1881
        %v1884 = vtanh.pop %v1883
        %1886 = vrot.lane.b32.xlu0 %v1884, 64
        %v1887 = vpop.permute.xlu0 %1886
        %v1889 = vmul.f32 %v1871, %v1887
        %v1890 = vpack.c.bf16 %v1020, %v1020
        %v1891 = vpack.c.bf16 %v1889, %v1889
        %1893 = vrot.lane.b32.xlu0 %v1891, 32
        %v1894 = vpop.permute.xlu0 %1893
        %v1896 = vsel %vm631, %v1894, 0
        %1898 = vmatprep.subr.bf16.mxu0 0
        %1899 = vmatpush1.bf16.msra.mxu0 %v1064
        %1900 = vmatprep.subr.bf16.mxu0 0
        %1901 = vmatpush1.bf16.msra.mxu0 %v1065
        %1902 = vmatprep.subr.bf16.mxu0 0
        %1903 = vmatpush1.bf16.msra.mxu0 0
        %1904 = vmatprep.subr.bf16.mxu0 0
        %1905 = vmatpush1.bf16.msra.mxu0 0
        %1906 = vmatprep.subr.bf16.mxu0 0
        %1907 = vmatpush1.bf16.msra.mxu0 0
        %1908 = vmatprep.subr.bf16.mxu0 0
        %1909 = vmatpush1.bf16.msra.mxu0 0
        %1910 = vmatprep.subr.bf16.mxu0 0
        %1911 = vmatpush1.bf16.msra.mxu0 0
        %1912 = vmatprep.subr.bf16.mxu0 0
        %1913 = vmatpush1.bf16.msra.mxu0 0
        %1914 = vmatprep.subr.bf16.mxu0 0
        %1915 = vmatpush1.bf16.msra.mxu0 0
        %1916 = vmatprep.subr.bf16.mxu0 0
        %1917 = vmatpush1.bf16.msra.mxu0 0
        %1918 = vmatprep.subr.bf16.mxu0 0
        %1919 = vmatpush1.bf16.msra.mxu0 0
        %1920 = vmatprep.subr.bf16.mxu0 0
        %1921 = vmatpush1.bf16.msra.mxu0 0
        %1922 = vmatprep.subr.bf16.mxu0 0
        %1923 = vmatpush1.bf16.msra.mxu0 0
        %1924 = vmatprep.subr.bf16.mxu0 0
        %1925 = vmatpush1.bf16.msra.mxu0 0
        %1926 = vmatprep.subr.bf16.mxu0 0
        %1927 = vmatpush1.bf16.msra.mxu0 0
        %1928 = vmatprep.subr.bf16.mxu0 0
        %1929 = vmatpush1.bf16.msra.mxu0 0
        %1930 = vmatprep.mubr.bf16.mxu0 0
        %1931 = vmatmul.mubr.bf16.gmra.mrb[0].mxu0 %v1896
        %v1932 = vpop.f32.mrb[0].mxu0
        %v1933 = vadd.f32 0.0, %v1932
        %v1934 = vpop.f32.mrb[0].mxu0
        %v1935 = vpop.f32.mrb[0].mxu0
        %v1936 = vpop.f32.mrb[0].mxu0
        %1937 = vdwg.mxu0
        %v1939 = vsel %vm631, %v1890, 0
        %1941 = vmatprep.subr.bf16.mxu0 0
        %1942 = vmatpush1.bf16.msra.mxu0 %v1119
        %1943 = vmatprep.subr.bf16.mxu0 0
        %1944 = vmatpush1.bf16.msra.mxu0 %v1120
        %1945 = vmatprep.subr.bf16.mxu0 0
        %1946 = vmatpush1.bf16.msra.mxu0 0
        %1947 = vmatprep.subr.bf16.mxu0 0
        %1948 = vmatpush1.bf16.msra.mxu0 0
        %1949 = vmatprep.subr.bf16.mxu0 0
        %1950 = vmatpush1.bf16.msra.mxu0 0
        %1951 = vmatprep.subr.bf16.mxu0 0
        %1952 = vmatpush1.bf16.msra.mxu0 0
        %1953 = vmatprep.subr.bf16.mxu0 0
        %1954 = vmatpush1.bf16.msra.mxu0 0
        %1955 = vmatprep.subr.bf16.mxu0 0
        %1956 = vmatpush1.bf16.msra.mxu0 0
        %1957 = vmatprep.subr.bf16.mxu0 0
        %1958 = vmatpush1.bf16.msra.mxu0 0
        %1959 = vmatprep.subr.bf16.mxu0 0
        %1960 = vmatpush1.bf16.msra.mxu0 0
        %1961 = vmatprep.subr.bf16.mxu0 0
        %1962 = vmatpush1.bf16.msra.mxu0 0
        %1963 = vmatprep.subr.bf16.mxu0 0
        %1964 = vmatpush1.bf16.msra.mxu0 0
        %1965 = vmatprep.subr.bf16.mxu0 0
        %1966 = vmatpush1.bf16.msra.mxu0 0
        %1967 = vmatprep.subr.bf16.mxu0 0
        %1968 = vmatpush1.bf16.msra.mxu0 0
        %1969 = vmatprep.subr.bf16.mxu0 0
        %1970 = vmatpush1.bf16.msra.mxu0 0
        %1971 = vmatprep.subr.bf16.mxu0 0
        %1972 = vmatpush1.bf16.msra.mxu0 0
        %1973 = vmatprep.mubr.bf16.mxu0 0
        %1974 = vmatmul.mubr.bf16.gmra.mrb[0].mxu0 %v1939
        %v1975 = vpop.f32.mrb[0].mxu0
        %v1976 = vadd.f32 %v1933, %v1975
        %v1977 = vpop.f32.mrb[0].mxu0
        %v1978 = vpop.f32.mrb[0].mxu0
        %v1979 = vpop.f32.mrb[0].mxu0
        %1980 = vdwg.mxu0
        %v1981 = vadd.f32 %v1976, %v1170
        %v1982 = vsub.f32 0.0, %v1981
        %v1983 = vmul.f32 %v1982, 1.442695
        %v1984 = vpow.pop %v1983
        %v1985 = vadd.f32 %v1984, 1.0
        %v1986 = vrcp.pop %v1985
        %v1987 = vtanh.pop %v1981
        %v1988 = vmul.f32 %v1986, %v1883
        %1990 = vrot.lane.b32.xlu0 %v1987, 64
        %v1991 = vpop.permute.xlu0 %1990
        %v1993 = vmul.f32 %v1986, %v1991
        %1995 = vrot.lane.b32.xlu0 %v1993, 32
        %v1996 = vpop.permute.xlu0 %1995
        %v1998 = vadd.f32 %v1988, %v1996
        %v1999 = vtanh.pop %v1998
        %2001 = vrot.lane.b32.xlu0 %v1999, 64
        %v2002 = vpop.permute.xlu0 %2001
        %v2004 = vmul.f32 %v1986, %v2002
        %s2005 = scalar_lea.vmem %s544, 8 [#allocation14]
        %v2006 = vld [vmem:[%s2005] sm:$0xff]
        %s2007 = scalar_lea.vmem %s552, 8 [#allocation16]
        %v2008 = vld [vmem:[%s2007] sm:$0xff]
        %v2009 = vpack.c.bf16 %v2006, %v2006
        %v2014 = vunpack.c.l.b16 %v1038
        %v2015 = vunpack.c.l.b16 %v1039
        %v2016 = vunpack.c.l.b16 %v1040
        %v2017 = vunpack.c.l.b16 %v1041
        %v2018 = vpack.c.b16 %v2015, %v2014
        %v2019 = vpack.c.b16 %v2017, %v2016
        %v2023 = vsel %vm631, %v2009, 0
        %2025 = vmatprep.subr.bf16.mxu0 0
        %2026 = vmatpush1.bf16.msra.mxu0 %v2018
        %2027 = vmatprep.subr.bf16.mxu0 0
        %2028 = vmatpush1.bf16.msra.mxu0 %v2019
        %2029 = vmatprep.subr.bf16.mxu0 0
        %2030 = vmatpush1.bf16.msra.mxu0 0
        %2031 = vmatprep.subr.bf16.mxu0 0
        %2032 = vmatpush1.bf16.msra.mxu0 0
        %2033 = vmatprep.subr.bf16.mxu0 0
        %2034 = vmatpush1.bf16.msra.mxu0 0
        %2035 = vmatprep.subr.bf16.mxu0 0
        %2036 = vmatpush1.bf16.msra.mxu0 0
        %2037 = vmatprep.subr.bf16.mxu0 0
        %2038 = vmatpush1.bf16.msra.mxu0 0
        %2039 = vmatprep.subr.bf16.mxu0 0
        %2040 = vmatpush1.bf16.msra.mxu0 0
        %2041 = vmatprep.subr.bf16.mxu0 0
        %2042 = vmatpush1.bf16.msra.mxu0 0
        %2043 = vmatprep.subr.bf16.mxu0 0
        %2044 = vmatpush1.bf16.msra.mxu0 0
        %2045 = vmatprep.subr.bf16.mxu0 0
        %2046 = vmatpush1.bf16.msra.mxu0 0
        %2047 = vmatprep.subr.bf16.mxu0 0
        %2048 = vmatpush1.bf16.msra.mxu0 0
        %2049 = vmatprep.subr.bf16.mxu0 0
        %2050 = vmatpush1.bf16.msra.mxu0 0
        %2051 = vmatprep.subr.bf16.mxu0 0
        %2052 = vmatpush1.bf16.msra.mxu0 0
        %2053 = vmatprep.subr.bf16.mxu0 0
        %2054 = vmatpush1.bf16.msra.mxu0 0
        %2055 = vmatprep.subr.bf16.mxu0 0
        %2056 = vmatpush1.bf16.msra.mxu0 0
        %2057 = vmatprep.mubr.bf16.mxu0 0
        %2058 = vmatmul.mubr.bf16.gmra.mrb[0].mxu0 %v2023
        %v2059 = vpop.f32.mrb[0].mxu0
        %v2060 = vadd.f32 0.0, %v2059
        %v2061 = vpop.f32.mrb[0].mxu0
        %v2062 = vpop.f32.mrb[0].mxu0
        %v2063 = vpop.f32.mrb[0].mxu0
        %2064 = vdwg.mxu0
        %v2069 = vunpack.c.l.b16 %v1034
        %v2070 = vunpack.c.l.b16 %v1035
        %v2071 = vunpack.c.l.b16 %v1036
        %v2072 = vunpack.c.l.b16 %v1037
        %v2073 = vpack.c.b16 %v2070, %v2069
        %v2074 = vpack.c.b16 %v2072, %v2071
        %2077 = vmatprep.subr.bf16.mxu0 0
        %2078 = vmatpush1.bf16.msra.mxu0 %v2073
        %2079 = vmatprep.subr.bf16.mxu0 0
        %2080 = vmatpush1.bf16.msra.mxu0 %v2074
        %2081 = vmatprep.subr.bf16.mxu0 0
        %2082 = vmatpush1.bf16.msra.mxu0 0
        %2083 = vmatprep.subr.bf16.mxu0 0
        %2084 = vmatpush1.bf16.msra.mxu0 0
        %2085 = vmatprep.subr.bf16.mxu0 0
        %2086 = vmatpush1.bf16.msra.mxu0 0
        %2087 = vmatprep.subr.bf16.mxu0 0
        %2088 = vmatpush1.bf16.msra.mxu0 0
        %2089 = vmatprep.subr.bf16.mxu0 0
        %2090 = vmatpush1.bf16.msra.mxu0 0
        %2091 = vmatprep.subr.bf16.mxu0 0
        %2092 = vmatpush1.bf16.msra.mxu0 0
        %2093 = vmatprep.subr.bf16.mxu0 0
        %2094 = vmatpush1.bf16.msra.mxu0 0
        %2095 = vmatprep.subr.bf16.mxu0 0
        %2096 = vmatpush1.bf16.msra.mxu0 0
        %2097 = vmatprep.subr.bf16.mxu0 0
        %2098 = vmatpush1.bf16.msra.mxu0 0
        %2099 = vmatprep.subr.bf16.mxu0 0
        %2100 = vmatpush1.bf16.msra.mxu0 0
        %2101 = vmatprep.subr.bf16.mxu0 0
        %2102 = vmatpush1.bf16.msra.mxu0 0
        %2103 = vmatprep.subr.bf16.mxu0 0
        %2104 = vmatpush1.bf16.msra.mxu0 0
        %2105 = vmatprep.subr.bf16.mxu0 0
        %2106 = vmatpush1.bf16.msra.mxu0 0
        %2107 = vmatprep.subr.bf16.mxu0 0
        %2108 = vmatpush1.bf16.msra.mxu0 0
        %2109 = vmatprep.mubr.bf16.mxu0 0
        %2110 = vmatmul.mubr.bf16.gmra.mrb[0].mxu0 %v1939
        %v2111 = vpop.f32.mrb[0].mxu0
        %v2112 = vadd.f32 %v2060, %v2111
        %v2113 = vpop.f32.mrb[0].mxu0
        %v2114 = vpop.f32.mrb[0].mxu0
        %v2115 = vpop.f32.mrb[0].mxu0
        %2116 = vdwg.mxu0
        %v2118 = vlaneseq
        %v2119 = vshrl.u32 %v2118, 7
        %v2120 = vsub.s32 0, %v2119
        %v2121 = vrot.slane %v1042, %v2120
        %v2123 = vadd.f32 %v2112, %v2121
        %v2124 = vsub.f32 0.0, %v2123
        %v2125 = vmul.f32 %v2124, 1.442695
        %v2126 = vpow.pop %v2125
        %v2127 = vadd.f32 %v2126, 1.0
        %v2128 = vrcp.pop %v2127
        %v2129 = vtanh.pop %v2123
        %2131 = vrot.lane.b32.xlu0 %v2008, 32
        %v2132 = vpop.permute.xlu0 %2131
        %v2134 = vmul.f32 %v2128, %v2132
        %2136 = vrot.lane.b32.xlu0 %v2129, 64
        %v2137 = vpop.permute.xlu0 %2136
        %v2139 = vmul.f32 %v2128, %v2137
        %2141 = vrot.lane.b32.xlu0 %v2139, 32
        %v2142 = vpop.permute.xlu0 %2141
        %v2144 = vadd.f32 %v2134, %v2142
        %v2145 = vtanh.pop %v2144
        %2147 = vrot.lane.b32.xlu0 %v2145, 64
        %v2148 = vpop.permute.xlu0 %2147
        %v2150 = vmul.f32 %v2128, %v2148
        %2152 = vrot.lane.b32.xlu0 %v2004, 32
        %v2153 = vpop.permute.xlu0 %2152
        %2156 = vrot.lane.b32.xlu0 %v2150, 64
        %v2157 = vpop.permute.xlu0 %2156
        %v2159 = vsel %vm631, %v2153, %v2157
        %v2160 = vpack.c.bf16 %v2159, %v2159
        %v2162 = vlaneseq
        %v2163 = vshrl.u32 %v2162, 7
        %v2164 = vsub.s32 0, %v2163
        %v2165 = vrot.slane %v1051, %v2164
        %v2175 = vunpack.c.l.b16 %v1043
        %v2176 = vunpack.c.l.b16 %v1044
        %v2177 = vunpack.c.l.b16 %v1045
        %v2178 = vunpack.c.l.b16 %v1046
        %v2179 = vunpack.c.l.b16 %v1047
        %v2180 = vunpack.c.l.b16 %v1048
        %v2181 = vunpack.c.l.b16 %v1049
        %v2182 = vunpack.c.l.b16 %v1050
        %v2183 = vpack.c.b16 %v2176, %v2175
        %v2184 = vpack.c.b16 %v2178, %v2177
        %v2185 = vpack.c.b16 %v2180, %v2179
        %v2186 = vpack.c.b16 %v2182, %v2181
        %vm2191 = vcmask 523264
        %v2193 = vsel %vm2191, %v2160, 0
        %2195 = vmatprep.subr.bf16.mxu0 0
        %2196 = vmatpush1.bf16.msra.mxu0 %v2183
        %2197 = vmatprep.subr.bf16.mxu0 0
        %2198 = vmatpush1.bf16.msra.mxu0 %v2184
        %2199 = vmatprep.subr.bf16.mxu0 0
        %2200 = vmatpush1.bf16.msra.mxu0 %v2185
        %2201 = vmatprep.subr.bf16.mxu0 0
        %2202 = vmatpush1.bf16.msra.mxu0 %v2186
        %2203 = vmatprep.subr.bf16.mxu0 0
        %2204 = vmatpush1.bf16.msra.mxu0 0
        %2205 = vmatprep.subr.bf16.mxu0 0
        %2206 = vmatpush1.bf16.msra.mxu0 0
        %2207 = vmatprep.subr.bf16.mxu0 0
        %2208 = vmatpush1.bf16.msra.mxu0 0
        %2209 = vmatprep.subr.bf16.mxu0 0
        %2210 = vmatpush1.bf16.msra.mxu0 0
        %2211 = vmatprep.subr.bf16.mxu0 0
        %2212 = vmatpush1.bf16.msra.mxu0 0
        %2213 = vmatprep.subr.bf16.mxu0 0
        %2214 = vmatpush1.bf16.msra.mxu0 0
        %2215 = vmatprep.subr.bf16.mxu0 0
        %2216 = vmatpush1.bf16.msra.mxu0 0
        %2217 = vmatprep.subr.bf16.mxu0 0
        %2218 = vmatpush1.bf16.msra.mxu0 0
        %2219 = vmatprep.subr.bf16.mxu0 0
        %2220 = vmatpush1.bf16.msra.mxu0 0
        %2221 = vmatprep.subr.bf16.mxu0 0
        %2222 = vmatpush1.bf16.msra.mxu0 0
        %2223 = vmatprep.subr.bf16.mxu0 0
        %2224 = vmatpush1.bf16.msra.mxu0 0
        %2225 = vmatprep.subr.bf16.mxu0 0
        %2226 = vmatpush1.bf16.msra.mxu0 0
        %2227 = vmatprep.mubr.bf16.mxu0 0
        %2228 = vmatmul.mubr.bf16.gmra.mrb[0].mxu0 %v2193
        %v2229 = vpop.f32.mrb[0].mxu0
        %v2230 = vadd.f32 %v2165, %v2229
        %v2231 = vpop.f32.mrb[0].mxu0
        %v2232 = vpop.f32.mrb[0].mxu0
        %v2233 = vpop.f32.mrb[0].mxu0
        %2234 = vdwg.mxu0
        %s2235 = scalar_lea.vmem %s599, 56 [#allocation17]
        %2236 = vst [vmem:[%s2235] sm:$0xff] %v2230
        %v2237 = vpack.c.bf16 %v2150, %v2150
        %2239 = vrot.lane.b32.xlu0 %v2237, 32
        %v2240 = vpop.permute.xlu0 %2239
        %v2242 = vsel %vm631, %v2240, 0
        %2244 = vmatprep.subr.bf16.mxu0 0
        %2245 = vmatpush1.bf16.msra.mxu0 %v2018
        %2246 = vmatprep.subr.bf16.mxu0 0
        %2247 = vmatpush1.bf16.msra.mxu0 %v2019
        %2248 = vmatprep.subr.bf16.mxu0 0
        %2249 = vmatpush1.bf16.msra.mxu0 0
        %2250 = vmatprep.subr.bf16.mxu0 0
        %2251 = vmatpush1.bf16.msra.mxu0 0
        %2252 = vmatprep.subr.bf16.mxu0 0
        %2253 = vmatpush1.bf16.msra.mxu0 0
        %2254 = vmatprep.subr.bf16.mxu0 0
        %2255 = vmatpush1.bf16.msra.mxu0 0
        %2256 = vmatprep.subr.bf16.mxu0 0
        %2257 = vmatpush1.bf16.msra.mxu0 0
        %2258 = vmatprep.subr.bf16.mxu0 0
        %2259 = vmatpush1.bf16.msra.mxu0 0
        %2260 = vmatprep.subr.bf16.mxu0 0
        %2261 = vmatpush1.bf16.msra.mxu0 0
        %2262 = vmatprep.subr.bf16.mxu0 0
        %2263 = vmatpush1.bf16.msra.mxu0 0
        %2264 = vmatprep.subr.bf16.mxu0 0
        %2265 = vmatpush1.bf16.msra.mxu0 0
        %2266 = vmatprep.subr.bf16.mxu0 0
        %2267 = vmatpush1.bf16.msra.mxu0 0
        %2268 = vmatprep.subr.bf16.mxu0 0
        %2269 = vmatpush1.bf16.msra.mxu0 0
        %2270 = vmatprep.subr.bf16.mxu0 0
        %2271 = vmatpush1.bf16.msra.mxu0 0
        %2272 = vmatprep.subr.bf16.mxu0 0
        %2273 = vmatpush1.bf16.msra.mxu0 0
        %2274 = vmatprep.subr.bf16.mxu0 0
        %2275 = vmatpush1.bf16.msra.mxu0 0
        %2276 = vmatprep.mubr.bf16.mxu0 0
        %2277 = vmatmul.mubr.bf16.gmra.mrb[0].mxu0 %v2242
        %v2278 = vpop.f32.mrb[0].mxu0
        %v2279 = vadd.f32 0.0, %v2278
        %v2280 = vpop.f32.mrb[0].mxu0
        %v2281 = vpop.f32.mrb[0].mxu0
        %v2282 = vpop.f32.mrb[0].mxu0
        %2283 = vdwg.mxu0
        %2284 = vmatprep.subr.bf16.mxu0 0
        %2285 = vmatpush1.bf16.msra.mxu0 %v2073
        %2286 = vmatprep.subr.bf16.mxu0 0
        %2287 = vmatpush1.bf16.msra.mxu0 %v2074
        %2288 = vmatprep.subr.bf16.mxu0 0
        %2289 = vmatpush1.bf16.msra.mxu0 0
        %2290 = vmatprep.subr.bf16.mxu0 0
        %2291 = vmatpush1.bf16.msra.mxu0 0
        %2292 = vmatprep.subr.bf16.mxu0 0
        %2293 = vmatpush1.bf16.msra.mxu0 0
        %2294 = vmatprep.subr.bf16.mxu0 0
        %2295 = vmatpush1.bf16.msra.mxu0 0
        %2296 = vmatprep.subr.bf16.mxu0 0
        %2297 = vmatpush1.bf16.msra.mxu0 0
        %2298 = vmatprep.subr.bf16.mxu0 0
        %2299 = vmatpush1.bf16.msra.mxu0 0
        %2300 = vmatprep.subr.bf16.mxu0 0
        %2301 = vmatpush1.bf16.msra.mxu0 0
        %2302 = vmatprep.subr.bf16.mxu0 0
        %2303 = vmatpush1.bf16.msra.mxu0 0
        %2304 = vmatprep.subr.bf16.mxu0 0
        %2305 = vmatpush1.bf16.msra.mxu0 0
        %2306 = vmatprep.subr.bf16.mxu0 0
        %2307 = vmatpush1.bf16.msra.mxu0 0
        %2308 = vmatprep.subr.bf16.mxu0 0
        %2309 = vmatpush1.bf16.msra.mxu0 0
        %2310 = vmatprep.subr.bf16.mxu0 0
        %2311 = vmatpush1.bf16.msra.mxu0 0
        %2312 = vmatprep.subr.bf16.mxu0 0
        %2313 = vmatpush1.bf16.msra.mxu0 0
        %2314 = vmatprep.subr.bf16.mxu0 0
        %2315 = vmatpush1.bf16.msra.mxu0 0
        %2316 = vmatprep.mubr.bf16.mxu0 0
        %2317 = vmatmul.mubr.bf16.gmra.mrb[0].mxu0 %v1824
        %v2318 = vpop.f32.mrb[0].mxu0
        %v2319 = vadd.f32 %v2279, %v2318
        %v2320 = vpop.f32.mrb[0].mxu0
        %v2321 = vpop.f32.mrb[0].mxu0
        %v2322 = vpop.f32.mrb[0].mxu0
        %2323 = vdwg.mxu0
        %v2324 = vadd.f32 %v2319, %v2121
        %v2325 = vsub.f32 0.0, %v2324
        %v2326 = vmul.f32 %v2325, 1.442695
        %v2327 = vpow.pop %v2326
        %v2328 = vadd.f32 %v2327, 1.0
        %v2329 = vrcp.pop %v2328
        %v2330 = vtanh.pop %v2324
        %v2331 = vmul.f32 %v2329, %v2144
        %2333 = vrot.lane.b32.xlu0 %v2330, 64
        %v2334 = vpop.permute.xlu0 %2333
        %v2336 = vmul.f32 %v2329, %v2334
        %2338 = vrot.lane.b32.xlu0 %v2336, 32
        %v2339 = vpop.permute.xlu0 %2338
        %v2341 = vadd.f32 %v2331, %v2339
        %v2342 = vtanh.pop %v2341
        %2344 = vrot.lane.b32.xlu0 %v2342, 64
        %v2345 = vpop.permute.xlu0 %2344
        %v2347 = vmul.f32 %v2329, %v2345
        %2349 = vrot.lane.b32.xlu0 %v1889, 32
        %v2350 = vpop.permute.xlu0 %2349
        %2353 = vrot.lane.b32.xlu0 %v2347, 64
        %v2354 = vpop.permute.xlu0 %2353
        %v2356 = vsel %vm631, %v2350, %v2354
        %v2357 = vpack.c.bf16 %v2356, %v2356
        %v2359 = vsel %vm2191, %v2357, 0
        %2361 = vmatprep.subr.bf16.mxu0 0
        %2362 = vmatpush1.bf16.msra.mxu0 %v2183
        %2363 = vmatprep.subr.bf16.mxu0 0
        %2364 = vmatpush1.bf16.msra.mxu0 %v2184
        %2365 = vmatprep.subr.bf16.mxu0 0
        %2366 = vmatpush1.bf16.msra.mxu0 %v2185
        %2367 = vmatprep.subr.bf16.mxu0 0
        %2368 = vmatpush1.bf16.msra.mxu0 %v2186
        %2369 = vmatprep.subr.bf16.mxu0 0
        %2370 = vmatpush1.bf16.msra.mxu0 0
        %2371 = vmatprep.subr.bf16.mxu0 0
        %2372 = vmatpush1.bf16.msra.mxu0 0
        %2373 = vmatprep.subr.bf16.mxu0 0
        %2374 = vmatpush1.bf16.msra.mxu0 0
        %2375 = vmatprep.subr.bf16.mxu0 0
        %2376 = vmatpush1.bf16.msra.mxu0 0
        %2377 = vmatprep.subr.bf16.mxu0 0
        %2378 = vmatpush1.bf16.msra.mxu0 0
        %2379 = vmatprep.subr.bf16.mxu0 0
        %2380 = vmatpush1.bf16.msra.mxu0 0
        %2381 = vmatprep.subr.bf16.mxu0 0
        %2382 = vmatpush1.bf16.msra.mxu0 0
        %2383 = vmatprep.subr.bf16.mxu0 0
        %2384 = vmatpush1.bf16.msra.mxu0 0
        %2385 = vmatprep.subr.bf16.mxu0 0
        %2386 = vmatpush1.bf16.msra.mxu0 0
        %2387 = vmatprep.subr.bf16.mxu0 0
        %2388 = vmatpush1.bf16.msra.mxu0 0
        %2389 = vmatprep.subr.bf16.mxu0 0
        %2390 = vmatpush1.bf16.msra.mxu0 0
        %2391 = vmatprep.subr.bf16.mxu0 0
        %2392 = vmatpush1.bf16.msra.mxu0 0
        %2393 = vmatprep.mubr.bf16.mxu0 0
        %2394 = vmatmul.mubr.bf16.gmra.mrb[0].mxu0 %v2359
        %v2395 = vpop.f32.mrb[0].mxu0
        %v2396 = vadd.f32 %v2165, %v2395
        %v2397 = vpop.f32.mrb[0].mxu0
        %v2398 = vpop.f32.mrb[0].mxu0
        %v2399 = vpop.f32.mrb[0].mxu0
        %2400 = vdwg.mxu0
        %s2401 = scalar_lea.vmem %s599, 48 [#allocation17]
        %2402 = vst [vmem:[%s2401] sm:$0xff] %v2396
        %v2403 = vpack.c.bf16 %v2347, %v2347
        %2405 = vrot.lane.b32.xlu0 %v2403, 32
        %v2406 = vpop.permute.xlu0 %2405
        %v2408 = vsel %vm631, %v2406, 0
        %2410 = vmatprep.subr.bf16.mxu0 0
        %2411 = vmatpush1.bf16.msra.mxu0 %v2018
        %2412 = vmatprep.subr.bf16.mxu0 0
        %2413 = vmatpush1.bf16.msra.mxu0 %v2019
        %2414 = vmatprep.subr.bf16.mxu0 0
        %2415 = vmatpush1.bf16.msra.mxu0 0
        %2416 = vmatprep.subr.bf16.mxu0 0
        %2417 = vmatpush1.bf16.msra.mxu0 0
        %2418 = vmatprep.subr.bf16.mxu0 0
        %2419 = vmatpush1.bf16.msra.mxu0 0
        %2420 = vmatprep.subr.bf16.mxu0 0
        %2421 = vmatpush1.bf16.msra.mxu0 0
        %2422 = vmatprep.subr.bf16.mxu0 0
        %2423 = vmatpush1.bf16.msra.mxu0 0
        %2424 = vmatprep.subr.bf16.mxu0 0
        %2425 = vmatpush1.bf16.msra.mxu0 0
        %2426 = vmatprep.subr.bf16.mxu0 0
        %2427 = vmatpush1.bf16.msra.mxu0 0
        %2428 = vmatprep.subr.bf16.mxu0 0
        %2429 = vmatpush1.bf16.msra.mxu0 0
        %2430 = vmatprep.subr.bf16.mxu0 0
        %2431 = vmatpush1.bf16.msra.mxu0 0
        %2432 = vmatprep.subr.bf16.mxu0 0
        %2433 = vmatpush1.bf16.msra.mxu0 0
        %2434 = vmatprep.subr.bf16.mxu0 0
        %2435 = vmatpush1.bf16.msra.mxu0 0
        %2436 = vmatprep.subr.bf16.mxu0 0
        %2437 = vmatpush1.bf16.msra.mxu0 0
        %2438 = vmatprep.subr.bf16.mxu0 0
        %2439 = vmatpush1.bf16.msra.mxu0 0
        %2440 = vmatprep.subr.bf16.mxu0 0
        %2441 = vmatpush1.bf16.msra.mxu0 0
        %2442 = vmatprep.mubr.bf16.mxu0 0
        %2443 = vmatmul.mubr.bf16.gmra.mrb[0].mxu0 %v2408
        %v2444 = vpop.f32.mrb[0].mxu0
        %v2445 = vadd.f32 0.0, %v2444
        %v2446 = vpop.f32.mrb[0].mxu0
        %v2447 = vpop.f32.mrb[0].mxu0
        %v2448 = vpop.f32.mrb[0].mxu0
        %2449 = vdwg.mxu0
        %2450 = vmatprep.subr.bf16.mxu0 0
        %2451 = vmatpush1.bf16.msra.mxu0 %v2073
        %2452 = vmatprep.subr.bf16.mxu0 0
        %2453 = vmatpush1.bf16.msra.mxu0 %v2074
        %2454 = vmatprep.subr.bf16.mxu0 0
        %2455 = vmatpush1.bf16.msra.mxu0 0
        %2456 = vmatprep.subr.bf16.mxu0 0
        %2457 = vmatpush1.bf16.msra.mxu0 0
        %2458 = vmatprep.subr.bf16.mxu0 0
        %2459 = vmatpush1.bf16.msra.mxu0 0
        %2460 = vmatprep.subr.bf16.mxu0 0
        %2461 = vmatpush1.bf16.msra.mxu0 0
        %2462 = vmatprep.subr.bf16.mxu0 0
        %2463 = vmatpush1.bf16.msra.mxu0 0
        %2464 = vmatprep.subr.bf16.mxu0 0
        %2465 = vmatpush1.bf16.msra.mxu0 0
        %2466 = vmatprep.subr.bf16.mxu0 0
        %2467 = vmatpush1.bf16.msra.mxu0 0
        %2468 = vmatprep.subr.bf16.mxu0 0
        %2469 = vmatpush1.bf16.msra.mxu0 0
        %2470 = vmatprep.subr.bf16.mxu0 0
        %2471 = vmatpush1.bf16.msra.mxu0 0
        %2472 = vmatprep.subr.bf16.mxu0 0
        %2473 = vmatpush1.bf16.msra.mxu0 0
        %2474 = vmatprep.subr.bf16.mxu0 0
        %2475 = vmatpush1.bf16.msra.mxu0 0
        %2476 = vmatprep.subr.bf16.mxu0 0
        %2477 = vmatpush1.bf16.msra.mxu0 0
        %2478 = vmatprep.subr.bf16.mxu0 0
        %2479 = vmatpush1.bf16.msra.mxu0 0
        %2480 = vmatprep.subr.bf16.mxu0 0
        %2481 = vmatpush1.bf16.msra.mxu0 0
        %2482 = vmatprep.mubr.bf16.mxu0 0
        %2483 = vmatmul.mubr.bf16.gmra.mrb[0].mxu0 %v1709
        %v2484 = vpop.f32.mrb[0].mxu0
        %v2485 = vadd.f32 %v2445, %v2484
        %v2486 = vpop.f32.mrb[0].mxu0
        %v2487 = vpop.f32.mrb[0].mxu0
        %v2488 = vpop.f32.mrb[0].mxu0
        %2489 = vdwg.mxu0
        %v2490 = vadd.f32 %v2485, %v2121
        %v2491 = vsub.f32 0.0, %v2490
        %v2492 = vmul.f32 %v2491, 1.442695
        %v2493 = vpow.pop %v2492
        %v2494 = vadd.f32 %v2493, 1.0
        %v2495 = vrcp.pop %v2494
        %v2496 = vtanh.pop %v2490
        %v2497 = vmul.f32 %v2495, %v2341
        %2499 = vrot.lane.b32.xlu0 %v2496, 64
        %v2500 = vpop.permute.xlu0 %2499
        %v2502 = vmul.f32 %v2495, %v2500
        %2504 = vrot.lane.b32.xlu0 %v2502, 32
        %v2505 = vpop.permute.xlu0 %2504
        %v2507 = vadd.f32 %v2497, %v2505
        %v2508 = vtanh.pop %v2507
        %2510 = vrot.lane.b32.xlu0 %v2508, 64
        %v2511 = vpop.permute.xlu0 %2510
        %v2513 = vmul.f32 %v2495, %v2511
        %2515 = vrot.lane.b32.xlu0 %v1774, 32
        %v2516 = vpop.permute.xlu0 %2515
        %2519 = vrot.lane.b32.xlu0 %v2513, 64
        %v2520 = vpop.permute.xlu0 %2519
        %v2522 = vsel %vm631, %v2516, %v2520
        %v2523 = vpack.c.bf16 %v2522, %v2522
        %v2525 = vsel %vm2191, %v2523, 0
        %2527 = vmatprep.subr.bf16.mxu0 0
        %2528 = vmatpush1.bf16.msra.mxu0 %v2183
        %2529 = vmatprep.subr.bf16.mxu0 0
        %2530 = vmatpush1.bf16.msra.mxu0 %v2184
        %2531 = vmatprep.subr.bf16.mxu0 0
        %2532 = vmatpush1.bf16.msra.mxu0 %v2185
        %2533 = vmatprep.subr.bf16.mxu0 0
        %2534 = vmatpush1.bf16.msra.mxu0 %v2186
        %2535 = vmatprep.subr.bf16.mxu0 0
        %2536 = vmatpush1.bf16.msra.mxu0 0
        %2537 = vmatprep.subr.bf16.mxu0 0
        %2538 = vmatpush1.bf16.msra.mxu0 0
        %2539 = vmatprep.subr.bf16.mxu0 0
        %2540 = vmatpush1.bf16.msra.mxu0 0
        %2541 = vmatprep.subr.bf16.mxu0 0
        %2542 = vmatpush1.bf16.msra.mxu0 0
        %2543 = vmatprep.subr.bf16.mxu0 0
        %2544 = vmatpush1.bf16.msra.mxu0 0
        %2545 = vmatprep.subr.bf16.mxu0 0
        %2546 = vmatpush1.bf16.msra.mxu0 0
        %2547 = vmatprep.subr.bf16.mxu0 0
        %2548 = vmatpush1.bf16.msra.mxu0 0
        %2549 = vmatprep.subr.bf16.mxu0 0
        %2550 = vmatpush1.bf16.msra.mxu0 0
        %2551 = vmatprep.subr.bf16.mxu0 0
        %2552 = vmatpush1.bf16.msra.mxu0 0
        %2553 = vmatprep.subr.bf16.mxu0 0
        %2554 = vmatpush1.bf16.msra.mxu0 0
        %2555 = vmatprep.subr.bf16.mxu0 0
        %2556 = vmatpush1.bf16.msra.mxu0 0
        %2557 = vmatprep.subr.bf16.mxu0 0
        %2558 = vmatpush1.bf16.msra.mxu0 0
        %2559 = vmatprep.mubr.bf16.mxu0 0
        %2560 = vmatmul.mubr.bf16.gmra.mrb[0].mxu0 %v2525
        %v2561 = vpop.f32.mrb[0].mxu0
        %v2562 = vadd.f32 %v2165, %v2561
        %v2563 = vpop.f32.mrb[0].mxu0
        %v2564 = vpop.f32.mrb[0].mxu0
        %v2565 = vpop.f32.mrb[0].mxu0
        %2566 = vdwg.mxu0
        %s2567 = scalar_lea.vmem %s599, 40 [#allocation17]
        %2568 = vst [vmem:[%s2567] sm:$0xff] %v2562
        %v2569 = vpack.c.bf16 %v2513, %v2513
        %2571 = vrot.lane.b32.xlu0 %v2569, 32
        %v2572 = vpop.permute.xlu0 %2571
        %v2574 = vsel %vm631, %v2572, 0
        %2576 = vmatprep.subr.bf16.mxu0 0
        %2577 = vmatpush1.bf16.msra.mxu0 %v2018
        %2578 = vmatprep.subr.bf16.mxu0 0
        %2579 = vmatpush1.bf16.msra.mxu0 %v2019
        %2580 = vmatprep.subr.bf16.mxu0 0
        %2581 = vmatpush1.bf16.msra.mxu0 0
        %2582 = vmatprep.subr.bf16.mxu0 0
        %2583 = vmatpush1.bf16.msra.mxu0 0
        %2584 = vmatprep.subr.bf16.mxu0 0
        %2585 = vmatpush1.bf16.msra.mxu0 0
        %2586 = vmatprep.subr.bf16.mxu0 0
        %2587 = vmatpush1.bf16.msra.mxu0 0
        %2588 = vmatprep.subr.bf16.mxu0 0
        %2589 = vmatpush1.bf16.msra.mxu0 0
        %2590 = vmatprep.subr.bf16.mxu0 0
        %2591 = vmatpush1.bf16.msra.mxu0 0
        %2592 = vmatprep.subr.bf16.mxu0 0
        %2593 = vmatpush1.bf16.msra.mxu0 0
        %2594 = vmatprep.subr.bf16.mxu0 0
        %2595 = vmatpush1.bf16.msra.mxu0 0
        %2596 = vmatprep.subr.bf16.mxu0 0
        %2597 = vmatpush1.bf16.msra.mxu0 0
        %2598 = vmatprep.subr.bf16.mxu0 0
        %2599 = vmatpush1.bf16.msra.mxu0 0
        %2600 = vmatprep.subr.bf16.mxu0 0
        %2601 = vmatpush1.bf16.msra.mxu0 0
        %2602 = vmatprep.subr.bf16.mxu0 0
        %2603 = vmatpush1.bf16.msra.mxu0 0
        %2604 = vmatprep.subr.bf16.mxu0 0
        %2605 = vmatpush1.bf16.msra.mxu0 0
        %2606 = vmatprep.subr.bf16.mxu0 0
        %2607 = vmatpush1.bf16.msra.mxu0 0
        %2608 = vmatprep.mubr.bf16.mxu0 0
        %2609 = vmatmul.mubr.bf16.gmra.mrb[0].mxu0 %v2574
        %v2610 = vpop.f32.mrb[0].mxu0
        %v2611 = vadd.f32 0.0, %v2610
        %v2612 = vpop.f32.mrb[0].mxu0
        %v2613 = vpop.f32.mrb[0].mxu0
        %v2614 = vpop.f32.mrb[0].mxu0
        %2615 = vdwg.mxu0
        %2616 = vmatprep.subr.bf16.mxu0 0
        %2617 = vmatpush1.bf16.msra.mxu0 %v2073
        %2618 = vmatprep.subr.bf16.mxu0 0
        %2619 = vmatpush1.bf16.msra.mxu0 %v2074
        %2620 = vmatprep.subr.bf16.mxu0 0
        %2621 = vmatpush1.bf16.msra.mxu0 0
        %2622 = vmatprep.subr.bf16.mxu0 0
        %2623 = vmatpush1.bf16.msra.mxu0 0
        %2624 = vmatprep.subr.bf16.mxu0 0
        %2625 = vmatpush1.bf16.msra.mxu0 0
        %2626 = vmatprep.subr.bf16.mxu0 0
        %2627 = vmatpush1.bf16.msra.mxu0 0
        %2628 = vmatprep.subr.bf16.mxu0 0
        %2629 = vmatpush1.bf16.msra.mxu0 0
        %2630 = vmatprep.subr.bf16.mxu0 0
        %2631 = vmatpush1.bf16.msra.mxu0 0
        %2632 = vmatprep.subr.bf16.mxu0 0
        %2633 = vmatpush1.bf16.msra.mxu0 0
        %2634 = vmatprep.subr.bf16.mxu0 0
        %2635 = vmatpush1.bf16.msra.mxu0 0
        %2636 = vmatprep.subr.bf16.mxu0 0
        %2637 = vmatpush1.bf16.msra.mxu0 0
        %2638 = vmatprep.subr.bf16.mxu0 0
        %2639 = vmatpush1.bf16.msra.mxu0 0
        %2640 = vmatprep.subr.bf16.mxu0 0
        %2641 = vmatpush1.bf16.msra.mxu0 0
        %2642 = vmatprep.subr.bf16.mxu0 0
        %2643 = vmatpush1.bf16.msra.mxu0 0
        %2644 = vmatprep.subr.bf16.mxu0 0
        %2645 = vmatpush1.bf16.msra.mxu0 0
        %2646 = vmatprep.subr.bf16.mxu0 0
        %2647 = vmatpush1.bf16.msra.mxu0 0
        %2648 = vmatprep.mubr.bf16.mxu0 0
        %2649 = vmatmul.mubr.bf16.gmra.mrb[0].mxu0 %v1594
        %v2650 = vpop.f32.mrb[0].mxu0
        %v2651 = vadd.f32 %v2611, %v2650
        %v2652 = vpop.f32.mrb[0].mxu0
        %v2653 = vpop.f32.mrb[0].mxu0
        %v2654 = vpop.f32.mrb[0].mxu0
        %2655 = vdwg.mxu0
        %v2656 = vadd.f32 %v2651, %v2121
        %v2657 = vsub.f32 0.0, %v2656
        %v2658 = vmul.f32 %v2657, 1.442695
        %v2659 = vpow.pop %v2658
        %v2660 = vadd.f32 %v2659, 1.0
        %v2661 = vrcp.pop %v2660
        %v2662 = vtanh.pop %v2656
        %v2663 = vmul.f32 %v2661, %v2507
        %2665 = vrot.lane.b32.xlu0 %v2662, 64
        %v2666 = vpop.permute.xlu0 %2665
        %v2668 = vmul.f32 %v2661, %v2666
        %2670 = vrot.lane.b32.xlu0 %v2668, 32
        %v2671 = vpop.permute.xlu0 %2670
        %v2673 = vadd.f32 %v2663, %v2671
        %v2674 = vtanh.pop %v2673
        %2676 = vrot.lane.b32.xlu0 %v2674, 64
        %v2677 = vpop.permute.xlu0 %2676
        %v2679 = vmul.f32 %v2661, %v2677
        %2681 = vrot.lane.b32.xlu0 %v1659, 32
        %v2682 = vpop.permute.xlu0 %2681
        %2685 = vrot.lane.b32.xlu0 %v2679, 64
        %v2686 = vpop.permute.xlu0 %2685
        %v2688 = vsel %vm631, %v2682, %v2686
        %v2689 = vpack.c.bf16 %v2688, %v2688
        %v2691 = vsel %vm2191, %v2689, 0
        %2693 = vmatprep.subr.bf16.mxu0 0
        %2694 = vmatpush1.bf16.msra.mxu0 %v2183
        %2695 = vmatprep.subr.bf16.mxu0 0
        %2696 = vmatpush1.bf16.msra.mxu0 %v2184
        %2697 = vmatprep.subr.bf16.mxu0 0
        %2698 = vmatpush1.bf16.msra.mxu0 %v2185
        %2699 = vmatprep.subr.bf16.mxu0 0
        %2700 = vmatpush1.bf16.msra.mxu0 %v2186
        %2701 = vmatprep.subr.bf16.mxu0 0
        %2702 = vmatpush1.bf16.msra.mxu0 0
        %2703 = vmatprep.subr.bf16.mxu0 0
        %2704 = vmatpush1.bf16.msra.mxu0 0
        %2705 = vmatprep.subr.bf16.mxu0 0
        %2706 = vmatpush1.bf16.msra.mxu0 0
        %2707 = vmatprep.subr.bf16.mxu0 0
        %2708 = vmatpush1.bf16.msra.mxu0 0
        %2709 = vmatprep.subr.bf16.mxu0 0
        %2710 = vmatpush1.bf16.msra.mxu0 0
        %2711 = vmatprep.subr.bf16.mxu0 0
        %2712 = vmatpush1.bf16.msra.mxu0 0
        %2713 = vmatprep.subr.bf16.mxu0 0
        %2714 = vmatpush1.bf16.msra.mxu0 0
        %2715 = vmatprep.subr.bf16.mxu0 0
        %2716 = vmatpush1.bf16.msra.mxu0 0
        %2717 = vmatprep.subr.bf16.mxu0 0
        %2718 = vmatpush1.bf16.msra.mxu0 0
        %2719 = vmatprep.subr.bf16.mxu0 0
        %2720 = vmatpush1.bf16.msra.mxu0 0
        %2721 = vmatprep.subr.bf16.mxu0 0
        %2722 = vmatpush1.bf16.msra.mxu0 0
        %2723 = vmatprep.subr.bf16.mxu0 0
        %2724 = vmatpush1.bf16.msra.mxu0 0
        %2725 = vmatprep.mubr.bf16.mxu0 0
        %2726 = vmatmul.mubr.bf16.gmra.mrb[0].mxu0 %v2691
        %v2727 = vpop.f32.mrb[0].mxu0
        %v2728 = vadd.f32 %v2165, %v2727
        %v2729 = vpop.f32.mrb[0].mxu0
        %v2730 = vpop.f32.mrb[0].mxu0
        %v2731 = vpop.f32.mrb[0].mxu0
        %2732 = vdwg.mxu0
        %s2733 = scalar_lea.vmem %s599, 32 [#allocation17]
        %2734 = vst [vmem:[%s2733] sm:$0xff] %v2728
        %v2735 = vpack.c.bf16 %v2679, %v2679
        %2737 = vrot.lane.b32.xlu0 %v2735, 32
        %v2738 = vpop.permute.xlu0 %2737
        %v2740 = vsel %vm631, %v2738, 0
        %2742 = vmatprep.subr.bf16.mxu0 0
        %2743 = vmatpush1.bf16.msra.mxu0 %v2018
        %2744 = vmatprep.subr.bf16.mxu0 0
        %2745 = vmatpush1.bf16.msra.mxu0 %v2019
        %2746 = vmatprep.subr.bf16.mxu0 0
        %2747 = vmatpush1.bf16.msra.mxu0 0
        %2748 = vmatprep.subr.bf16.mxu0 0
        %2749 = vmatpush1.bf16.msra.mxu0 0
        %2750 = vmatprep.subr.bf16.mxu0 0
        %2751 = vmatpush1.bf16.msra.mxu0 0
        %2752 = vmatprep.subr.bf16.mxu0 0
        %2753 = vmatpush1.bf16.msra.mxu0 0
        %2754 = vmatprep.subr.bf16.mxu0 0
        %2755 = vmatpush1.bf16.msra.mxu0 0
        %2756 = vmatprep.subr.bf16.mxu0 0
        %2757 = vmatpush1.bf16.msra.mxu0 0
        %2758 = vmatprep.subr.bf16.mxu0 0
        %2759 = vmatpush1.bf16.msra.mxu0 0
        %2760 = vmatprep.subr.bf16.mxu0 0
        %2761 = vmatpush1.bf16.msra.mxu0 0
        %2762 = vmatprep.subr.bf16.mxu0 0
        %2763 = vmatpush1.bf16.msra.mxu0 0
        %2764 = vmatprep.subr.bf16.mxu0 0
        %2765 = vmatpush1.bf16.msra.mxu0 0
        %2766 = vmatprep.subr.bf16.mxu0 0
        %2767 = vmatpush1.bf16.msra.mxu0 0
        %2768 = vmatprep.subr.bf16.mxu0 0
        %2769 = vmatpush1.bf16.msra.mxu0 0
        %2770 = vmatprep.subr.bf16.mxu0 0
        %2771 = vmatpush1.bf16.msra.mxu0 0
        %2772 = vmatprep.subr.bf16.mxu0 0
        %2773 = vmatpush1.bf16.msra.mxu0 0
        %2774 = vmatprep.mubr.bf16.mxu0 0
        %2775 = vmatmul.mubr.bf16.gmra.mrb[0].mxu0 %v2740
        %v2776 = vpop.f32.mrb[0].mxu0
        %v2777 = vadd.f32 0.0, %v2776
        %v2778 = vpop.f32.mrb[0].mxu0
        %v2779 = vpop.f32.mrb[0].mxu0
        %v2780 = vpop.f32.mrb[0].mxu0
        %2781 = vdwg.mxu0
        %2782 = vmatprep.subr.bf16.mxu0 0
        %2783 = vmatpush1.bf16.msra.mxu0 %v2073
        %2784 = vmatprep.subr.bf16.mxu0 0
        %2785 = vmatpush1.bf16.msra.mxu0 %v2074
        %2786 = vmatprep.subr.bf16.mxu0 0
        %2787 = vmatpush1.bf16.msra.mxu0 0
        %2788 = vmatprep.subr.bf16.mxu0 0
        %2789 = vmatpush1.bf16.msra.mxu0 0
        %2790 = vmatprep.subr.bf16.mxu0 0
        %2791 = vmatpush1.bf16.msra.mxu0 0
        %2792 = vmatprep.subr.bf16.mxu0 0
        %2793 = vmatpush1.bf16.msra.mxu0 0
        %2794 = vmatprep.subr.bf16.mxu0 0
        %2795 = vmatpush1.bf16.msra.mxu0 0
        %2796 = vmatprep.subr.bf16.mxu0 0
        %2797 = vmatpush1.bf16.msra.mxu0 0
        %2798 = vmatprep.subr.bf16.mxu0 0
        %2799 = vmatpush1.bf16.msra.mxu0 0
        %2800 = vmatprep.subr.bf16.mxu0 0
        %2801 = vmatpush1.bf16.msra.mxu0 0
        %2802 = vmatprep.subr.bf16.mxu0 0
        %2803 = vmatpush1.bf16.msra.mxu0 0
        %2804 = vmatprep.subr.bf16.mxu0 0
        %2805 = vmatpush1.bf16.msra.mxu0 0
        %2806 = vmatprep.subr.bf16.mxu0 0
        %2807 = vmatpush1.bf16.msra.mxu0 0
        %2808 = vmatprep.subr.bf16.mxu0 0
        %2809 = vmatpush1.bf16.msra.mxu0 0
        %2810 = vmatprep.subr.bf16.mxu0 0
        %2811 = vmatpush1.bf16.msra.mxu0 0
        %2812 = vmatprep.subr.bf16.mxu0 0
        %2813 = vmatpush1.bf16.msra.mxu0 0
        %2814 = vmatprep.mubr.bf16.mxu0 0
        %2815 = vmatmul.mubr.bf16.gmra.mrb[0].mxu0 %v1479
        %v2816 = vpop.f32.mrb[0].mxu0
        %v2817 = vadd.f32 %v2777, %v2816
        %v2818 = vpop.f32.mrb[0].mxu0
        %v2819 = vpop.f32.mrb[0].mxu0
        %v2820 = vpop.f32.mrb[0].mxu0
        %2821 = vdwg.mxu0
        %v2822 = vadd.f32 %v2817, %v2121
        %v2823 = vsub.f32 0.0, %v2822
        %v2824 = vmul.f32 %v2823, 1.442695
        %v2825 = vpow.pop %v2824
        %v2826 = vadd.f32 %v2825, 1.0
        %v2827 = vrcp.pop %v2826
        %v2828 = vtanh.pop %v2822
        %v2829 = vmul.f32 %v2827, %v2673
        %2831 = vrot.lane.b32.xlu0 %v2828, 64
        %v2832 = vpop.permute.xlu0 %2831
        %v2834 = vmul.f32 %v2827, %v2832
        %2836 = vrot.lane.b32.xlu0 %v2834, 32
        %v2837 = vpop.permute.xlu0 %2836
        %v2839 = vadd.f32 %v2829, %v2837
        %v2840 = vtanh.pop %v2839
        %2842 = vrot.lane.b32.xlu0 %v2840, 64
        %v2843 = vpop.permute.xlu0 %2842
        %v2845 = vmul.f32 %v2827, %v2843
        %2847 = vrot.lane.b32.xlu0 %v1544, 32
        %v2848 = vpop.permute.xlu0 %2847
        %2851 = vrot.lane.b32.xlu0 %v2845, 64
        %v2852 = vpop.permute.xlu0 %2851
        %v2854 = vsel %vm631, %v2848, %v2852
        %v2855 = vpack.c.bf16 %v2854, %v2854
        %v2857 = vsel %vm2191, %v2855, 0
        %2859 = vmatprep.subr.bf16.mxu0 0
        %2860 = vmatpush1.bf16.msra.mxu0 %v2183
        %2861 = vmatprep.subr.bf16.mxu0 0
        %2862 = vmatpush1.bf16.msra.mxu0 %v2184
        %2863 = vmatprep.subr.bf16.mxu0 0
        %2864 = vmatpush1.bf16.msra.mxu0 %v2185
        %2865 = vmatprep.subr.bf16.mxu0 0
        %2866 = vmatpush1.bf16.msra.mxu0 %v2186
        %2867 = vmatprep.subr.bf16.mxu0 0
        %2868 = vmatpush1.bf16.msra.mxu0 0
        %2869 = vmatprep.subr.bf16.mxu0 0
        %2870 = vmatpush1.bf16.msra.mxu0 0
        %2871 = vmatprep.subr.bf16.mxu0 0
        %2872 = vmatpush1.bf16.msra.mxu0 0
        %2873 = vmatprep.subr.bf16.mxu0 0
        %2874 = vmatpush1.bf16.msra.mxu0 0
        %2875 = vmatprep.subr.bf16.mxu0 0
        %2876 = vmatpush1.bf16.msra.mxu0 0
        %2877 = vmatprep.subr.bf16.mxu0 0
        %2878 = vmatpush1.bf16.msra.mxu0 0
        %2879 = vmatprep.subr.bf16.mxu0 0
        %2880 = vmatpush1.bf16.msra.mxu0 0
        %2881 = vmatprep.subr.bf16.mxu0 0
        %2882 = vmatpush1.bf16.msra.mxu0 0
        %2883 = vmatprep.subr.bf16.mxu0 0
        %2884 = vmatpush1.bf16.msra.mxu0 0
        %2885 = vmatprep.subr.bf16.mxu0 0
        %2886 = vmatpush1.bf16.msra.mxu0 0
        %2887 = vmatprep.subr.bf16.mxu0 0
        %2888 = vmatpush1.bf16.msra.mxu0 0
        %2889 = vmatprep.subr.bf16.mxu0 0
        %2890 = vmatpush1.bf16.msra.mxu0 0
        %2891 = vmatprep.mubr.bf16.mxu0 0
        %2892 = vmatmul.mubr.bf16.gmra.mrb[0].mxu0 %v2857
        %v2893 = vpop.f32.mrb[0].mxu0
        %v2894 = vadd.f32 %v2165, %v2893
        %v2895 = vpop.f32.mrb[0].mxu0
        %v2896 = vpop.f32.mrb[0].mxu0
        %v2897 = vpop.f32.mrb[0].mxu0
        %2898 = vdwg.mxu0
        %s2899 = scalar_lea.vmem %s599, 24 [#allocation17]
        %2900 = vst [vmem:[%s2899] sm:$0xff] %v2894
        %v2901 = vpack.c.bf16 %v2845, %v2845
        %2903 = vrot.lane.b32.xlu0 %v2901, 32
        %v2904 = vpop.permute.xlu0 %2903
        %v2906 = vsel %vm631, %v2904, 0
        %2908 = vmatprep.subr.bf16.mxu0 0
        %2909 = vmatpush1.bf16.msra.mxu0 %v2018
        %2910 = vmatprep.subr.bf16.mxu0 0
        %2911 = vmatpush1.bf16.msra.mxu0 %v2019
        %2912 = vmatprep.subr.bf16.mxu0 0
        %2913 = vmatpush1.bf16.msra.mxu0 0
        %2914 = vmatprep.subr.bf16.mxu0 0
        %2915 = vmatpush1.bf16.msra.mxu0 0
        %2916 = vmatprep.subr.bf16.mxu0 0
        %2917 = vmatpush1.bf16.msra.mxu0 0
        %2918 = vmatprep.subr.bf16.mxu0 0
        %2919 = vmatpush1.bf16.msra.mxu0 0
        %2920 = vmatprep.subr.bf16.mxu0 0
        %2921 = vmatpush1.bf16.msra.mxu0 0
        %2922 = vmatprep.subr.bf16.mxu0 0
        %2923 = vmatpush1.bf16.msra.mxu0 0
        %2924 = vmatprep.subr.bf16.mxu0 0
        %2925 = vmatpush1.bf16.msra.mxu0 0
        %2926 = vmatprep.subr.bf16.mxu0 0
        %2927 = vmatpush1.bf16.msra.mxu0 0
        %2928 = vmatprep.subr.bf16.mxu0 0
        %2929 = vmatpush1.bf16.msra.mxu0 0
        %2930 = vmatprep.subr.bf16.mxu0 0
        %2931 = vmatpush1.bf16.msra.mxu0 0
        %2932 = vmatprep.subr.bf16.mxu0 0
        %2933 = vmatpush1.bf16.msra.mxu0 0
        %2934 = vmatprep.subr.bf16.mxu0 0
        %2935 = vmatpush1.bf16.msra.mxu0 0
        %2936 = vmatprep.subr.bf16.mxu0 0
        %2937 = vmatpush1.bf16.msra.mxu0 0
        %2938 = vmatprep.subr.bf16.mxu0 0
        %2939 = vmatpush1.bf16.msra.mxu0 0
        %2940 = vmatprep.mubr.bf16.mxu0 0
        %2941 = vmatmul.mubr.bf16.gmra.mrb[0].mxu0 %v2906
        %v2942 = vpop.f32.mrb[0].mxu0
        %v2943 = vadd.f32 0.0, %v2942
        %v2944 = vpop.f32.mrb[0].mxu0
        %v2945 = vpop.f32.mrb[0].mxu0
        %v2946 = vpop.f32.mrb[0].mxu0
        %2947 = vdwg.mxu0
        %2948 = vmatprep.subr.bf16.mxu0 0
        %2949 = vmatpush1.bf16.msra.mxu0 %v2073
        %2950 = vmatprep.subr.bf16.mxu0 0
        %2951 = vmatpush1.bf16.msra.mxu0 %v2074
        %2952 = vmatprep.subr.bf16.mxu0 0
        %2953 = vmatpush1.bf16.msra.mxu0 0
        %2954 = vmatprep.subr.bf16.mxu0 0
        %2955 = vmatpush1.bf16.msra.mxu0 0
        %2956 = vmatprep.subr.bf16.mxu0 0
        %2957 = vmatpush1.bf16.msra.mxu0 0
        %2958 = vmatprep.subr.bf16.mxu0 0
        %2959 = vmatpush1.bf16.msra.mxu0 0
        %2960 = vmatprep.subr.bf16.mxu0 0
        %2961 = vmatpush1.bf16.msra.mxu0 0
        %2962 = vmatprep.subr.bf16.mxu0 0
        %2963 = vmatpush1.bf16.msra.mxu0 0
        %2964 = vmatprep.subr.bf16.mxu0 0
        %2965 = vmatpush1.bf16.msra.mxu0 0
        %2966 = vmatprep.subr.bf16.mxu0 0
        %2967 = vmatpush1.bf16.msra.mxu0 0
        %2968 = vmatprep.subr.bf16.mxu0 0
        %2969 = vmatpush1.bf16.msra.mxu0 0
        %2970 = vmatprep.subr.bf16.mxu0 0
        %2971 = vmatpush1.bf16.msra.mxu0 0
        %2972 = vmatprep.subr.bf16.mxu0 0
        %2973 = vmatpush1.bf16.msra.mxu0 0
        %2974 = vmatprep.subr.bf16.mxu0 0
        %2975 = vmatpush1.bf16.msra.mxu0 0
        %2976 = vmatprep.subr.bf16.mxu0 0
        %2977 = vmatpush1.bf16.msra.mxu0 0
        %2978 = vmatprep.subr.bf16.mxu0 0
        %2979 = vmatpush1.bf16.msra.mxu0 0
        %2980 = vmatprep.mubr.bf16.mxu0 0
        %2981 = vmatmul.mubr.bf16.gmra.mrb[0].mxu0 %v1364
        %v2982 = vpop.f32.mrb[0].mxu0
        %v2983 = vadd.f32 %v2943, %v2982
        %v2984 = vpop.f32.mrb[0].mxu0
        %v2985 = vpop.f32.mrb[0].mxu0
        %v2986 = vpop.f32.mrb[0].mxu0
        %2987 = vdwg.mxu0
        %v2988 = vadd.f32 %v2983, %v2121
        %v2989 = vsub.f32 0.0, %v2988
        %v2990 = vmul.f32 %v2989, 1.442695
        %v2991 = vpow.pop %v2990
        %v2992 = vadd.f32 %v2991, 1.0
        %v2993 = vrcp.pop %v2992
        %v2994 = vtanh.pop %v2988
        %v2995 = vmul.f32 %v2993, %v2839
        %2997 = vrot.lane.b32.xlu0 %v2994, 64
        %v2998 = vpop.permute.xlu0 %2997
        %v3000 = vmul.f32 %v2993, %v2998
        %3002 = vrot.lane.b32.xlu0 %v3000, 32
        %v3003 = vpop.permute.xlu0 %3002
        %v3005 = vadd.f32 %v2995, %v3003
        %v3006 = vtanh.pop %v3005
        %3008 = vrot.lane.b32.xlu0 %v3006, 64
        %v3009 = vpop.permute.xlu0 %3008
        %v3011 = vmul.f32 %v2993, %v3009
        %3013 = vrot.lane.b32.xlu0 %v1429, 32
        %v3014 = vpop.permute.xlu0 %3013
        %3017 = vrot.lane.b32.xlu0 %v3011, 64
        %v3018 = vpop.permute.xlu0 %3017
        %v3020 = vsel %vm631, %v3014, %v3018
        %v3021 = vpack.c.bf16 %v3020, %v3020
        %v3023 = vsel %vm2191, %v3021, 0
        %3025 = vmatprep.subr.bf16.mxu0 0
        %3026 = vmatpush1.bf16.msra.mxu0 %v2183
        %3027 = vmatprep.subr.bf16.mxu0 0
        %3028 = vmatpush1.bf16.msra.mxu0 %v2184
        %3029 = vmatprep.subr.bf16.mxu0 0
        %3030 = vmatpush1.bf16.msra.mxu0 %v2185
        %3031 = vmatprep.subr.bf16.mxu0 0
        %3032 = vmatpush1.bf16.msra.mxu0 %v2186
        %3033 = vmatprep.subr.bf16.mxu0 0
        %3034 = vmatpush1.bf16.msra.mxu0 0
        %3035 = vmatprep.subr.bf16.mxu0 0
        %3036 = vmatpush1.bf16.msra.mxu0 0
        %3037 = vmatprep.subr.bf16.mxu0 0
        %3038 = vmatpush1.bf16.msra.mxu0 0
        %3039 = vmatprep.subr.bf16.mxu0 0
        %3040 = vmatpush1.bf16.msra.mxu0 0
        %3041 = vmatprep.subr.bf16.mxu0 0
        %3042 = vmatpush1.bf16.msra.mxu0 0
        %3043 = vmatprep.subr.bf16.mxu0 0
        %3044 = vmatpush1.bf16.msra.mxu0 0
        %3045 = vmatprep.subr.bf16.mxu0 0
        %3046 = vmatpush1.bf16.msra.mxu0 0
        %3047 = vmatprep.subr.bf16.mxu0 0
        %3048 = vmatpush1.bf16.msra.mxu0 0
        %3049 = vmatprep.subr.bf16.mxu0 0
        %3050 = vmatpush1.bf16.msra.mxu0 0
        %3051 = vmatprep.subr.bf16.mxu0 0
        %3052 = vmatpush1.bf16.msra.mxu0 0
        %3053 = vmatprep.subr.bf16.mxu0 0
        %3054 = vmatpush1.bf16.msra.mxu0 0
        %3055 = vmatprep.subr.bf16.mxu0 0
        %3056 = vmatpush1.bf16.msra.mxu0 0
        %3057 = vmatprep.mubr.bf16.mxu0 0
        %3058 = vmatmul.mubr.bf16.gmra.mrb[0].mxu0 %v3023
        %v3059 = vpop.f32.mrb[0].mxu0
        %v3060 = vadd.f32 %v2165, %v3059
        %v3061 = vpop.f32.mrb[0].mxu0
        %v3062 = vpop.f32.mrb[0].mxu0
        %v3063 = vpop.f32.mrb[0].mxu0
        %3064 = vdwg.mxu0
        %s3065 = scalar_lea.vmem %s599, 16 [#allocation17]
        %3066 = vst [vmem:[%s3065] sm:$0xff] %v3060
        %v3067 = vpack.c.bf16 %v3011, %v3011
        %3069 = vrot.lane.b32.xlu0 %v3067, 32
        %v3070 = vpop.permute.xlu0 %3069
        %v3072 = vsel %vm631, %v3070, 0
        %3074 = vmatprep.subr.bf16.mxu0 0
        %3075 = vmatpush1.bf16.msra.mxu0 %v2018
        %3076 = vmatprep.subr.bf16.mxu0 0
        %3077 = vmatpush1.bf16.msra.mxu0 %v2019
        %3078 = vmatprep.subr.bf16.mxu0 0
        %3079 = vmatpush1.bf16.msra.mxu0 0
        %3080 = vmatprep.subr.bf16.mxu0 0
        %3081 = vmatpush1.bf16.msra.mxu0 0
        %3082 = vmatprep.subr.bf16.mxu0 0
        %3083 = vmatpush1.bf16.msra.mxu0 0
        %3084 = vmatprep.subr.bf16.mxu0 0
        %3085 = vmatpush1.bf16.msra.mxu0 0
        %3086 = vmatprep.subr.bf16.mxu0 0
        %3087 = vmatpush1.bf16.msra.mxu0 0
        %3088 = vmatprep.subr.bf16.mxu0 0
        %3089 = vmatpush1.bf16.msra.mxu0 0
        %3090 = vmatprep.subr.bf16.mxu0 0
        %3091 = vmatpush1.bf16.msra.mxu0 0
        %3092 = vmatprep.subr.bf16.mxu0 0
        %3093 = vmatpush1.bf16.msra.mxu0 0
        %3094 = vmatprep.subr.bf16.mxu0 0
        %3095 = vmatpush1.bf16.msra.mxu0 0
        %3096 = vmatprep.subr.bf16.mxu0 0
        %3097 = vmatpush1.bf16.msra.mxu0 0
        %3098 = vmatprep.subr.bf16.mxu0 0
        %3099 = vmatpush1.bf16.msra.mxu0 0
        %3100 = vmatprep.subr.bf16.mxu0 0
        %3101 = vmatpush1.bf16.msra.mxu0 0
        %3102 = vmatprep.subr.bf16.mxu0 0
        %3103 = vmatpush1.bf16.msra.mxu0 0
        %3104 = vmatprep.subr.bf16.mxu0 0
        %3105 = vmatpush1.bf16.msra.mxu0 0
        %3106 = vmatprep.mubr.bf16.mxu0 0
        %3107 = vmatmul.mubr.bf16.gmra.mrb[0].mxu0 %v3072
        %v3108 = vpop.f32.mrb[0].mxu0
        %v3109 = vadd.f32 0.0, %v3108
        %v3110 = vpop.f32.mrb[0].mxu0
        %v3111 = vpop.f32.mrb[0].mxu0
        %v3112 = vpop.f32.mrb[0].mxu0
        %3113 = vdwg.mxu0
        %3114 = vmatprep.subr.bf16.mxu0 0
        %3115 = vmatpush1.bf16.msra.mxu0 %v2073
        %3116 = vmatprep.subr.bf16.mxu0 0
        %3117 = vmatpush1.bf16.msra.mxu0 %v2074
        %3118 = vmatprep.subr.bf16.mxu0 0
        %3119 = vmatpush1.bf16.msra.mxu0 0
        %3120 = vmatprep.subr.bf16.mxu0 0
        %3121 = vmatpush1.bf16.msra.mxu0 0
        %3122 = vmatprep.subr.bf16.mxu0 0
        %3123 = vmatpush1.bf16.msra.mxu0 0
        %3124 = vmatprep.subr.bf16.mxu0 0
        %3125 = vmatpush1.bf16.msra.mxu0 0
        %3126 = vmatprep.subr.bf16.mxu0 0
        %3127 = vmatpush1.bf16.msra.mxu0 0
        %3128 = vmatprep.subr.bf16.mxu0 0
        %3129 = vmatpush1.bf16.msra.mxu0 0
        %3130 = vmatprep.subr.bf16.mxu0 0
        %3131 = vmatpush1.bf16.msra.mxu0 0
        %3132 = vmatprep.subr.bf16.mxu0 0
        %3133 = vmatpush1.bf16.msra.mxu0 0
        %3134 = vmatprep.subr.bf16.mxu0 0
        %3135 = vmatpush1.bf16.msra.mxu0 0
        %3136 = vmatprep.subr.bf16.mxu0 0
        %3137 = vmatpush1.bf16.msra.mxu0 0
        %3138 = vmatprep.subr.bf16.mxu0 0
        %3139 = vmatpush1.bf16.msra.mxu0 0
        %3140 = vmatprep.subr.bf16.mxu0 0
        %3141 = vmatpush1.bf16.msra.mxu0 0
        %3142 = vmatprep.subr.bf16.mxu0 0
        %3143 = vmatpush1.bf16.msra.mxu0 0
        %3144 = vmatprep.subr.bf16.mxu0 0
        %3145 = vmatpush1.bf16.msra.mxu0 0
        %3146 = vmatprep.mubr.bf16.mxu0 0
        %3147 = vmatmul.mubr.bf16.gmra.mrb[0].mxu0 %v1249
        %v3148 = vpop.f32.mrb[0].mxu0
        %v3149 = vadd.f32 %v3109, %v3148
        %v3150 = vpop.f32.mrb[0].mxu0
        %v3151 = vpop.f32.mrb[0].mxu0
        %v3152 = vpop.f32.mrb[0].mxu0
        %3153 = vdwg.mxu0
        %v3154 = vadd.f32 %v3149, %v2121
        %v3155 = vsub.f32 0.0, %v3154
        %v3156 = vmul.f32 %v3155, 1.442695
        %v3157 = vpow.pop %v3156
        %v3158 = vadd.f32 %v3157, 1.0
        %v3159 = vrcp.pop %v3158
        %v3160 = vtanh.pop %v3154
        %v3161 = vmul.f32 %v3159, %v3005
        %3163 = vrot.lane.b32.xlu0 %v3160, 64
        %v3164 = vpop.permute.xlu0 %3163
        %v3166 = vmul.f32 %v3159, %v3164
        %3168 = vrot.lane.b32.xlu0 %v3166, 32
        %v3169 = vpop.permute.xlu0 %3168
        %v3171 = vadd.f32 %v3161, %v3169
        %v3172 = vtanh.pop %v3171
        %3174 = vrot.lane.b32.xlu0 %v3172, 64
        %v3175 = vpop.permute.xlu0 %3174
        %v3177 = vmul.f32 %v3159, %v3175
        %3179 = vrot.lane.b32.xlu0 %v1314, 32
        %v3180 = vpop.permute.xlu0 %3179
        %3183 = vrot.lane.b32.xlu0 %v3177, 64
        %v3184 = vpop.permute.xlu0 %3183
        %v3186 = vsel %vm631, %v3180, %v3184
        %v3187 = vpack.c.bf16 %v3186, %v3186
        %v3189 = vsel %vm2191, %v3187, 0
        %3191 = vmatprep.subr.bf16.mxu0 0
        %3192 = vmatpush1.bf16.msra.mxu0 %v2183
        %3193 = vmatprep.subr.bf16.mxu0 0
        %3194 = vmatpush1.bf16.msra.mxu0 %v2184
        %3195 = vmatprep.subr.bf16.mxu0 0
        %3196 = vmatpush1.bf16.msra.mxu0 %v2185
        %3197 = vmatprep.subr.bf16.mxu0 0
        %3198 = vmatpush1.bf16.msra.mxu0 %v2186
        %3199 = vmatprep.subr.bf16.mxu0 0
        %3200 = vmatpush1.bf16.msra.mxu0 0
        %3201 = vmatprep.subr.bf16.mxu0 0
        %3202 = vmatpush1.bf16.msra.mxu0 0
        %3203 = vmatprep.subr.bf16.mxu0 0
        %3204 = vmatpush1.bf16.msra.mxu0 0
        %3205 = vmatprep.subr.bf16.mxu0 0
        %3206 = vmatpush1.bf16.msra.mxu0 0
        %3207 = vmatprep.subr.bf16.mxu0 0
        %3208 = vmatpush1.bf16.msra.mxu0 0
        %3209 = vmatprep.subr.bf16.mxu0 0
        %3210 = vmatpush1.bf16.msra.mxu0 0
        %3211 = vmatprep.subr.bf16.mxu0 0
        %3212 = vmatpush1.bf16.msra.mxu0 0
        %3213 = vmatprep.subr.bf16.mxu0 0
        %3214 = vmatpush1.bf16.msra.mxu0 0
        %3215 = vmatprep.subr.bf16.mxu0 0
        %3216 = vmatpush1.bf16.msra.mxu0 0
        %3217 = vmatprep.subr.bf16.mxu0 0
        %3218 = vmatpush1.bf16.msra.mxu0 0
        %3219 = vmatprep.subr.bf16.mxu0 0
        %3220 = vmatpush1.bf16.msra.mxu0 0
        %3221 = vmatprep.subr.bf16.mxu0 0
        %3222 = vmatpush1.bf16.msra.mxu0 0
        %3223 = vmatprep.mubr.bf16.mxu0 0
        %3224 = vmatmul.mubr.bf16.gmra.mrb[0].mxu0 %v3189
        %v3225 = vpop.f32.mrb[0].mxu0
        %v3226 = vadd.f32 %v2165, %v3225
        %v3227 = vpop.f32.mrb[0].mxu0
        %v3228 = vpop.f32.mrb[0].mxu0
        %v3229 = vpop.f32.mrb[0].mxu0
        %3230 = vdwg.mxu0
        %s3231 = scalar_lea.vmem %s599, 8 [#allocation17]
        %3232 = vst [vmem:[%s3231] sm:$0xff] %v3226
        %v3233 = vpack.c.bf16 %v3177, %v3177
        %3235 = vrot.lane.b32.xlu0 %v3233, 32
        %v3236 = vpop.permute.xlu0 %3235
        %v3238 = vsel %vm631, %v3236, 0
        %3240 = vmatprep.subr.bf16.mxu0 0
        %3241 = vmatpush1.bf16.msra.mxu0 %v2018
        %3242 = vmatprep.subr.bf16.mxu0 0
        %3243 = vmatpush1.bf16.msra.mxu0 %v2019
        %3244 = vmatprep.subr.bf16.mxu0 0
        %3245 = vmatpush1.bf16.msra.mxu0 0
        %3246 = vmatprep.subr.bf16.mxu0 0
        %3247 = vmatpush1.bf16.msra.mxu0 0
        %3248 = vmatprep.subr.bf16.mxu0 0
        %3249 = vmatpush1.bf16.msra.mxu0 0
        %3250 = vmatprep.subr.bf16.mxu0 0
        %3251 = vmatpush1.bf16.msra.mxu0 0
        %3252 = vmatprep.subr.bf16.mxu0 0
        %3253 = vmatpush1.bf16.msra.mxu0 0
        %3254 = vmatprep.subr.bf16.mxu0 0
        %3255 = vmatpush1.bf16.msra.mxu0 0
        %3256 = vmatprep.subr.bf16.mxu0 0
        %3257 = vmatpush1.bf16.msra.mxu0 0
        %3258 = vmatprep.subr.bf16.mxu0 0
        %3259 = vmatpush1.bf16.msra.mxu0 0
        %3260 = vmatprep.subr.bf16.mxu0 0
        %3261 = vmatpush1.bf16.msra.mxu0 0
        %3262 = vmatprep.subr.bf16.mxu0 0
        %3263 = vmatpush1.bf16.msra.mxu0 0
        %3264 = vmatprep.subr.bf16.mxu0 0
        %3265 = vmatpush1.bf16.msra.mxu0 0
        %3266 = vmatprep.subr.bf16.mxu0 0
        %3267 = vmatpush1.bf16.msra.mxu0 0
        %3268 = vmatprep.subr.bf16.mxu0 0
        %3269 = vmatpush1.bf16.msra.mxu0 0
        %3270 = vmatprep.subr.bf16.mxu0 0
        %3271 = vmatpush1.bf16.msra.mxu0 0
        %3272 = vmatprep.mubr.bf16.mxu0 0
        %3273 = vmatmul.mubr.bf16.gmra.mrb[0].mxu0 %v3238
        %v3274 = vpop.f32.mrb[0].mxu0
        %v3275 = vadd.f32 0.0, %v3274
        %v3276 = vpop.f32.mrb[0].mxu0
        %v3277 = vpop.f32.mrb[0].mxu0
        %v3278 = vpop.f32.mrb[0].mxu0
        %3279 = vdwg.mxu0
        %3280 = vmatprep.subr.bf16.mxu0 0
        %3281 = vmatpush1.bf16.msra.mxu0 %v2073
        %3282 = vmatprep.subr.bf16.mxu0 0
        %3283 = vmatpush1.bf16.msra.mxu0 %v2074
        %3284 = vmatprep.subr.bf16.mxu0 0
        %3285 = vmatpush1.bf16.msra.mxu0 0
        %3286 = vmatprep.subr.bf16.mxu0 0
        %3287 = vmatpush1.bf16.msra.mxu0 0
        %3288 = vmatprep.subr.bf16.mxu0 0
        %3289 = vmatpush1.bf16.msra.mxu0 0
        %3290 = vmatprep.subr.bf16.mxu0 0
        %3291 = vmatpush1.bf16.msra.mxu0 0
        %3292 = vmatprep.subr.bf16.mxu0 0
        %3293 = vmatpush1.bf16.msra.mxu0 0
        %3294 = vmatprep.subr.bf16.mxu0 0
        %3295 = vmatpush1.bf16.msra.mxu0 0
        %3296 = vmatprep.subr.bf16.mxu0 0
        %3297 = vmatpush1.bf16.msra.mxu0 0
        %3298 = vmatprep.subr.bf16.mxu0 0
        %3299 = vmatpush1.bf16.msra.mxu0 0
        %3300 = vmatprep.subr.bf16.mxu0 0
        %3301 = vmatpush1.bf16.msra.mxu0 0
        %3302 = vmatprep.subr.bf16.mxu0 0
        %3303 = vmatpush1.bf16.msra.mxu0 0
        %3304 = vmatprep.subr.bf16.mxu0 0
        %3305 = vmatpush1.bf16.msra.mxu0 0
        %3306 = vmatprep.subr.bf16.mxu0 0
        %3307 = vmatpush1.bf16.msra.mxu0 0
        %3308 = vmatprep.subr.bf16.mxu0 0
        %3309 = vmatpush1.bf16.msra.mxu0 0
        %3310 = vmatprep.subr.bf16.mxu0 0
        %3311 = vmatpush1.bf16.msra.mxu0 0
        %3312 = vmatprep.mubr.bf16.mxu0 0
        %3313 = vmatmul.mubr.bf16.gmra.mrb[0].mxu0 %v1124
        %v3314 = vpop.f32.mrb[0].mxu0
        %v3315 = vadd.f32 %v3275, %v3314
        %v3316 = vpop.f32.mrb[0].mxu0
        %v3317 = vpop.f32.mrb[0].mxu0
        %v3318 = vpop.f32.mrb[0].mxu0
        %3319 = vdwg.mxu0
        %v3320 = vadd.f32 %v3315, %v2121
        %v3321 = vsub.f32 0.0, %v3320
        %v3322 = vmul.f32 %v3321, 1.442695
        %v3323 = vpow.pop %v3322
        %v3324 = vadd.f32 %v3323, 1.0
        %v3325 = vrcp.pop %v3324
        %v3326 = vtanh.pop %v3320
        %v3327 = vmul.f32 %v3325, %v3171
        %3329 = vrot.lane.b32.xlu0 %v3326, 64
        %v3330 = vpop.permute.xlu0 %3329
        %v3332 = vmul.f32 %v3325, %v3330
        %3334 = vrot.lane.b32.xlu0 %v3332, 32
        %v3335 = vpop.permute.xlu0 %3334
        %v3337 = vadd.f32 %v3327, %v3335
        %v3338 = vtanh.pop %v3337
        %3340 = vrot.lane.b32.xlu0 %v3338, 64
        %v3341 = vpop.permute.xlu0 %3340
        %v3343 = vmul.f32 %v3325, %v3341
        %3345 = vrot.lane.b32.xlu0 %v1199, 32
        %v3346 = vpop.permute.xlu0 %3345
        %3349 = vrot.lane.b32.xlu0 %v3343, 64
        %v3350 = vpop.permute.xlu0 %3349
        %v3352 = vsel %vm631, %v3346, %v3350
        %v3353 = vpack.c.bf16 %v3352, %v3352
        %v3355 = vsel %vm2191, %v3353, 0
        %3357 = vmatprep.subr.bf16.mxu0 0
        %3358 = vmatpush1.bf16.msra.mxu0 %v2183
        %3359 = vmatprep.subr.bf16.mxu0 0
        %3360 = vmatpush1.bf16.msra.mxu0 %v2184
        %3361 = vmatprep.subr.bf16.mxu0 0
        %3362 = vmatpush1.bf16.msra.mxu0 %v2185
        %3363 = vmatprep.subr.bf16.mxu0 0
        %3364 = vmatpush1.bf16.msra.mxu0 %v2186
        %3365 = vmatprep.subr.bf16.mxu0 0
        %3366 = vmatpush1.bf16.msra.mxu0 0
        %3367 = vmatprep.subr.bf16.mxu0 0
        %3368 = vmatpush1.bf16.msra.mxu0 0
        %3369 = vmatprep.subr.bf16.mxu0 0
        %3370 = vmatpush1.bf16.msra.mxu0 0
        %3371 = vmatprep.subr.bf16.mxu0 0
        %3372 = vmatpush1.bf16.msra.mxu0 0
        %3373 = vmatprep.subr.bf16.mxu0 0
        %3374 = vmatpush1.bf16.msra.mxu0 0
        %3375 = vmatprep.subr.bf16.mxu0 0
        %3376 = vmatpush1.bf16.msra.mxu0 0
        %3377 = vmatprep.subr.bf16.mxu0 0
        %3378 = vmatpush1.bf16.msra.mxu0 0
        %3379 = vmatprep.subr.bf16.mxu0 0
        %3380 = vmatpush1.bf16.msra.mxu0 0
        %3381 = vmatprep.subr.bf16.mxu0 0
        %3382 = vmatpush1.bf16.msra.mxu0 0
        %3383 = vmatprep.subr.bf16.mxu0 0
        %3384 = vmatpush1.bf16.msra.mxu0 0
        %3385 = vmatprep.subr.bf16.mxu0 0
        %3386 = vmatpush1.bf16.msra.mxu0 0
        %3387 = vmatprep.subr.bf16.mxu0 0
        %3388 = vmatpush1.bf16.msra.mxu0 0
        %3389 = vmatprep.mubr.bf16.mxu0 0
        %3390 = vmatmul.mubr.bf16.gmra.mrb[0].mxu0 %v3355
        %v3391 = vpop.f32.mrb[0].mxu0
        %v3392 = vadd.f32 %v2165, %v3391
        %v3393 = vpop.f32.mrb[0].mxu0
        %v3394 = vpop.f32.mrb[0].mxu0
        %v3395 = vpop.f32.mrb[0].mxu0
        %3396 = vdwg.mxu0
        %3397 = vst [vmem:[%s599] sm:$0xff] %v3392
        %s3398 = sand.u32 %s308, 1
        %s3399 = scalar_lea.sflag [#allocation4], %s3398
        %s3400 = sand.u32 %s308, 1
        %s3401 = smul.addr %s3400, 64
        %s3402 = scalar_lea.vmem [#allocation17], %s3401
        // Predicated region
        $region139: #{tpu_custom_call.1} parent=101 // pred_check
          %p3403 = pneg %p318
        $region140: #{tpu_custom_call.1} parent=101 // pred_check_branch
          %3405 = sbr.rel (%p3403) target = $region142
        $region141: #{tpu_custom_call.1} parent=101 // pred_region
          %s3407 = ssub.s32 1024, 1024
          %3408 = vsyncadd %s3399, %s3407
          %s3409 = smul.addr %s33, 128
          %s3410 = scalar_lea.hbm %s12, %s3409
          %s3411 = sshll.u32 %s3402, 4
          %s3412 = int_to_ptr.vmem [resolvable:$true] %s3411
          %3417 = dma.vmem_to_hbm [thread:$0]  %s3412, 1024, %s3410, %s3399, 128, 256, 8
        $region142: #{tpu_custom_call.1} parent=101 // pred_fallthru
          _
      $region102: #{tpu_custom_call.1} parent=5 // pred_fallthru
        _
      %p3418 = scmp.le.s32.totalorder 2, %s28
      // Predicated region
      $region143: #{tpu_custom_call.1} parent=5 // pred_check
        %p3419 = pneg %p3418
      $region144: #{tpu_custom_call.1} parent=5 // pred_check_branch
        %3421 = sbr.rel (%p3419) target = $region146
      $region145: #{tpu_custom_call.1} parent=5 // pred_region
        %s3422 = ssub.s32 %s28, 2
        // Predicated region
        $region147: #{tpu_custom_call.1} parent=145 // pred_check
          %p3423 = pneg %p324
        $region148: #{tpu_custom_call.1} parent=145 // pred_check_branch
          %3425 = sbr.rel (%p3423) target = $region150
        $region149: #{tpu_custom_call.1} parent=145 // pred_region
          %s3426 = sand.u32 %s309, 1
          %s3427 = scalar_lea.sflag [#allocation4], %s3426
          %s3428 = sand.u32 %s309, 1
          %s3429 = smul.addr %s3428, 64
          %s3430 = scalar_lea.vmem [#allocation17], %s3429
          %3431 = dma.done %s3427, 1024
        $region150: #{tpu_custom_call.1} parent=145 // pred_fallthru
          _
      $region146: #{tpu_custom_call.1} parent=5 // pred_fallthru
        _
    $region6: #{tpu_custom_call.1} parent=1 // loop_footer
      %s32 = sadd.s32 1, %s28
    $region7: #{tpu_custom_call.1} parent=1 // loop_footer_branch
      %27 = sbr.rel target = $region3
    $region8: #{tpu_custom_call.1} parent=1 // loop_exit
      _
    %3432 = vsyncpa [#allocation3], 1
    %s3433 = scalar_lea.sflag [#allocation3], 1
    %3434 = vsyncpa %s3433, 1
    %3435 = vsyncpa [#allocation6], 1
    %3436 = vsyncpa [#allocation9], 1
    %3437 = vsyncpa [#allocation12], 1
    %3438 = vsyncpa [#allocation15], 1
    %s3439 = scalar_lea.sflag [#allocation15], 1
    %3440 = vsyncpa %s3439, 1
    %3441 = vsyncpa [#allocation4], 1
    %s3442 = scalar_lea.sflag [#allocation4], 1
    %3443 = vsyncpa %s3442, 1

</llo_original>
